<compile_context>
chip_gen: v7x
topology: tpu7x:2x2x1
jax: 0.10.0
libtpu: 0.0.40
codegen_flags: <defaults>
</compile_context>

<pallas_src>
import numpy as np
import jax
import jax.numpy as jnp
from jax.experimental import pallas as pl
from jax.experimental.pallas import tpu as pltpu

# ------------------------- model constants (SMPL-X) -------------------------
NUM_BODY_JOINTS = 21
NUM_HAND_JOINTS = 15
NUM_FACE_JOINTS = 3
NUM_JOINTS = NUM_BODY_JOINTS + 2 * NUM_HAND_JOINTS + NUM_FACE_JOINTS  # 54
NUM_TOTAL_JOINTS = NUM_JOINTS + 1                                      # 55
POSE_DIM = NUM_TOTAL_JOINTS * 3                                        # 165
POSE_FEAT_DIM = NUM_JOINTS * 9                                         # 486 (no pad)

VERTEX_IDS_SMPLX = {
    'nose': 9120, 'reye': 9929, 'leye': 9448, 'rear': 616, 'lear': 6,
    'rthumb': 8079, 'rindex': 7669, 'rmiddle': 7794, 'rring': 7905, 'rpinky': 8022,
    'lthumb': 5361, 'lindex': 4933, 'lmiddle': 5058, 'lring': 5169, 'lpinky': 5286,
    'LBigToe': 5770, 'LSmallToe': 5780, 'LHeel': 8846,
    'RBigToe': 8463, 'RSmallToe': 8474, 'RHeel': 8635,
}


def _cdiv(a, b):
    return (a + b - 1) // b


def _budgets():
    """(vmem_limit_bytes, blend_tile_cap, skin_tile_cap) per chip generation."""
    kind = ""
    try:
        kind = jax.devices()[0].device_kind.lower()
    except Exception:
        pass
    if ("v5" in kind) or ("v6" in kind):
        # 128 MiB physical VMEM: bigger tiles amortize the ~0.35 us/step cost.
        return 96 * 1024 * 1024, 8192, 4096
    # v7x (64 MiB VMEM) and unknown chips: conservative budget.
    return 32 * 1024 * 1024, 4096, 2048


def _pick_tile(total, cap):
    """Fixed lane tile (multiple of 128); grid uses cdiv so `total` need not
    divide evenly.  Prefer the largest tile <= cap; only shrink (<= ~12.5%) to
    make the step count even (v7x shards 'parallel' grid axes over 2 TCs)."""
    cap = max(128, (cap // 128) * 128)
    if total <= cap:
        return total                       # single full block (full-dim exemption)
    steps = _cdiv(total, cap)
    if steps % 2:
        t_even = _cdiv(_cdiv(total, steps + 1), 128) * 128
        if 8 * t_even >= 7 * cap:          # near-tie only
            return t_even
    return cap


# ----------------------------- Pallas kernels --------------------------------


def _make_blend_kernel(num_betas):
    def _blend_kernel(sc_ref, pf_ref, sdt_ref, pd_ref, vt_ref,
                      vs_ref, vp_ref, vsb_ref):
        """Shape blend + pose blend + betas-only shape blend on one lane tile of
        the flattened (B, V*3) array.

        sc: (B, L) f32   pf: (B, 486) bf16   sdt: (L, TN) bf16
        pd: (486, TN) bf16   vt: (1, TN) f32   outputs: (B, TN) f32
        """
        vt = vt_ref[...]
        sc = sc_ref[...]
        sdt = sdt_ref[...]                                   # bf16, promoted in dot
        vs = vt + jnp.dot(sc, sdt, preferred_element_type=jnp.float32)
        vs_ref[...] = vs
        vp_ref[...] = vs + jnp.dot(pf_ref[...], pd_ref[...],
                                   preferred_element_type=jnp.float32)
        # betas-only shape blend reuses the sdt tile already in VMEM (free).
        vsb_ref[...] = vt + jnp.dot(sc[:, :num_betas], sdt[:num_betas, :],
                                    preferred_element_type=jnp.float32)
    return _blend_kernel


def blend_pose_call(shape_comp, pose_feature, sdt, posedirs, vt_flat,
                    num_betas, tn, vmem_limit):
    B, L = shape_comp.shape
    P = pose_feature.shape[1]
    V3 = sdt.shape[1]
    grid = (_cdiv(V3, tn),)                # cdiv grid: ragged last block handled
    out_shape = tuple(jax.ShapeDtypeStruct((B, V3), jnp.float32)
                      for _ in range(3))
    return pl.pallas_call(
        _make_blend_kernel(num_betas),
        out_shape=out_shape,
        grid_spec=pltpu.PrefetchScalarGridSpec(
            num_scalar_prefetch=0, grid=grid,
            in_specs=[
                pl.BlockSpec((B, L), lambda j: (0, 0)),
                pl.BlockSpec((B, P), lambda j: (0, 0)),
                pl.BlockSpec((L, tn), lambda j: (0, j)),
                pl.BlockSpec((P, tn), lambda j: (0, j)),
                pl.BlockSpec((1, tn), lambda j: (0, j)),
            ],
            out_specs=tuple(pl.BlockSpec((B, tn), lambda j: (0, j))
                            for _ in range(3))),
        compiler_params=pltpu.CompilerParams(
            dimension_semantics=("parallel",),
            vmem_limit_bytes=vmem_limit),
    )(shape_comp, pose_feature, sdt, posedirs, vt_flat)


def _skin_kernel(wt_ref, a_ref, vp_ref, out_ref):
    """Lane-dense LBS skinning.

    wt: (Jn, TV) bf16   a: (B*16, Jn) f32 (rows ordered b*16 + j*4 + k)
    vp: (B, 3, TV) f32  out: (B, 3, TV) f32

    One batched MXU matmul produces T = a @ wt (B*16, TV); the affine combine
    runs as (3, TV) slab multiplies/adds (3 mul + 3 add per batch).
    """
    T = jnp.dot(a_ref[...], wt_ref[...],
                preferred_element_type=jnp.float32)          # (B*16, TV)
    B = vp_ref.shape[0]
    for b in range(B):
        base = 16 * b
        vp = vp_ref[b]                                       # (3, TV)
        acc = T[base + 12: base + 15, :]                     # translation (j=3)
        for j in range(3):
            acc = acc + T[base + 4 * j: base + 4 * j + 3, :] * vp[j:j + 1, :]
        out_ref[b] = acc                                     # single (3, TV) store


def skin_call(lbs_weights_t, a_rows, vp_ld, tv, vmem_limit):
    Jn, V = lbs_weights_t.shape
    B16 = a_rows.shape[0]
    B = vp_ld.shape[0]
    grid = (_cdiv(V, tv),)
    return pl.pallas_call(
        _skin_kernel,
        out_shape=jax.ShapeDtypeStruct((B, 3, V), jnp.float32),
        grid_spec=pltpu.PrefetchScalarGridSpec(
            num_scalar_prefetch=0, grid=grid,
            in_specs=[pl.BlockSpec((Jn, tv), lambda i: (0, i)),
                      pl.BlockSpec((B16, Jn), lambda i: (0, 0)),
                      pl.BlockSpec((B, 3, tv), lambda i: (0, 0, i))],
            out_specs=pl.BlockSpec((B, 3, tv), lambda i: (0, 0, i))),
        compiler_params=pltpu.CompilerParams(
            dimension_semantics=("parallel",),
            vmem_limit_bytes=vmem_limit),
    )(lbs_weights_t, a_rows, vp_ld)


# ------------------------------- JAX glue ------------------------------------


def batch_rodrigues(rot_vecs, eps=1e-8):
    angle = jnp.linalg.norm(rot_vecs + eps, axis=1, keepdims=True)   # (N,1)
    rot_dir = rot_vecs / angle
    cos = jnp.cos(angle)[..., None]                                  # (N,1,1)
    sin = jnp.sin(angle)[..., None]
    rx, ry, rz = rot_dir[:, 0], rot_dir[:, 1], rot_dir[:, 2]
    zeros = jnp.zeros_like(rx)
    K = jnp.stack([zeros, -rz, ry, rz, zeros, -rx, -ry, rx, zeros],
                  axis=1).reshape(-1, 3, 3)
    ident = jnp.eye(3, dtype=jnp.float32)[None]
    return ident + sin * K + (1.0 - cos) * jnp.matmul(K, K)


def batch_rigid_transform(rot_mats, joints, parents):
    # rot_mats (B,J,3,3), joints (B,J,3)
    B, J = joints.shape[:2]
    rel_joints = joints.at[:, 1:].add(-joints[:, np.asarray(parents[1:])])
    top = jnp.concatenate([rot_mats, rel_joints[..., None]], axis=-1)       # (B,J,3,4)
    bottom = jnp.broadcast_to(jnp.array([0., 0., 0., 1.], jnp.float32),
                              (B, J, 1, 4))
    transforms_mat = jnp.concatenate([top, bottom], axis=-2)                # (B,J,4,4)
    chain = [transforms_mat[:, 0]]
    for i in range(1, J):
        chain.append(jnp.matmul(chain[int(parents[i])], transforms_mat[:, i]))
    transforms = jnp.stack(chain, axis=1)
    posed_joints = transforms[:, :, :3, 3]
    jh = jnp.concatenate([joints[..., None],
                          jnp.zeros((B, J, 1, 1), jnp.float32)], axis=-2)   # (B,J,4,1)
    tj = jnp.matmul(transforms, jh)                                         # (B,J,4,1)
    rel = transforms - jnp.concatenate(
        [jnp.zeros((B, J, 4, 3), jnp.float32), tj], axis=-1)
    return posed_joints, rel


def smplx_forward(params, betas, global_orient, body_pose, left_hand_pose,
                  right_hand_pose, transl, expression, jaw_pose, leye_pose,
                  reye_pose, return_verts=True, return_full_pose=False):
    B = betas.shape[0]
    num_betas = betas.shape[1]
    V = params['vt_flat'].shape[1] // 3
    V3 = V * 3

    vmem_limit, blend_cap, skin_cap = _budgets()
    tn = _pick_tile(V3, blend_cap)
    tv = _pick_tile(V, skin_cap)

    # hand PCA projection (tiny matmuls, glue)
    lh = left_hand_pose @ params['left_hand_components']    # (B,45)
    rh = right_hand_pose @ params['right_hand_components']  # (B,45)

    full_pose = jnp.concatenate([
        global_orient.reshape(B, 1, 3),
        body_pose.reshape(B, NUM_BODY_JOINTS, 3),
        jaw_pose.reshape(B, 1, 3),
        leye_pose.reshape(B, 1, 3),
        reye_pose.reshape(B, 1, 3),
        lh.reshape(B, 15, 3),
        rh.reshape(B, 15, 3)], axis=1).reshape(B, POSE_DIM)
    full_pose = full_pose + params['pose_mean']

    shape_comp = jnp.concatenate([betas, expression], axis=-1)   # (B, 20)

    # axis-angle -> rotation matrices (glue)
    rot_mats = batch_rodrigues(full_pose.reshape(-1, 3)).reshape(
        B, NUM_TOTAL_JOINTS, 3, 3)
    pose_feature = (rot_mats[:, 1:] - jnp.eye(3, dtype=jnp.float32)
                    ).reshape(B, POSE_FEAT_DIM)
    # bf16 to match the bf16 posedirs stream (f32 accumulation in-kernel).
    pf = pose_feature.astype(jnp.bfloat16)                   # (B, 486), no K pad

    # --- Pallas: shape blend + pose blend + betas-only shape blend (fused) ---
    v_shaped_flat, v_posed_flat, v_shaped_betas_flat = blend_pose_call(
        shape_comp, pf, params['sdt_full'], params['posedirs'],
        params['vt_flat'], num_betas=num_betas, tn=tn, vmem_limit=vmem_limit)
    v_shaped = v_shaped_flat.reshape(B, V, 3)
    v_posed = v_posed_flat.reshape(B, V, 3)
    v_shaped_out = v_shaped_betas_flat.reshape(B, V, 3)

    # joint regression: tiny (55,V)@(V,3) per batch -> plain JAX.
    J = jnp.einsum('jv,bvc->bjc', params['J_regressor'], v_shaped)   # (B,55,3)

    # kinematic chain (sequential, glue)
    J_transformed, A = batch_rigid_transform(rot_mats, J, params['parents'])

    # --- Pallas: linear blend skinning (lane-dense in vertex dim) ---
    # Rows ordered (b, column j, row k) so the kernel's per-j groups are
    # contiguous (3, TV) slabs: a_rows[b*16 + j*4 + k, joint] = A[b, joint, k, j]
    a_rows = A.transpose(0, 3, 2, 1).reshape(B * 16, NUM_TOTAL_JOINTS)
    vp_ld = v_posed.transpose(0, 2, 1)                               # (B,3,V)
    vertices_ld = skin_call(params['lbs_weights_t'], a_rows, vp_ld,
                            tv=tv, vmem_limit=vmem_limit)            # (B,3,V)
    vertices = vertices_ld.transpose(0, 2, 1)                        # (B,V,3)

    joints = J_transformed

    # landmarks (barycentric gather, glue)
    lmk_faces = params['faces'][params['lmk_faces_idx']]          # (51,3)
    lmk_vertices = vertices[:, lmk_faces]                         # (B,51,3,3)
    landmarks = jnp.einsum('blfi,lf->bli', lmk_vertices,
                           params['lmk_bary_coords'])

    # vertex joint selector (gather, glue) -- the PyTorch module's forward:
    # extra_joints = vertices[:, extra_joints_idxs]; joints = cat([joints, extra])
    extra_joints = vertices[:, params['extra_joints_idxs']]       # (B,21,3)
    joints = jnp.concatenate([joints, extra_joints], axis=1)
    joints = jnp.concatenate([joints, landmarks], axis=1)         # (B,127,3)

    # translation
    joints = joints + transl[:, None]
    vertices = vertices + transl[:, None]

    # TODO(synk): returned v_shaped uses betas only (no expression), matching
    # the previous version's semantics; joint regression uses the full blend.
    return {
        'vertices': vertices if return_verts else None,
        'joints': joints,
        'betas': betas,
        'expression': expression,
        'global_orient': global_orient,
        'transl': transl,
        'body_pose': body_pose,
        'left_hand_pose': lh,
        'right_hand_pose': rh,
        'jaw_pose': jaw_pose,
        'v_shaped': v_shaped_out,
        'full_pose': full_pose if return_full_pose else None,
    }


# ---------------------- deterministic synthetic model -------------------------


def make_params(V=1024, num_betas=10, num_expr=10, num_pca=6, n_faces=2048,
                n_lmk=51):
    key = jax.random.PRNGKey(0)
    ks = jax.random.split(key, 16)
    Jn = NUM_TOTAL_JOINTS
    V3 = V * 3

    v_template = jax.random.normal(ks[0], (V, 3), jnp.float32) * 0.5
    shapedirs = jax.random.normal(ks[1], (V, 3, num_betas), jnp.float32) * 0.01
    expr_dirs = jax.random.normal(ks[2], (V, 3, num_expr), jnp.float32) * 0.01
    posedirs_raw = jax.random.normal(ks[3], (V, 3, POSE_FEAT_DIM),
                                     jnp.float32) * 0.01
    # (486, V*3) stored bf16 (dominant HBM stream); no K padding.
    posedirs_bf16 = posedirs_raw.reshape(V3, POSE_FEAT_DIM).T.astype(jnp.bfloat16)

    J_regressor = jax.nn.softmax(jax.random.normal(ks[4], (Jn, V), jnp.float32),
                                 axis=-1)
    lbs_weights = jax.nn.softmax(
        jax.random.normal(ks[5], (V, Jn), jnp.float32) * 2.0, axis=-1)

    parents = np.concatenate([[-1], (np.arange(1, Jn) - 1) // 2]).astype(np.int64)

    left_hand_components = jax.random.normal(ks[6], (num_pca, 45),
                                             jnp.float32) * 0.1
    right_hand_components = jax.random.normal(ks[7], (num_pca, 45),
                                              jnp.float32) * 0.1
    left_hand_mean = jax.random.normal(ks[8], (45,), jnp.float32) * 0.05
    right_hand_mean = jax.random.normal(ks[9], (45,), jnp.float32) * 0.05
    pose_mean = jnp.concatenate(
        [jnp.zeros(3 + NUM_BODY_JOINTS * 3 + 9, jnp.float32),
         left_hand_mean, right_hand_mean])                     # (165,)

    faces = jax.random.randint(ks[10], (n_faces, 3), 0, V)
    lmk_faces_idx = jax.random.randint(ks[11], (n_lmk,), 0, n_faces)
    bary = jax.random.uniform(ks[12], (n_lmk, 3), jnp.float32) + 1e-3
    lmk_bary_coords = bary / bary.sum(-1, keepdims=True)

    # TODO(synk): real SMPL-X has 10475 vertices; synthetic mesh uses V=1024,
    # so the canonical keypoint vertex ids are taken modulo V.
    vid = VERTEX_IDS_SMPLX
    face_idx = [vid['nose'], vid['reye'], vid['leye'], vid['rear'], vid['lear']]
    feet_idx = [vid['LBigToe'], vid['LSmallToe'], vid['LHeel'],
                vid['RBigToe'], vid['RSmallToe'], vid['RHeel']]
    tips_idx = [vid[h + t] for h in ['l', 'r']
                for t in ['thumb', 'index', 'middle', 'ring', 'pinky']]
    extra_joints_idxs = (np.array(face_idx + feet_idx + tips_idx,
                                  dtype=np.int64) % V)

    sdt_full = jnp.concatenate([shapedirs, expr_dirs], axis=-1).reshape(
        V3, num_betas + num_expr).T.astype(jnp.bfloat16)     # (20, V*3), bf16

    vt_flat = v_template.reshape(1, V3)

    return {
        'vt_flat': vt_flat,
        'sdt_full': sdt_full,
        'posedirs': posedirs_bf16,
        'J_regressor': J_regressor,
        'lbs_weights_t': lbs_weights.T.astype(jnp.bfloat16),  # (55, V) bf16
        'parents': parents,
        'left_hand_components': left_hand_components,
        'right_hand_components': right_hand_components,
        'pose_mean': pose_mean,
        'faces': faces,
        'lmk_faces_idx': lmk_faces_idx,
        'lmk_bary_coords': lmk_bary_coords,
        'extra_joints_idxs': extra_joints_idxs,
    }


if __name__ == "__main__":
    B = 2
    num_betas, num_expr, num_pca = 10, 10, 6
    params = make_params(V=1024, num_betas=num_betas, num_expr=num_expr,
                         num_pca=num_pca)

    ik = jax.random.split(jax.random.PRNGKey(0), 12)
    betas = jax.random.normal(ik[0], (B, num_betas), jnp.float32) * 0.5
    global_orient = jax.random.normal(ik[1], (B, 3), jnp.float32) * 0.1
    body_pose = jax.random.normal(ik[2], (B, NUM_BODY_JOINTS * 3),
                                  jnp.float32) * 0.1
    left_hand_pose = jax.random.normal(ik[3], (B, num_pca), jnp.float32) * 0.1
    right_hand_pose = jax.random.normal(ik[4], (B, num_pca), jnp.float32) * 0.1
    transl = jax.random.normal(ik[5], (B, 3), jnp.float32) * 0.1
    expression = jax.random.normal(ik[6], (B, num_expr), jnp.float32) * 0.5
    jaw_pose = jax.random.normal(ik[7], (B, 3), jnp.float32) * 0.1
    leye_pose = jax.random.normal(ik[8], (B, 3), jnp.float32) * 0.1
    reye_pose = jax.random.normal(ik[9], (B, 3), jnp.float32) * 0.1

    out = smplx_forward(params, betas, global_orient, body_pose,
                        left_hand_pose, right_hand_pose, transl, expression,
                        jaw_pose, leye_pose, reye_pose)

    jax.block_until_ready(out['vertices'])
    jax.block_until_ready(out['joints'])
    jax.block_until_ready(out['v_shaped'])

    assert out['vertices'].shape == (B, 1024, 3)
    assert out['joints'].shape == (B, 55 + 21 + 51, 3)
    assert out['v_shaped'].shape == (B, 1024, 3)
    assert bool(jnp.all(jnp.isfinite(out['vertices'])))
    assert bool(jnp.all(jnp.isfinite(out['joints'])))
    assert bool(jnp.all(jnp.isfinite(out['v_shaped'])))

    print("KERNEL_OK")
</pallas_src>

<mosaic_0001>
module attributes {stable_mosaic.version = 11 : i64} {
  func.func @_blend_kernel(%arg0: i32, %arg1: memref<2x20xf32, #tpu.memory_space<vmem>>, %arg2: memref<2x486xbf16, #tpu.memory_space<vmem>>, %arg3: memref<20x3072xbf16, #tpu.memory_space<vmem>>, %arg4: memref<486x3072xbf16, #tpu.memory_space<vmem>>, %arg5: memref<1x3072xf32, #tpu.memory_space<vmem>>, %arg6: memref<2x3072xf32, #tpu.memory_space<vmem>>, %arg7: memref<2x3072xf32, #tpu.memory_space<vmem>>, %arg8: memref<2x3072xf32, #tpu.memory_space<vmem>>) attributes {dimension_semantics = [#tpu.dimension_semantics<parallel>], iteration_bounds = array<i64: 1>, scalar_prefetch = 0 : i64, scratch_operands = 0 : i64, tpu.core_type = #tpu.core_type<tc>, window_params = [{pipeline_mode = #tpu.pipeline_mode<synchronous>, transform_indices = @transform_0, window_bounds = array<i64: 2, 20>}, {pipeline_mode = #tpu.pipeline_mode<synchronous>, transform_indices = @transform_1, window_bounds = array<i64: 2, 486>}, {transform_indices = @transform_2, window_bounds = array<i64: 20, 3072>}, {transform_indices = @transform_3, window_bounds = array<i64: 486, 3072>}, {transform_indices = @transform_4, window_bounds = array<i64: 1, 3072>}, {transform_indices = @transform_5, window_bounds = array<i64: 2, 3072>}, {transform_indices = @transform_6, window_bounds = array<i64: 2, 3072>}, {transform_indices = @transform_7, window_bounds = array<i64: 2, 3072>}]} {
    %c0 = arith.constant 0 : index
    %c0_0 = arith.constant 0 : index
    %0 = vector.load %arg5[%c0, %c0_0] : memref<1x3072xf32, #tpu.memory_space<vmem>>, vector<1x3072xf32>
    %c0_1 = arith.constant 0 : index
    %c0_2 = arith.constant 0 : index
    %1 = vector.load %arg1[%c0_1, %c0_2] : memref<2x20xf32, #tpu.memory_space<vmem>>, vector<2x20xf32>
    %c0_3 = arith.constant 0 : index
    %c0_4 = arith.constant 0 : index
    %2 = vector.load %arg3[%c0_3, %c0_4] : memref<20x3072xbf16, #tpu.memory_space<vmem>>, vector<20x3072xbf16>
    %cst = arith.constant dense<0.000000e+00> : vector<2x3072xf32>
    %3 = tpu.matmul %1, %2, %cst {dimension_numbers = #tpu.dot_dimension_numbers<[1], [0], [0], [1], [0, 0, 1, 1], [], []>} : vector<2x20xf32>, vector<20x3072xbf16>, vector<2x3072xf32> -> vector<2x3072xf32>
    %4 = vector.broadcast %0 : vector<1x3072xf32> to vector<2x3072xf32>
    %5 = arith.addf %4, %3 : vector<2x3072xf32>
    %c0_5 = arith.constant 0 : index
    %c0_6 = arith.constant 0 : index
    %6 = vector.load %arg6[%c0_5, %c0_6] : memref<2x3072xf32, #tpu.memory_space<vmem>>, vector<2x3072xf32>
    tpu.vector_store %arg6[%c0_5, %c0_6], %5 {strides = array<i32>} : memref<2x3072xf32, #tpu.memory_space<vmem>>, vector<2x3072xf32>,
    %c0_7 = arith.constant 0 : index
    %c0_8 = arith.constant 0 : index
    %7 = vector.load %arg2[%c0_7, %c0_8] : memref<2x486xbf16, #tpu.memory_space<vmem>>, vector<2x486xbf16>
    %c0_9 = arith.constant 0 : index
    %c0_10 = arith.constant 0 : index
    %8 = vector.load %arg4[%c0_9, %c0_10] : memref<486x3072xbf16, #tpu.memory_space<vmem>>, vector<486x3072xbf16>
    %cst_11 = arith.constant dense<0.000000e+00> : vector<2x3072xf32>
    %9 = tpu.matmul %7, %8, %cst_11 {dimension_numbers = #tpu.dot_dimension_numbers<[1], [0], [0], [1], [0, 0, 1, 1], [], []>} : vector<2x486xbf16>, vector<486x3072xbf16>, vector<2x3072xf32> -> vector<2x3072xf32>
    %10 = arith.addf %5, %9 : vector<2x3072xf32>
    %c0_12 = arith.constant 0 : index
    %c0_13 = arith.constant 0 : index
    %11 = vector.load %arg7[%c0_12, %c0_13] : memref<2x3072xf32, #tpu.memory_space<vmem>>, vector<2x3072xf32>
    tpu.vector_store %arg7[%c0_12, %c0_13], %10 {strides = array<i32>} : memref<2x3072xf32, #tpu.memory_space<vmem>>, vector<2x3072xf32>,
    %12 = vector.extract_strided_slice %1 {offsets = [0, 0], sizes = [2, 10], strides = [1, 1]} : vector<2x20xf32> to vector<2x10xf32>
    %13 = vector.extract_strided_slice %2 {offsets = [0, 0], sizes = [10, 3072], strides = [1, 1]} : vector<20x3072xbf16> to vector<10x3072xbf16>
    %cst_14 = arith.constant dense<0.000000e+00> : vector<2x3072xf32>
    %14 = tpu.matmul %12, %13, %cst_14 {dimension_numbers = #tpu.dot_dimension_numbers<[1], [0], [0], [1], [0, 0, 1, 1], [], []>} : vector<2x10xf32>, vector<10x3072xbf16>, vector<2x3072xf32> -> vector<2x3072xf32>
    %15 = vector.broadcast %0 : vector<1x3072xf32> to vector<2x3072xf32>
    %16 = arith.addf %15, %14 : vector<2x3072xf32>
    %c0_15 = arith.constant 0 : index
    %c0_16 = arith.constant 0 : index
    %17 = vector.load %arg8[%c0_15, %c0_16] : memref<2x3072xf32, #tpu.memory_space<vmem>>, vector<2x3072xf32>
    tpu.vector_store %arg8[%c0_15, %c0_16], %16 {strides = array<i32>} : memref<2x3072xf32, #tpu.memory_space<vmem>>, vector<2x3072xf32>,
    return
  }
  func.func @transform_0(%arg0: i32) -> (i32, i32) {
    %c0_i32 = arith.constant 0 : i32
    %c0_i32_0 = arith.constant 0 : i32
    %c0_i32_1 = arith.constant 0 : i32
    return %c0_i32, %c0_i32_0 : i32, i32
  }
  func.func @transform_1(%arg0: i32) -> (i32, i32) {
    %c0_i32 = arith.constant 0 : i32
    %c0_i32_0 = arith.constant 0 : i32
    %c0_i32_1 = arith.constant 0 : i32
    return %c0_i32, %c0_i32_0 : i32, i32
  }
  func.func @transform_2(%arg0: i32) -> (i32, i32) {
    %c0_i32 = arith.constant 0 : i32
    %c0_i32_0 = arith.constant 0 : i32
    return %c0_i32, %arg0 : i32, i32
  }
  func.func @transform_3(%arg0: i32) -> (i32, i32) {
    %c0_i32 = arith.constant 0 : i32
    %c0_i32_0 = arith.constant 0 : i32
    return %c0_i32, %arg0 : i32, i32
  }
  func.func @transform_4(%arg0: i32) -> (i32, i32) {
    %c0_i32 = arith.constant 0 : i32
    %c0_i32_0 = arith.constant 0 : i32
    return %c0_i32, %arg0 : i32, i32
  }
  func.func @transform_5(%arg0: i32) -> (i32, i32) {
    %c0_i32 = arith.constant 0 : i32
    %c0_i32_0 = arith.constant 0 : i32
    return %c0_i32, %arg0 : i32, i32
  }
  func.func @transform_6(%arg0: i32) -> (i32, i32) {
    %c0_i32 = arith.constant 0 : i32
    %c0_i32_0 = arith.constant 0 : i32
    return %c0_i32, %arg0 : i32, i32
  }
  func.func @transform_7(%arg0: i32) -> (i32, i32) {
    %c0_i32 = arith.constant 0 : i32
    %c0_i32_0 = arith.constant 0 : i32
    return %c0_i32, %arg0 : i32, i32
  }
}

</mosaic_0001>

<llo_original>
// kernel: tpu_custom_call.1
$region0: #{tpu_custom_call.1}
  #allocation0 [shape = 'u32[]', space=smem, size = 0x4, offset = 0x4, fixed_abs, tag = 'smem constant byte address 0x4 - core index']
  #allocation1 [shape = 'u32[144,128]{1,0:T(1,128)}', space=vmem, size = 0x12000, scoped, tag = 'internal scratch']
  %s0 = inlined_call_operand.hbm [shape: f32[2,20], index: 0, kind: input, shape index: {}]
  %s1 = inlined_call_operand.hbm [shape: bf16[2,486], index: 1, kind: input, shape index: {}]
  %s2 = inlined_call_operand.hbm [shape: bf16[20,3072], index: 2, kind: input, shape index: {}]
  %s3 = inlined_call_operand.hbm [shape: bf16[486,3072], index: 3, kind: input, shape index: {}]
  %s4 = inlined_call_operand.hbm [shape: f32[1,3072], index: 4, kind: input, shape index: {}]
  %s5 = inlined_call_operand.hbm [shape: f32[2,3072], index: 5, kind: output, shape index: {0}]
  %s6 = inlined_call_operand.hbm [shape: f32[2,3072], index: 6, kind: output, shape index: {1}]
  %s7 = inlined_call_operand.hbm [shape: f32[2,3072], index: 7, kind: output, shape index: {2}]
  %8 = xla_tuple %s5, %s6, %s7
  %s9 = sld [smem:[#allocation0]]
  $region66: #{tpu_custom_call.1} parent=0
    _
  %s11 = ssub.s32 1, %s9
  %s12 = scalar_select 0, %s11, %s9
  $region1: #{tpu_custom_call.1} parent=0
    #allocation2 [shape = 'u8[1024]{0}', space=vmem, size = 0x400, scoped, tag = 'input window, operand 0, single buffered']
    #allocation3 [shape = 's32[1]{0}', space=sflag, size = 0x4, scoped, tag = 'scoped memory for tpu_custom_call.1']
    #allocation4 [shape = 's32[1]{0}', space=sflag, size = 0x4, scoped, tag = 'scoped memory for tpu_custom_call.1']
    #allocation5 [shape = 'u8[2048]{0}', space=vmem, size = 0x800, scoped, tag = 'input window, operand 1, single buffered']
    #allocation6 [shape = 's32[1]{0}', space=sflag, size = 0x4, scoped, tag = 'scoped memory for tpu_custom_call.1']
    #allocation7 [shape = 'u8[147456]{0}', space=vmem, size = 0x24000, scoped, tag = 'input window, operand 2, single buffered']
    #allocation8 [shape = 'u8[2998272]{0}', space=vmem, size = 0x2dc000, scoped, tag = 'input window, operand 3, single buffered']
    #allocation9 [shape = 's32[1]{0}', space=sflag, size = 0x4, scoped, tag = 'scoped memory for tpu_custom_call.1']
    #allocation10 [shape = 'u8[12288]{0}', space=vmem, size = 0x3000, scoped, tag = 'input window, operand 4, single buffered']
    #allocation11 [shape = 'u8[24576]{0}', space=vmem, size = 0x6000, scoped, tag = 'output window, operand 0, single buffered']
    #allocation12 [shape = 'u8[24576]{0}', space=vmem, size = 0x6000, scoped, tag = 'output window, operand 1, single buffered']
    #allocation13 [shape = 's32[1]{0}', space=sflag, size = 0x4, scoped, tag = 'scoped memory for tpu_custom_call.1']
    #allocation14 [shape = 'u8[24576]{0}', space=vmem, size = 0x6000, scoped, tag = 'output window, operand 2, single buffered']
    %13 = vsyncpa [#allocation3], 0
    %14 = vsyncpa [#allocation6], 0
    %15 = vsyncpa [#allocation9], 0
    %16 = vsyncpa [#allocation4], 0
    %17 = vsyncpa [#allocation13], 0
    // Predicated region
    $region2: #{tpu_custom_call.1} parent=1 // pred_check
      _
    $region3: #{tpu_custom_call.1} parent=1 // pred_check_branch
      %19 = sbr.rel (0) target = $region5
    $region4: #{tpu_custom_call.1} parent=1 // pred_region
      %s21 = ssub.s32 32, 32
      %22 = vsyncadd [#allocation3], %s21
      %s24 = sshll.u32 [#allocation2], 4
      %s25 = int_to_ptr.vmem [resolvable:$true] %s24
      %27 = dma.hbm_to_vmem [thread:$0]  %s0, 32, %s25, [#allocation3]
    $region5: #{tpu_custom_call.1} parent=1 // pred_fallthru
      _
    // Predicated region
    $region6: #{tpu_custom_call.1} parent=1 // pred_check
      _
    $region7: #{tpu_custom_call.1} parent=1 // pred_check_branch
      %29 = sbr.rel (0) target = $region9
    $region8: #{tpu_custom_call.1} parent=1 // pred_region
      %s31 = ssub.s32 64, 64
      %32 = vsyncadd [#allocation6], %s31
      %s34 = sshll.u32 [#allocation5], 4
      %s35 = int_to_ptr.vmem [resolvable:$true] %s34
      %37 = dma.hbm_to_vmem [thread:$0]  %s1, 64, %s35, [#allocation6]
    $region9: #{tpu_custom_call.1} parent=1 // pred_fallthru
      _
    // Predicated region
    $region10: #{tpu_custom_call.1} parent=1 // pred_check
      _
    $region11: #{tpu_custom_call.1} parent=1 // pred_check_branch
      %39 = sbr.rel (0) target = $region13
    $region12: #{tpu_custom_call.1} parent=1 // pred_region
      %s41 = ssub.s32 4608, 4608
      %42 = vsyncadd [#allocation6], %s41
      %s43 = sshll.u32 [#allocation7], 4
      %s44 = int_to_ptr.vmem [resolvable:$true] %s43
      %49 = dma.hbm_to_vmem [thread:$0]  %s2, 4608, %s44, [#allocation6], 1536, 1536, 96
    $region13: #{tpu_custom_call.1} parent=1 // pred_fallthru
      _
    // Predicated region
    $region14: #{tpu_custom_call.1} parent=1 // pred_check
      _
    $region15: #{tpu_custom_call.1} parent=1 // pred_check_branch
      %51 = sbr.rel (0) target = $region17
    $region16: #{tpu_custom_call.1} parent=1 // pred_region
      %s53 = ssub.s32 93696, 93696
      %54 = vsyncadd [#allocation9], %s53
      %s55 = sshll.u32 [#allocation8], 4
      %s56 = int_to_ptr.vmem [resolvable:$true] %s55
      %61 = dma.hbm_to_vmem [thread:$0]  %s3, 93696, %s56, [#allocation9], 1536, 1536, 96
    $region17: #{tpu_custom_call.1} parent=1 // pred_fallthru
      _
    // Predicated region
    $region18: #{tpu_custom_call.1} parent=1 // pred_check
      _
    $region19: #{tpu_custom_call.1} parent=1 // pred_check_branch
      %63 = sbr.rel (0) target = $region21
    $region20: #{tpu_custom_call.1} parent=1 // pred_region
      %s65 = ssub.s32 384, 384
      %66 = vsyncadd [#allocation9], %s65
      %s68 = sshll.u32 [#allocation10], 4
      %s69 = int_to_ptr.vmem [resolvable:$true] %s68
      %71 = dma.hbm_to_vmem [thread:$0]  %s4, 384, %s69, [#allocation9]
    $region21: #{tpu_custom_call.1} parent=1 // pred_fallthru
      _
    // Predicated region
    $region22: #{tpu_custom_call.1} parent=1 // pred_check
      _
    $region23: #{tpu_custom_call.1} parent=1 // pred_check_branch
      %73 = sbr.rel (0) target = $region25
    $region24: #{tpu_custom_call.1} parent=1 // pred_region
      %74 = dma.done [#allocation3], 32
    $region25: #{tpu_custom_call.1} parent=1 // pred_fallthru
      _
    // Predicated region
    $region26: #{tpu_custom_call.1} parent=1 // pred_check
      _
    $region27: #{tpu_custom_call.1} parent=1 // pred_check_branch
      %76 = sbr.rel (0) target = $region29
    $region28: #{tpu_custom_call.1} parent=1 // pred_region
      %77 = dma.done [#allocation6], 64
    $region29: #{tpu_custom_call.1} parent=1 // pred_fallthru
      _
    // Predicated region
    $region30: #{tpu_custom_call.1} parent=1 // pred_check
      _
    $region31: #{tpu_custom_call.1} parent=1 // pred_check_branch
      %79 = sbr.rel (0) target = $region33
    $region32: #{tpu_custom_call.1} parent=1 // pred_region
      %80 = dma.done [#allocation6], 4608
    $region33: #{tpu_custom_call.1} parent=1 // pred_fallthru
      _
    // Predicated region
    $region34: #{tpu_custom_call.1} parent=1 // pred_check
      _
    $region35: #{tpu_custom_call.1} parent=1 // pred_check_branch
      %82 = sbr.rel (0) target = $region37
    $region36: #{tpu_custom_call.1} parent=1 // pred_region
      %83 = dma.done [#allocation9], 93696
    $region37: #{tpu_custom_call.1} parent=1 // pred_fallthru
      _
    // Predicated region
    $region38: #{tpu_custom_call.1} parent=1 // pred_check
      _
    $region39: #{tpu_custom_call.1} parent=1 // pred_check_branch
      %85 = sbr.rel (0) target = $region41
    $region40: #{tpu_custom_call.1} parent=1 // pred_region
      %86 = dma.done [#allocation9], 384
    $region41: #{tpu_custom_call.1} parent=1 // pred_fallthru
      _
    %v88 = vld [vmem:[#allocation10] sm:$0xff]
    %v89 = vld [vmem:[#allocation10 + $0x8] sm:$0xff]
    %v90 = vld [vmem:[#allocation10 + $0x10] sm:$0xff]
    %v91 = vld [vmem:[#allocation2] sm:$0x3]
    %v92 = vld [vmem:[#allocation7] sm:$0xff]
    %v93 = vld [vmem:[#allocation7 + $0x8] sm:$0xff]
    %v94 = vld [vmem:[#allocation7 + $0x10] sm:$0xff]
    %v95 = vld [vmem:[#allocation7 + $0x18] sm:$0xff]
    %v96 = vld [vmem:[#allocation7 + $0x20] sm:$0xff]
    %v97 = vld [vmem:[#allocation7 + $0x28] sm:$0xff]
    %v98 = vld [vmem:[#allocation7 + $0x30] sm:$0xff]
    %v99 = vld [vmem:[#allocation7 + $0x38] sm:$0xff]
    %v100 = vld [vmem:[#allocation7 + $0x40] sm:$0xff]
    %v101 = vld [vmem:[#allocation7 + $0x48] sm:$0xff]
    %v102 = vld [vmem:[#allocation7 + $0x50] sm:$0xff]
    %v103 = vld [vmem:[#allocation7 + $0x58] sm:$0xff]
    %v104 = vld [vmem:[#allocation7 + $0x60] sm:$0xff]
    %v105 = vld [vmem:[#allocation7 + $0x68] sm:$0xff]
    %v106 = vld [vmem:[#allocation7 + $0x70] sm:$0xff]
    %v107 = vld [vmem:[#allocation7 + $0x78] sm:$0xff]
    %v108 = vld [vmem:[#allocation7 + $0x80] sm:$0xff]
    %v109 = vld [vmem:[#allocation7 + $0x88] sm:$0xff]
    %v110 = vld [vmem:[#allocation7 + $0x90] sm:$0xff]
    %v111 = vld [vmem:[#allocation7 + $0x98] sm:$0xff]
    %v112 = vld [vmem:[#allocation7 + $0xa0] sm:$0xff]
    %v113 = vld [vmem:[#allocation7 + $0xa8] sm:$0xff]
    %v114 = vld [vmem:[#allocation7 + $0xb0] sm:$0xff]
    %v115 = vld [vmem:[#allocation7 + $0xb8] sm:$0xff]
    %v116 = vld [vmem:[#allocation7 + $0xc0] sm:$0x33]
    %v117 = vld [vmem:[#allocation7 + $0xc8] sm:$0x33]
    %v118 = vld [vmem:[#allocation7 + $0xd0] sm:$0x33]
    %v119 = vld [vmem:[#allocation7 + $0xd8] sm:$0x33]
    %v120 = vld [vmem:[#allocation7 + $0xe0] sm:$0x33]
    %v121 = vld [vmem:[#allocation7 + $0xe8] sm:$0x33]
    %v122 = vld [vmem:[#allocation7 + $0xf0] sm:$0x33]
    %v123 = vld [vmem:[#allocation7 + $0xf8] sm:$0x33]
    %v124 = vld [vmem:[#allocation7 + $0x100] sm:$0x33]
    %v125 = vld [vmem:[#allocation7 + $0x108] sm:$0x33]
    %v126 = vld [vmem:[#allocation7 + $0x110] sm:$0x33]
    %v127 = vld [vmem:[#allocation7 + $0x118] sm:$0x33]
    %v164 = vunpack.c.l.b16 %v92
    %v165 = vunpack.c.h.b16 %v92
    %v166 = vunpack.c.l.b16 %v93
    %v167 = vunpack.c.h.b16 %v93
    %v168 = vunpack.c.l.b16 %v94
    %v169 = vunpack.c.h.b16 %v94
    %v170 = vunpack.c.l.b16 %v95
    %v171 = vunpack.c.h.b16 %v95
    %v172 = vunpack.c.l.b16 %v96
    %v173 = vunpack.c.h.b16 %v96
    %v174 = vunpack.c.l.b16 %v97
    %v175 = vunpack.c.h.b16 %v97
    %v176 = vunpack.c.l.b16 %v98
    %v177 = vunpack.c.h.b16 %v98
    %v178 = vunpack.c.l.b16 %v99
    %v179 = vunpack.c.h.b16 %v99
    %v180 = vunpack.c.l.b16 %v100
    %v181 = vunpack.c.h.b16 %v100
    %v182 = vunpack.c.l.b16 %v101
    %v183 = vunpack.c.h.b16 %v101
    %v184 = vunpack.c.l.b16 %v102
    %v185 = vunpack.c.h.b16 %v102
    %v186 = vunpack.c.l.b16 %v103
    %v187 = vunpack.c.h.b16 %v103
    %v188 = vunpack.c.l.b16 %v104
    %v189 = vunpack.c.h.b16 %v104
    %v190 = vunpack.c.l.b16 %v105
    %v191 = vunpack.c.h.b16 %v105
    %v192 = vunpack.c.l.b16 %v106
    %v193 = vunpack.c.h.b16 %v106
    %v194 = vunpack.c.l.b16 %v107
    %v195 = vunpack.c.h.b16 %v107
    %v196 = vunpack.c.l.b16 %v108
    %v197 = vunpack.c.h.b16 %v108
    %v198 = vunpack.c.l.b16 %v109
    %v199 = vunpack.c.h.b16 %v109
    %v200 = vunpack.c.l.b16 %v110
    %v201 = vunpack.c.h.b16 %v110
    %v202 = vunpack.c.l.b16 %v111
    %v203 = vunpack.c.h.b16 %v111
    %v204 = vunpack.c.l.b16 %v112
    %v205 = vunpack.c.h.b16 %v112
    %v206 = vunpack.c.l.b16 %v113
    %v207 = vunpack.c.h.b16 %v113
    %v208 = vunpack.c.l.b16 %v114
    %v209 = vunpack.c.h.b16 %v114
    %v210 = vunpack.c.l.b16 %v115
    %v211 = vunpack.c.h.b16 %v115
    %v212 = vunpack.c.l.b16 %v116
    %v213 = vunpack.c.h.b16 %v116
    %v214 = vunpack.c.l.b16 %v117
    %v215 = vunpack.c.h.b16 %v117
    %v216 = vunpack.c.l.b16 %v118
    %v217 = vunpack.c.h.b16 %v118
    %v218 = vunpack.c.l.b16 %v119
    %v219 = vunpack.c.h.b16 %v119
    %v220 = vunpack.c.l.b16 %v120
    %v221 = vunpack.c.h.b16 %v120
    %v222 = vunpack.c.l.b16 %v121
    %v223 = vunpack.c.h.b16 %v121
    %v224 = vunpack.c.l.b16 %v122
    %v225 = vunpack.c.h.b16 %v122
    %v226 = vunpack.c.l.b16 %v123
    %v227 = vunpack.c.h.b16 %v123
    %v228 = vunpack.c.l.b16 %v124
    %v229 = vunpack.c.h.b16 %v124
    %v230 = vunpack.c.l.b16 %v125
    %v231 = vunpack.c.h.b16 %v125
    %v232 = vunpack.c.l.b16 %v126
    %v233 = vunpack.c.h.b16 %v126
    %v234 = vunpack.c.l.b16 %v127
    %v235 = vunpack.c.h.b16 %v127
    %v236 = vpack.c.b16 %v188, %v164
    %v237 = vpack.c.b16 %v189, %v165
    %v238 = vpack.c.b16 %v190, %v166
    %v239 = vpack.c.b16 %v191, %v167
    %v240 = vpack.c.b16 %v192, %v168
    %v241 = vpack.c.b16 %v193, %v169
    %v242 = vpack.c.b16 %v194, %v170
    %v243 = vpack.c.b16 %v195, %v171
    %v244 = vpack.c.b16 %v196, %v172
    %v245 = vpack.c.b16 %v197, %v173
    %v246 = vpack.c.b16 %v198, %v174
    %v247 = vpack.c.b16 %v199, %v175
    %v248 = vpack.c.b16 %v200, %v176
    %v249 = vpack.c.b16 %v201, %v177
    %v250 = vpack.c.b16 %v202, %v178
    %v251 = vpack.c.b16 %v203, %v179
    %v252 = vpack.c.b16 %v204, %v180
    %v253 = vpack.c.b16 %v205, %v181
    %v254 = vpack.c.b16 %v206, %v182
    %v255 = vpack.c.b16 %v207, %v183
    %v256 = vpack.c.b16 %v208, %v184
    %v257 = vpack.c.b16 %v209, %v185
    %v258 = vpack.c.b16 %v210, %v186
    %v259 = vpack.c.b16 %v211, %v187
    %v260 = vpack.c.b16 %v212, %v212
    %v261 = vpack.c.b16 %v213, %v213
    %v262 = vpack.c.b16 %v214, %v214
    %v263 = vpack.c.b16 %v215, %v215
    %v264 = vpack.c.b16 %v216, %v216
    %v265 = vpack.c.b16 %v217, %v217
    %v266 = vpack.c.b16 %v218, %v218
    %v267 = vpack.c.b16 %v219, %v219
    %v268 = vpack.c.b16 %v220, %v220
    %v269 = vpack.c.b16 %v221, %v221
    %v270 = vpack.c.b16 %v222, %v222
    %v271 = vpack.c.b16 %v223, %v223
    %v272 = vpack.c.b16 %v224, %v224
    %v273 = vpack.c.b16 %v225, %v225
    %v274 = vpack.c.b16 %v226, %v226
    %v275 = vpack.c.b16 %v227, %v227
    %v276 = vpack.c.b16 %v228, %v228
    %v277 = vpack.c.b16 %v229, %v229
    %v278 = vpack.c.b16 %v230, %v230
    %v279 = vpack.c.b16 %v231, %v231
    %v280 = vpack.c.b16 %v232, %v232
    %v281 = vpack.c.b16 %v233, %v233
    %v282 = vpack.c.b16 %v234, %v234
    %v283 = vpack.c.b16 %v235, %v235
    %vm308 = vcmask 162816
    %v310 = vsel %vm308, %v91, 0
    %vm312 = vcmask 1041408
    %v314 = vsel %vm312, %v260, 0
    %v317 = vsel %vm312, %v261, 0
    %v320 = vsel %vm312, %v262, 0
    %v323 = vsel %vm312, %v263, 0
    %v326 = vsel %vm312, %v264, 0
    %v329 = vsel %vm312, %v265, 0
    %v332 = vsel %vm312, %v266, 0
    %v335 = vsel %vm312, %v267, 0
    %v338 = vsel %vm312, %v268, 0
    %v341 = vsel %vm312, %v269, 0
    %v344 = vsel %vm312, %v270, 0
    %v347 = vsel %vm312, %v271, 0
    %v350 = vsel %vm312, %v272, 0
    %v353 = vsel %vm312, %v273, 0
    %v356 = vsel %vm312, %v274, 0
    %v359 = vsel %vm312, %v275, 0
    %v362 = vsel %vm312, %v276, 0
    %v365 = vsel %vm312, %v277, 0
    %v368 = vsel %vm312, %v278, 0
    %v371 = vsel %vm312, %v279, 0
    %v374 = vsel %vm312, %v280, 0
    %v377 = vsel %vm312, %v281, 0
    %v380 = vsel %vm312, %v282, 0
    %v383 = vsel %vm312, %v283, 0
    %385 = vmatprep.subr.bf16.mxu0 %v237
    %386 = vmatpush1.bf16.msra.mxu0 %v236
    %387 = vmatprep.subr.bf16.mxu0 %v317
    %388 = vmatpush1.bf16.msra.mxu0 %v314
    %389 = vmatprep.subr.bf16.mxu0 0
    %390 = vmatpush1.bf16.msra.mxu0 0
    %391 = vmatprep.subr.bf16.mxu0 0
    %392 = vmatpush1.bf16.msra.mxu0 0
    %393 = vmatprep.subr.bf16.mxu0 0
    %394 = vmatpush1.bf16.msra.mxu0 0
    %395 = vmatprep.subr.bf16.mxu0 0
    %396 = vmatpush1.bf16.msra.mxu0 0
    %397 = vmatprep.subr.bf16.mxu0 0
    %398 = vmatpush1.bf16.msra.mxu0 0
    %399 = vmatprep.subr.bf16.mxu0 0
    %400 = vmatpush1.bf16.msra.mxu0 0
    %401 = vmatprep.subr.bf16.mxu0 0
    %402 = vmatpush1.bf16.msra.mxu0 0
    %403 = vmatprep.subr.bf16.mxu0 0
    %404 = vmatpush1.bf16.msra.mxu0 0
    %405 = vmatprep.subr.bf16.mxu0 0
    %406 = vmatpush1.bf16.msra.mxu0 0
    %407 = vmatprep.subr.bf16.mxu0 0
    %408 = vmatpush1.bf16.msra.mxu0 0
    %409 = vmatprep.subr.bf16.mxu0 0
    %410 = vmatpush1.bf16.msra.mxu0 0
    %411 = vmatprep.subr.bf16.mxu0 0
    %412 = vmatpush1.bf16.msra.mxu0 0
    %413 = vmatprep.subr.bf16.mxu0 0
    %414 = vmatpush1.bf16.msra.mxu0 0
    %415 = vmatprep.subr.bf16.mxu0 0
    %416 = vmatpush1.bf16.msra.mxu0 0
    %417 = vmatprep.mubr.f32.mxu0 0.0
    %418 = vmatmul.mubr.f32.gmra.mrb[0].mxu0 %v310
    %v419 = vpop.f32.mrb[0].mxu0
    %v420 = vadd.f32 0.0, %v419
    %v421 = vpop.f32.mrb[0].mxu0
    %v422 = vadd.f32 0.0, %v421
    %423 = vdwg.mxu0
    %424 = vmatprep.subr.bf16.mxu0 %v239
    %425 = vmatpush1.bf16.msra.mxu0 %v238
    %426 = vmatprep.subr.bf16.mxu0 %v323
    %427 = vmatpush1.bf16.msra.mxu0 %v320
    %428 = vmatprep.subr.bf16.mxu0 0
    %429 = vmatpush1.bf16.msra.mxu0 0
    %430 = vmatprep.subr.bf16.mxu0 0
    %431 = vmatpush1.bf16.msra.mxu0 0
    %432 = vmatprep.subr.bf16.mxu0 0
    %433 = vmatpush1.bf16.msra.mxu0 0
    %434 = vmatprep.subr.bf16.mxu0 0
    %435 = vmatpush1.bf16.msra.mxu0 0
    %436 = vmatprep.subr.bf16.mxu0 0
    %437 = vmatpush1.bf16.msra.mxu0 0
    %438 = vmatprep.subr.bf16.mxu0 0
    %439 = vmatpush1.bf16.msra.mxu0 0
    %440 = vmatprep.subr.bf16.mxu0 0
    %441 = vmatpush1.bf16.msra.mxu0 0
    %442 = vmatprep.subr.bf16.mxu0 0
    %443 = vmatpush1.bf16.msra.mxu0 0
    %444 = vmatprep.subr.bf16.mxu0 0
    %445 = vmatpush1.bf16.msra.mxu0 0
    %446 = vmatprep.subr.bf16.mxu0 0
    %447 = vmatpush1.bf16.msra.mxu0 0
    %448 = vmatprep.subr.bf16.mxu0 0
    %449 = vmatpush1.bf16.msra.mxu0 0
    %450 = vmatprep.subr.bf16.mxu0 0
    %451 = vmatpush1.bf16.msra.mxu0 0
    %452 = vmatprep.subr.bf16.mxu0 0
    %453 = vmatpush1.bf16.msra.mxu0 0
    %454 = vmatprep.subr.bf16.mxu0 0
    %455 = vmatpush1.bf16.msra.mxu0 0
    %456 = vmatprep.mubr.f32.mxu0 0.0
    %457 = vmatmul.mubr.f32.gmra.mrb[0].mxu0 %v310
    %v458 = vpop.f32.mrb[0].mxu0
    %v459 = vadd.f32 0.0, %v458
    %v460 = vpop.f32.mrb[0].mxu0
    %v461 = vadd.f32 0.0, %v460
    %462 = vdwg.mxu0
    %463 = vmatprep.subr.bf16.mxu0 %v241
    %464 = vmatpush1.bf16.msra.mxu0 %v240
    %465 = vmatprep.subr.bf16.mxu0 %v329
    %466 = vmatpush1.bf16.msra.mxu0 %v326
    %467 = vmatprep.subr.bf16.mxu0 0
    %468 = vmatpush1.bf16.msra.mxu0 0
    %469 = vmatprep.subr.bf16.mxu0 0
    %470 = vmatpush1.bf16.msra.mxu0 0
    %471 = vmatprep.subr.bf16.mxu0 0
    %472 = vmatpush1.bf16.msra.mxu0 0
    %473 = vmatprep.subr.bf16.mxu0 0
    %474 = vmatpush1.bf16.msra.mxu0 0
    %475 = vmatprep.subr.bf16.mxu0 0
    %476 = vmatpush1.bf16.msra.mxu0 0
    %477 = vmatprep.subr.bf16.mxu0 0
    %478 = vmatpush1.bf16.msra.mxu0 0
    %479 = vmatprep.subr.bf16.mxu0 0
    %480 = vmatpush1.bf16.msra.mxu0 0
    %481 = vmatprep.subr.bf16.mxu0 0
    %482 = vmatpush1.bf16.msra.mxu0 0
    %483 = vmatprep.subr.bf16.mxu0 0
    %484 = vmatpush1.bf16.msra.mxu0 0
    %485 = vmatprep.subr.bf16.mxu0 0
    %486 = vmatpush1.bf16.msra.mxu0 0
    %487 = vmatprep.subr.bf16.mxu0 0
    %488 = vmatpush1.bf16.msra.mxu0 0
    %489 = vmatprep.subr.bf16.mxu0 0
    %490 = vmatpush1.bf16.msra.mxu0 0
    %491 = vmatprep.subr.bf16.mxu0 0
    %492 = vmatpush1.bf16.msra.mxu0 0
    %493 = vmatprep.subr.bf16.mxu0 0
    %494 = vmatpush1.bf16.msra.mxu0 0
    %495 = vmatprep.mubr.f32.mxu0 0.0
    %496 = vmatmul.mubr.f32.gmra.mrb[0].mxu0 %v310
    %v497 = vpop.f32.mrb[0].mxu0
    %v498 = vadd.f32 0.0, %v497
    %v499 = vpop.f32.mrb[0].mxu0
    %v500 = vadd.f32 0.0, %v499
    %501 = vdwg.mxu0
    %502 = vmatprep.subr.bf16.mxu0 %v243
    %503 = vmatpush1.bf16.msra.mxu0 %v242
    %504 = vmatprep.subr.bf16.mxu0 %v335
    %505 = vmatpush1.bf16.msra.mxu0 %v332
    %506 = vmatprep.subr.bf16.mxu0 0
    %507 = vmatpush1.bf16.msra.mxu0 0
    %508 = vmatprep.subr.bf16.mxu0 0
    %509 = vmatpush1.bf16.msra.mxu0 0
    %510 = vmatprep.subr.bf16.mxu0 0
    %511 = vmatpush1.bf16.msra.mxu0 0
    %512 = vmatprep.subr.bf16.mxu0 0
    %513 = vmatpush1.bf16.msra.mxu0 0
    %514 = vmatprep.subr.bf16.mxu0 0
    %515 = vmatpush1.bf16.msra.mxu0 0
    %516 = vmatprep.subr.bf16.mxu0 0
    %517 = vmatpush1.bf16.msra.mxu0 0
    %518 = vmatprep.subr.bf16.mxu0 0
    %519 = vmatpush1.bf16.msra.mxu0 0
    %520 = vmatprep.subr.bf16.mxu0 0
    %521 = vmatpush1.bf16.msra.mxu0 0
    %522 = vmatprep.subr.bf16.mxu0 0
    %523 = vmatpush1.bf16.msra.mxu0 0
    %524 = vmatprep.subr.bf16.mxu0 0
    %525 = vmatpush1.bf16.msra.mxu0 0
    %526 = vmatprep.subr.bf16.mxu0 0
    %527 = vmatpush1.bf16.msra.mxu0 0
    %528 = vmatprep.subr.bf16.mxu0 0
    %529 = vmatpush1.bf16.msra.mxu0 0
    %530 = vmatprep.subr.bf16.mxu0 0
    %531 = vmatpush1.bf16.msra.mxu0 0
    %532 = vmatprep.subr.bf16.mxu0 0
    %533 = vmatpush1.bf16.msra.mxu0 0
    %534 = vmatprep.mubr.f32.mxu0 0.0
    %535 = vmatmul.mubr.f32.gmra.mrb[0].mxu0 %v310
    %v536 = vpop.f32.mrb[0].mxu0
    %v537 = vadd.f32 0.0, %v536
    %v538 = vpop.f32.mrb[0].mxu0
    %v539 = vadd.f32 0.0, %v538
    %540 = vdwg.mxu0
    %541 = vmatprep.subr.bf16.mxu0 %v245
    %542 = vmatpush1.bf16.msra.mxu0 %v244
    %543 = vmatprep.subr.bf16.mxu0 %v341
    %544 = vmatpush1.bf16.msra.mxu0 %v338
    %545 = vmatprep.subr.bf16.mxu0 0
    %546 = vmatpush1.bf16.msra.mxu0 0
    %547 = vmatprep.subr.bf16.mxu0 0
    %548 = vmatpush1.bf16.msra.mxu0 0
    %549 = vmatprep.subr.bf16.mxu0 0
    %550 = vmatpush1.bf16.msra.mxu0 0
    %551 = vmatprep.subr.bf16.mxu0 0
    %552 = vmatpush1.bf16.msra.mxu0 0
    %553 = vmatprep.subr.bf16.mxu0 0
    %554 = vmatpush1.bf16.msra.mxu0 0
    %555 = vmatprep.subr.bf16.mxu0 0
    %556 = vmatpush1.bf16.msra.mxu0 0
    %557 = vmatprep.subr.bf16.mxu0 0
    %558 = vmatpush1.bf16.msra.mxu0 0
    %559 = vmatprep.subr.bf16.mxu0 0
    %560 = vmatpush1.bf16.msra.mxu0 0
    %561 = vmatprep.subr.bf16.mxu0 0
    %562 = vmatpush1.bf16.msra.mxu0 0
    %563 = vmatprep.subr.bf16.mxu0 0
    %564 = vmatpush1.bf16.msra.mxu0 0
    %565 = vmatprep.subr.bf16.mxu0 0
    %566 = vmatpush1.bf16.msra.mxu0 0
    %567 = vmatprep.subr.bf16.mxu0 0
    %568 = vmatpush1.bf16.msra.mxu0 0
    %569 = vmatprep.subr.bf16.mxu0 0
    %570 = vmatpush1.bf16.msra.mxu0 0
    %571 = vmatprep.subr.bf16.mxu0 0
    %572 = vmatpush1.bf16.msra.mxu0 0
    %573 = vmatprep.mubr.f32.mxu0 0.0
    %574 = vmatmul.mubr.f32.gmra.mrb[0].mxu0 %v310
    %v575 = vpop.f32.mrb[0].mxu0
    %v576 = vadd.f32 0.0, %v575
    %v577 = vpop.f32.mrb[0].mxu0
    %v578 = vadd.f32 0.0, %v577
    %579 = vdwg.mxu0
    %580 = vmatprep.subr.bf16.mxu0 %v247
    %581 = vmatpush1.bf16.msra.mxu0 %v246
    %582 = vmatprep.subr.bf16.mxu0 %v347
    %583 = vmatpush1.bf16.msra.mxu0 %v344
    %584 = vmatprep.subr.bf16.mxu0 0
    %585 = vmatpush1.bf16.msra.mxu0 0
    %586 = vmatprep.subr.bf16.mxu0 0
    %587 = vmatpush1.bf16.msra.mxu0 0
    %588 = vmatprep.subr.bf16.mxu0 0
    %589 = vmatpush1.bf16.msra.mxu0 0
    %590 = vmatprep.subr.bf16.mxu0 0
    %591 = vmatpush1.bf16.msra.mxu0 0
    %592 = vmatprep.subr.bf16.mxu0 0
    %593 = vmatpush1.bf16.msra.mxu0 0
    %594 = vmatprep.subr.bf16.mxu0 0
    %595 = vmatpush1.bf16.msra.mxu0 0
    %596 = vmatprep.subr.bf16.mxu0 0
    %597 = vmatpush1.bf16.msra.mxu0 0
    %598 = vmatprep.subr.bf16.mxu0 0
    %599 = vmatpush1.bf16.msra.mxu0 0
    %600 = vmatprep.subr.bf16.mxu0 0
    %601 = vmatpush1.bf16.msra.mxu0 0
    %602 = vmatprep.subr.bf16.mxu0 0
    %603 = vmatpush1.bf16.msra.mxu0 0
    %604 = vmatprep.subr.bf16.mxu0 0
    %605 = vmatpush1.bf16.msra.mxu0 0
    %606 = vmatprep.subr.bf16.mxu0 0
    %607 = vmatpush1.bf16.msra.mxu0 0
    %608 = vmatprep.subr.bf16.mxu0 0
    %609 = vmatpush1.bf16.msra.mxu0 0
    %610 = vmatprep.subr.bf16.mxu0 0
    %611 = vmatpush1.bf16.msra.mxu0 0
    %612 = vmatprep.mubr.f32.mxu0 0.0
    %613 = vmatmul.mubr.f32.gmra.mrb[0].mxu0 %v310
    %v614 = vpop.f32.mrb[0].mxu0
    %v615 = vadd.f32 0.0, %v614
    %v616 = vpop.f32.mrb[0].mxu0
    %v617 = vadd.f32 0.0, %v616
    %618 = vdwg.mxu0
    %619 = vmatprep.subr.bf16.mxu0 %v249
    %620 = vmatpush1.bf16.msra.mxu0 %v248
    %621 = vmatprep.subr.bf16.mxu0 %v353
    %622 = vmatpush1.bf16.msra.mxu0 %v350
    %623 = vmatprep.subr.bf16.mxu0 0
    %624 = vmatpush1.bf16.msra.mxu0 0
    %625 = vmatprep.subr.bf16.mxu0 0
    %626 = vmatpush1.bf16.msra.mxu0 0
    %627 = vmatprep.subr.bf16.mxu0 0
    %628 = vmatpush1.bf16.msra.mxu0 0
    %629 = vmatprep.subr.bf16.mxu0 0
    %630 = vmatpush1.bf16.msra.mxu0 0
    %631 = vmatprep.subr.bf16.mxu0 0
    %632 = vmatpush1.bf16.msra.mxu0 0
    %633 = vmatprep.subr.bf16.mxu0 0
    %634 = vmatpush1.bf16.msra.mxu0 0
    %635 = vmatprep.subr.bf16.mxu0 0
    %636 = vmatpush1.bf16.msra.mxu0 0
    %637 = vmatprep.subr.bf16.mxu0 0
    %638 = vmatpush1.bf16.msra.mxu0 0
    %639 = vmatprep.subr.bf16.mxu0 0
    %640 = vmatpush1.bf16.msra.mxu0 0
    %641 = vmatprep.subr.bf16.mxu0 0
    %642 = vmatpush1.bf16.msra.mxu0 0
    %643 = vmatprep.subr.bf16.mxu0 0
    %644 = vmatpush1.bf16.msra.mxu0 0
    %645 = vmatprep.subr.bf16.mxu0 0
    %646 = vmatpush1.bf16.msra.mxu0 0
    %647 = vmatprep.subr.bf16.mxu0 0
    %648 = vmatpush1.bf16.msra.mxu0 0
    %649 = vmatprep.subr.bf16.mxu0 0
    %650 = vmatpush1.bf16.msra.mxu0 0
    %651 = vmatprep.mubr.f32.mxu0 0.0
    %652 = vmatmul.mubr.f32.gmra.mrb[0].mxu0 %v310
    %v653 = vpop.f32.mrb[0].mxu0
    %v654 = vadd.f32 0.0, %v653
    %v655 = vpop.f32.mrb[0].mxu0
    %v656 = vadd.f32 0.0, %v655
    %657 = vdwg.mxu0
    %658 = vmatprep.subr.bf16.mxu0 %v251
    %659 = vmatpush1.bf16.msra.mxu0 %v250
    %660 = vmatprep.subr.bf16.mxu0 %v359
    %661 = vmatpush1.bf16.msra.mxu0 %v356
    %662 = vmatprep.subr.bf16.mxu0 0
    %663 = vmatpush1.bf16.msra.mxu0 0
    %664 = vmatprep.subr.bf16.mxu0 0
    %665 = vmatpush1.bf16.msra.mxu0 0
    %666 = vmatprep.subr.bf16.mxu0 0
    %667 = vmatpush1.bf16.msra.mxu0 0
    %668 = vmatprep.subr.bf16.mxu0 0
    %669 = vmatpush1.bf16.msra.mxu0 0
    %670 = vmatprep.subr.bf16.mxu0 0
    %671 = vmatpush1.bf16.msra.mxu0 0
    %672 = vmatprep.subr.bf16.mxu0 0
    %673 = vmatpush1.bf16.msra.mxu0 0
    %674 = vmatprep.subr.bf16.mxu0 0
    %675 = vmatpush1.bf16.msra.mxu0 0
    %676 = vmatprep.subr.bf16.mxu0 0
    %677 = vmatpush1.bf16.msra.mxu0 0
    %678 = vmatprep.subr.bf16.mxu0 0
    %679 = vmatpush1.bf16.msra.mxu0 0
    %680 = vmatprep.subr.bf16.mxu0 0
    %681 = vmatpush1.bf16.msra.mxu0 0
    %682 = vmatprep.subr.bf16.mxu0 0
    %683 = vmatpush1.bf16.msra.mxu0 0
    %684 = vmatprep.subr.bf16.mxu0 0
    %685 = vmatpush1.bf16.msra.mxu0 0
    %686 = vmatprep.subr.bf16.mxu0 0
    %687 = vmatpush1.bf16.msra.mxu0 0
    %688 = vmatprep.subr.bf16.mxu0 0
    %689 = vmatpush1.bf16.msra.mxu0 0
    %690 = vmatprep.mubr.f32.mxu0 0.0
    %691 = vmatmul.mubr.f32.gmra.mrb[0].mxu0 %v310
    %v692 = vpop.f32.mrb[0].mxu0
    %v693 = vadd.f32 0.0, %v692
    %v694 = vpop.f32.mrb[0].mxu0
    %v695 = vadd.f32 0.0, %v694
    %696 = vdwg.mxu0
    %697 = vmatprep.subr.bf16.mxu0 %v253
    %698 = vmatpush1.bf16.msra.mxu0 %v252
    %699 = vmatprep.subr.bf16.mxu0 %v365
    %700 = vmatpush1.bf16.msra.mxu0 %v362
    %701 = vmatprep.subr.bf16.mxu0 0
    %702 = vmatpush1.bf16.msra.mxu0 0
    %703 = vmatprep.subr.bf16.mxu0 0
    %704 = vmatpush1.bf16.msra.mxu0 0
    %705 = vmatprep.subr.bf16.mxu0 0
    %706 = vmatpush1.bf16.msra.mxu0 0
    %707 = vmatprep.subr.bf16.mxu0 0
    %708 = vmatpush1.bf16.msra.mxu0 0
    %709 = vmatprep.subr.bf16.mxu0 0
    %710 = vmatpush1.bf16.msra.mxu0 0
    %711 = vmatprep.subr.bf16.mxu0 0
    %712 = vmatpush1.bf16.msra.mxu0 0
    %713 = vmatprep.subr.bf16.mxu0 0
    %714 = vmatpush1.bf16.msra.mxu0 0
    %715 = vmatprep.subr.bf16.mxu0 0
    %716 = vmatpush1.bf16.msra.mxu0 0
    %717 = vmatprep.subr.bf16.mxu0 0
    %718 = vmatpush1.bf16.msra.mxu0 0
    %719 = vmatprep.subr.bf16.mxu0 0
    %720 = vmatpush1.bf16.msra.mxu0 0
    %721 = vmatprep.subr.bf16.mxu0 0
    %722 = vmatpush1.bf16.msra.mxu0 0
    %723 = vmatprep.subr.bf16.mxu0 0
    %724 = vmatpush1.bf16.msra.mxu0 0
    %725 = vmatprep.subr.bf16.mxu0 0
    %726 = vmatpush1.bf16.msra.mxu0 0
    %727 = vmatprep.subr.bf16.mxu0 0
    %728 = vmatpush1.bf16.msra.mxu0 0
    %729 = vmatprep.mubr.f32.mxu0 0.0
    %730 = vmatmul.mubr.f32.gmra.mrb[0].mxu0 %v310
    %v731 = vpop.f32.mrb[0].mxu0
    %v732 = vadd.f32 0.0, %v731
    %v733 = vpop.f32.mrb[0].mxu0
    %v734 = vadd.f32 0.0, %v733
    %735 = vdwg.mxu0
    %736 = vmatprep.subr.bf16.mxu0 %v255
    %737 = vmatpush1.bf16.msra.mxu0 %v254
    %738 = vmatprep.subr.bf16.mxu0 %v371
    %739 = vmatpush1.bf16.msra.mxu0 %v368
    %740 = vmatprep.subr.bf16.mxu0 0
    %741 = vmatpush1.bf16.msra.mxu0 0
    %742 = vmatprep.subr.bf16.mxu0 0
    %743 = vmatpush1.bf16.msra.mxu0 0
    %744 = vmatprep.subr.bf16.mxu0 0
    %745 = vmatpush1.bf16.msra.mxu0 0
    %746 = vmatprep.subr.bf16.mxu0 0
    %747 = vmatpush1.bf16.msra.mxu0 0
    %748 = vmatprep.subr.bf16.mxu0 0
    %749 = vmatpush1.bf16.msra.mxu0 0
    %750 = vmatprep.subr.bf16.mxu0 0
    %751 = vmatpush1.bf16.msra.mxu0 0
    %752 = vmatprep.subr.bf16.mxu0 0
    %753 = vmatpush1.bf16.msra.mxu0 0
    %754 = vmatprep.subr.bf16.mxu0 0
    %755 = vmatpush1.bf16.msra.mxu0 0
    %756 = vmatprep.subr.bf16.mxu0 0
    %757 = vmatpush1.bf16.msra.mxu0 0
    %758 = vmatprep.subr.bf16.mxu0 0
    %759 = vmatpush1.bf16.msra.mxu0 0
    %760 = vmatprep.subr.bf16.mxu0 0
    %761 = vmatpush1.bf16.msra.mxu0 0
    %762 = vmatprep.subr.bf16.mxu0 0
    %763 = vmatpush1.bf16.msra.mxu0 0
    %764 = vmatprep.subr.bf16.mxu0 0
    %765 = vmatpush1.bf16.msra.mxu0 0
    %766 = vmatprep.subr.bf16.mxu0 0
    %767 = vmatpush1.bf16.msra.mxu0 0
    %768 = vmatprep.mubr.f32.mxu0 0.0
    %769 = vmatmul.mubr.f32.gmra.mrb[0].mxu0 %v310
    %v770 = vpop.f32.mrb[0].mxu0
    %v771 = vadd.f32 0.0, %v770
    %v772 = vpop.f32.mrb[0].mxu0
    %v773 = vadd.f32 0.0, %v772
    %774 = vdwg.mxu0
    %775 = vmatprep.subr.bf16.mxu0 %v257
    %776 = vmatpush1.bf16.msra.mxu0 %v256
    %777 = vmatprep.subr.bf16.mxu0 %v377
    %778 = vmatpush1.bf16.msra.mxu0 %v374
    %779 = vmatprep.subr.bf16.mxu0 0
    %780 = vmatpush1.bf16.msra.mxu0 0
    %781 = vmatprep.subr.bf16.mxu0 0
    %782 = vmatpush1.bf16.msra.mxu0 0
    %783 = vmatprep.subr.bf16.mxu0 0
    %784 = vmatpush1.bf16.msra.mxu0 0
    %785 = vmatprep.subr.bf16.mxu0 0
    %786 = vmatpush1.bf16.msra.mxu0 0
    %787 = vmatprep.subr.bf16.mxu0 0
    %788 = vmatpush1.bf16.msra.mxu0 0
    %789 = vmatprep.subr.bf16.mxu0 0
    %790 = vmatpush1.bf16.msra.mxu0 0
    %791 = vmatprep.subr.bf16.mxu0 0
    %792 = vmatpush1.bf16.msra.mxu0 0
    %793 = vmatprep.subr.bf16.mxu0 0
    %794 = vmatpush1.bf16.msra.mxu0 0
    %795 = vmatprep.subr.bf16.mxu0 0
    %796 = vmatpush1.bf16.msra.mxu0 0
    %797 = vmatprep.subr.bf16.mxu0 0
    %798 = vmatpush1.bf16.msra.mxu0 0
    %799 = vmatprep.subr.bf16.mxu0 0
    %800 = vmatpush1.bf16.msra.mxu0 0
    %801 = vmatprep.subr.bf16.mxu0 0
    %802 = vmatpush1.bf16.msra.mxu0 0
    %803 = vmatprep.subr.bf16.mxu0 0
    %804 = vmatpush1.bf16.msra.mxu0 0
    %805 = vmatprep.subr.bf16.mxu0 0
    %806 = vmatpush1.bf16.msra.mxu0 0
    %807 = vmatprep.mubr.f32.mxu0 0.0
    %808 = vmatmul.mubr.f32.gmra.mrb[0].mxu0 %v310
    %v809 = vpop.f32.mrb[0].mxu0
    %v810 = vadd.f32 0.0, %v809
    %v811 = vpop.f32.mrb[0].mxu0
    %v812 = vadd.f32 0.0, %v811
    %813 = vdwg.mxu0
    %814 = vmatprep.subr.bf16.mxu0 %v259
    %815 = vmatpush1.bf16.msra.mxu0 %v258
    %816 = vmatprep.subr.bf16.mxu0 %v383
    %817 = vmatpush1.bf16.msra.mxu0 %v380
    %818 = vmatprep.subr.bf16.mxu0 0
    %819 = vmatpush1.bf16.msra.mxu0 0
    %820 = vmatprep.subr.bf16.mxu0 0
    %821 = vmatpush1.bf16.msra.mxu0 0
    %822 = vmatprep.subr.bf16.mxu0 0
    %823 = vmatpush1.bf16.msra.mxu0 0
    %824 = vmatprep.subr.bf16.mxu0 0
    %825 = vmatpush1.bf16.msra.mxu0 0
    %826 = vmatprep.subr.bf16.mxu0 0
    %827 = vmatpush1.bf16.msra.mxu0 0
    %828 = vmatprep.subr.bf16.mxu0 0
    %829 = vmatpush1.bf16.msra.mxu0 0
    %830 = vmatprep.subr.bf16.mxu0 0
    %831 = vmatpush1.bf16.msra.mxu0 0
    %832 = vmatprep.subr.bf16.mxu0 0
    %833 = vmatpush1.bf16.msra.mxu0 0
    %834 = vmatprep.subr.bf16.mxu0 0
    %835 = vmatpush1.bf16.msra.mxu0 0
    %836 = vmatprep.subr.bf16.mxu0 0
    %837 = vmatpush1.bf16.msra.mxu0 0
    %838 = vmatprep.subr.bf16.mxu0 0
    %839 = vmatpush1.bf16.msra.mxu0 0
    %840 = vmatprep.subr.bf16.mxu0 0
    %841 = vmatpush1.bf16.msra.mxu0 0
    %842 = vmatprep.subr.bf16.mxu0 0
    %843 = vmatpush1.bf16.msra.mxu0 0
    %844 = vmatprep.subr.bf16.mxu0 0
    %845 = vmatpush1.bf16.msra.mxu0 0
    %846 = vmatprep.mubr.f32.mxu0 0.0
    %847 = vmatmul.mubr.f32.gmra.mrb[0].mxu0 %v310
    %v848 = vpop.f32.mrb[0].mxu0
    %v849 = vadd.f32 0.0, %v848
    %v850 = vpop.f32.mrb[0].mxu0
    %v851 = vadd.f32 0.0, %v850
    %852 = vdwg.mxu0
    %v856 = vlaneseq
    %v857 = vshrl.u32 %v856, 7
    %v858 = vsub.s32 0, %v857
    %v859 = vrot.slane %v88, %v858
    %v860 = vlaneseq
    %v861 = vshrl.u32 %v860, 7
    %v862 = vsub.s32 1, %v861
    %v863 = vrot.slane %v88, %v862
    %v864 = vlaneseq
    %v865 = vshrl.u32 %v864, 7
    %v866 = vsub.s32 2, %v865
    %v867 = vrot.slane %v88, %v866
    %v868 = vlaneseq
    %v869 = vshrl.u32 %v868, 7
    %v870 = vsub.s32 3, %v869
    %v871 = vrot.slane %v88, %v870
    %v872 = vlaneseq
    %v873 = vshrl.u32 %v872, 7
    %v874 = vsub.s32 4, %v873
    %v875 = vrot.slane %v88, %v874
    %v876 = vlaneseq
    %v877 = vshrl.u32 %v876, 7
    %v878 = vsub.s32 5, %v877
    %v879 = vrot.slane %v88, %v878
    %v880 = vlaneseq
    %v881 = vshrl.u32 %v880, 7
    %v882 = vsub.s32 6, %v881
    %v883 = vrot.slane %v88, %v882
    %v884 = vlaneseq
    %v885 = vshrl.u32 %v884, 7
    %v886 = vsub.s32 7, %v885
    %v887 = vrot.slane %v88, %v886
    %v888 = vlaneseq
    %v889 = vshrl.u32 %v888, 7
    %v890 = vsub.s32 0, %v889
    %v891 = vrot.slane %v89, %v890
    %v892 = vlaneseq
    %v893 = vshrl.u32 %v892, 7
    %v894 = vsub.s32 1, %v893
    %v895 = vrot.slane %v89, %v894
    %v896 = vlaneseq
    %v897 = vshrl.u32 %v896, 7
    %v898 = vsub.s32 2, %v897
    %v899 = vrot.slane %v89, %v898
    %v900 = vlaneseq
    %v901 = vshrl.u32 %v900, 7
    %v902 = vsub.s32 3, %v901
    %v903 = vrot.slane %v89, %v902
    %v904 = vlaneseq
    %v905 = vshrl.u32 %v904, 7
    %v906 = vsub.s32 4, %v905
    %v907 = vrot.slane %v89, %v906
    %v908 = vlaneseq
    %v909 = vshrl.u32 %v908, 7
    %v910 = vsub.s32 5, %v909
    %v911 = vrot.slane %v89, %v910
    %v912 = vlaneseq
    %v913 = vshrl.u32 %v912, 7
    %v914 = vsub.s32 6, %v913
    %v915 = vrot.slane %v89, %v914
    %v916 = vlaneseq
    %v917 = vshrl.u32 %v916, 7
    %v918 = vsub.s32 7, %v917
    %v919 = vrot.slane %v89, %v918
    %v920 = vlaneseq
    %v921 = vshrl.u32 %v920, 7
    %v922 = vsub.s32 0, %v921
    %v923 = vrot.slane %v90, %v922
    %v924 = vlaneseq
    %v925 = vshrl.u32 %v924, 7
    %v926 = vsub.s32 1, %v925
    %v927 = vrot.slane %v90, %v926
    %v928 = vlaneseq
    %v929 = vshrl.u32 %v928, 7
    %v930 = vsub.s32 2, %v929
    %v931 = vrot.slane %v90, %v930
    %v932 = vlaneseq
    %v933 = vshrl.u32 %v932, 7
    %v934 = vsub.s32 3, %v933
    %v935 = vrot.slane %v90, %v934
    %v936 = vlaneseq
    %v937 = vshrl.u32 %v936, 7
    %v938 = vsub.s32 4, %v937
    %v939 = vrot.slane %v90, %v938
    %v940 = vlaneseq
    %v941 = vshrl.u32 %v940, 7
    %v942 = vsub.s32 5, %v941
    %v943 = vrot.slane %v90, %v942
    %v944 = vlaneseq
    %v945 = vshrl.u32 %v944, 7
    %v946 = vsub.s32 6, %v945
    %v947 = vrot.slane %v90, %v946
    %v948 = vlaneseq
    %v949 = vshrl.u32 %v948, 7
    %v950 = vsub.s32 7, %v949
    %v951 = vrot.slane %v90, %v950
    %v976 = vadd.f32 %v859, %v420
    %v977 = vadd.f32 %v863, %v422
    %v978 = vadd.f32 %v867, %v459
    %v979 = vadd.f32 %v871, %v461
    %v980 = vadd.f32 %v875, %v498
    %v981 = vadd.f32 %v879, %v500
    %v982 = vadd.f32 %v883, %v537
    %v983 = vadd.f32 %v887, %v539
    %v984 = vadd.f32 %v891, %v576
    %v985 = vadd.f32 %v895, %v578
    %v986 = vadd.f32 %v899, %v615
    %v987 = vadd.f32 %v903, %v617
    %v988 = vadd.f32 %v907, %v654
    %v989 = vadd.f32 %v911, %v656
    %v990 = vadd.f32 %v915, %v693
    %v991 = vadd.f32 %v919, %v695
    %v992 = vadd.f32 %v923, %v732
    %v993 = vadd.f32 %v927, %v734
    %v994 = vadd.f32 %v931, %v771
    %v995 = vadd.f32 %v935, %v773
    %v996 = vadd.f32 %v939, %v810
    %v997 = vadd.f32 %v943, %v812
    %v998 = vadd.f32 %v947, %v849
    %v999 = vadd.f32 %v951, %v851
    %v1024 = vcombine.low %v976, %v977
    %v1025 = vcombine.low %v978, %v979
    %v1027 = vunpack.c.l.s4 1983009808
    %v1028 = vunpack.c.0.s8 %v1027
    %v1029 = vlaneseq
    %v1030 = vshrl.u32 %v1029, 7
    %v1031 = vsub.s32 %v1028, %v1030
    %v1032 = vrot.slane %v1024, %v1031
    %v1034 = vunpack.c.l.s4 1983009808
    %v1035 = vunpack.c.0.s8 %v1034
    %v1036 = vlaneseq
    %v1037 = vshrl.u32 %v1036, 7
    %v1038 = vsub.s32 %v1035, %v1037
    %v1039 = vrot.slane %v1025, %v1038
    %v1040 = vcombine.low %v1032, %v1039
    %v1041 = vcombine.low %v980, %v981
    %v1042 = vcombine.low %v982, %v983
    %v1044 = vunpack.c.l.s4 1983009808
    %v1045 = vunpack.c.0.s8 %v1044
    %v1046 = vlaneseq
    %v1047 = vshrl.u32 %v1046, 7
    %v1048 = vsub.s32 %v1045, %v1047
    %v1049 = vrot.slane %v1041, %v1048
    %v1051 = vunpack.c.l.s4 1983009808
    %v1052 = vunpack.c.0.s8 %v1051
    %v1053 = vlaneseq
    %v1054 = vshrl.u32 %v1053, 7
    %v1055 = vsub.s32 %v1052, %v1054
    %v1056 = vrot.slane %v1042, %v1055
    %v1057 = vcombine.low %v1049, %v1056
    %v1058 = vcombine.low %v984, %v985
    %v1059 = vcombine.low %v986, %v987
    %v1061 = vunpack.c.l.s4 1983009808
    %v1062 = vunpack.c.0.s8 %v1061
    %v1063 = vlaneseq
    %v1064 = vshrl.u32 %v1063, 7
    %v1065 = vsub.s32 %v1062, %v1064
    %v1066 = vrot.slane %v1058, %v1065
    %v1068 = vunpack.c.l.s4 1983009808
    %v1069 = vunpack.c.0.s8 %v1068
    %v1070 = vlaneseq
    %v1071 = vshrl.u32 %v1070, 7
    %v1072 = vsub.s32 %v1069, %v1071
    %v1073 = vrot.slane %v1059, %v1072
    %v1074 = vcombine.low %v1066, %v1073
    %v1075 = vcombine.low %v988, %v989
    %v1076 = vcombine.low %v990, %v991
    %v1078 = vunpack.c.l.s4 1983009808
    %v1079 = vunpack.c.0.s8 %v1078
    %v1080 = vlaneseq
    %v1081 = vshrl.u32 %v1080, 7
    %v1082 = vsub.s32 %v1079, %v1081
    %v1083 = vrot.slane %v1075, %v1082
    %v1085 = vunpack.c.l.s4 1983009808
    %v1086 = vunpack.c.0.s8 %v1085
    %v1087 = vlaneseq
    %v1088 = vshrl.u32 %v1087, 7
    %v1089 = vsub.s32 %v1086, %v1088
    %v1090 = vrot.slane %v1076, %v1089
    %v1091 = vcombine.low %v1083, %v1090
    %v1092 = vcombine.low %v992, %v993
    %v1093 = vcombine.low %v994, %v995
    %v1095 = vunpack.c.l.s4 1983009808
    %v1096 = vunpack.c.0.s8 %v1095
    %v1097 = vlaneseq
    %v1098 = vshrl.u32 %v1097, 7
    %v1099 = vsub.s32 %v1096, %v1098
    %v1100 = vrot.slane %v1092, %v1099
    %v1102 = vunpack.c.l.s4 1983009808
    %v1103 = vunpack.c.0.s8 %v1102
    %v1104 = vlaneseq
    %v1105 = vshrl.u32 %v1104, 7
    %v1106 = vsub.s32 %v1103, %v1105
    %v1107 = vrot.slane %v1093, %v1106
    %v1108 = vcombine.low %v1100, %v1107
    %v1109 = vcombine.low %v996, %v997
    %v1110 = vcombine.low %v998, %v999
    %v1112 = vunpack.c.l.s4 1983009808
    %v1113 = vunpack.c.0.s8 %v1112
    %v1114 = vlaneseq
    %v1115 = vshrl.u32 %v1114, 7
    %v1116 = vsub.s32 %v1113, %v1115
    %v1117 = vrot.slane %v1109, %v1116
    %v1119 = vunpack.c.l.s4 1983009808
    %v1120 = vunpack.c.0.s8 %v1119
    %v1121 = vlaneseq
    %v1122 = vshrl.u32 %v1121, 7
    %v1123 = vsub.s32 %v1120, %v1122
    %v1124 = vrot.slane %v1110, %v1123
    %v1125 = vcombine.low %v1117, %v1124
    %1132 = vst [vmem:[#allocation11] sm:$0xff] %v1040
    %1133 = vst [vmem:[#allocation11 + $0x8] sm:$0xff] %v1057
    %1134 = vst [vmem:[#allocation11 + $0x10] sm:$0xff] %v1074
    %1135 = vst [vmem:[#allocation11 + $0x18] sm:$0xff] %v1091
    %1136 = vst [vmem:[#allocation11 + $0x20] sm:$0xff] %v1108
    %1137 = vst [vmem:[#allocation11 + $0x28] sm:$0xff] %v1125
    %v1138 = vld [vmem:[#allocation5] sm:$0xf]
    %v1139 = vld [vmem:[#allocation8] sm:$0xff]
    %v1140 = vld [vmem:[#allocation8 + $0x8] sm:$0xff]
    %v1141 = vld [vmem:[#allocation8 + $0x10] sm:$0xff]
    %v1142 = vld [vmem:[#allocation8 + $0x18] sm:$0xff]
    %v1143 = vld [vmem:[#allocation8 + $0x20] sm:$0xff]
    %v1144 = vld [vmem:[#allocation8 + $0x28] sm:$0xff]
    %v1145 = vld [vmem:[#allocation8 + $0x30] sm:$0xff]
    %v1146 = vld [vmem:[#allocation8 + $0x38] sm:$0xff]
    %v1147 = vld [vmem:[#allocation8 + $0x40] sm:$0xff]
    %v1148 = vld [vmem:[#allocation8 + $0x48] sm:$0xff]
    %v1149 = vld [vmem:[#allocation8 + $0x50] sm:$0xff]
    %v1150 = vld [vmem:[#allocation8 + $0x58] sm:$0xff]
    %v1151 = vld [vmem:[#allocation8 + $0x60] sm:$0xff]
    %v1152 = vld [vmem:[#allocation8 + $0x68] sm:$0xff]
    %v1153 = vld [vmem:[#allocation8 + $0x70] sm:$0xff]
    %v1154 = vld [vmem:[#allocation8 + $0x78] sm:$0xff]
    %v1155 = vld [vmem:[#allocation8 + $0x80] sm:$0xff]
    %v1156 = vld [vmem:[#allocation8 + $0x88] sm:$0xff]
    %v1157 = vld [vmem:[#allocation8 + $0x90] sm:$0xff]
    %v1158 = vld [vmem:[#allocation8 + $0x98] sm:$0xff]
    %v1159 = vld [vmem:[#allocation8 + $0xa0] sm:$0xff]
    %v1160 = vld [vmem:[#allocation8 + $0xa8] sm:$0xff]
    %v1161 = vld [vmem:[#allocation8 + $0xb0] sm:$0xff]
    %v1162 = vld [vmem:[#allocation8 + $0xb8] sm:$0xff]
    %v1163 = vld [vmem:[#allocation8 + $0xc0] sm:$0xff]
    %v1164 = vld [vmem:[#allocation8 + $0xc8] sm:$0xff]
    %v1165 = vld [vmem:[#allocation8 + $0xd0] sm:$0xff]
    %v1166 = vld [vmem:[#allocation8 + $0xd8] sm:$0xff]
    %v1167 = vld [vmem:[#allocation8 + $0xe0] sm:$0xff]
    %v1168 = vld [vmem:[#allocation8 + $0xe8] sm:$0xff]
    %v1169 = vld [vmem:[#allocation8 + $0xf0] sm:$0xff]
    %v1170 = vld [vmem:[#allocation8 + $0xf8] sm:$0xff]
    %v1171 = vld [vmem:[#allocation8 + $0x100] sm:$0xff]
    %v1172 = vld [vmem:[#allocation8 + $0x108] sm:$0xff]
    %v1173 = vld [vmem:[#allocation8 + $0x110] sm:$0xff]
    %v1174 = vld [vmem:[#allocation8 + $0x118] sm:$0xff]
    %v1175 = vld [vmem:[#allocation8 + $0x120] sm:$0xff]
    %v1176 = vld [vmem:[#allocation8 + $0x128] sm:$0xff]
    %v1177 = vld [vmem:[#allocation8 + $0x130] sm:$0xff]
    %v1178 = vld [vmem:[#allocation8 + $0x138] sm:$0xff]
    %v1179 = vld [vmem:[#allocation8 + $0x140] sm:$0xff]
    %v1180 = vld [vmem:[#allocation8 + $0x148] sm:$0xff]
    %v1181 = vld [vmem:[#allocation8 + $0x150] sm:$0xff]
    %v1182 = vld [vmem:[#allocation8 + $0x158] sm:$0xff]
    %v1183 = vld [vmem:[#allocation8 + $0x160] sm:$0xff]
    %v1184 = vld [vmem:[#allocation8 + $0x168] sm:$0xff]
    %v1185 = vld [vmem:[#allocation8 + $0x170] sm:$0xff]
    %v1186 = vld [vmem:[#allocation8 + $0x178] sm:$0xff]
    %v1187 = vld [vmem:[#allocation8 + $0x180] sm:$0xff]
    %v1188 = vld [vmem:[#allocation8 + $0x188] sm:$0xff]
    %v1189 = vld [vmem:[#allocation8 + $0x190] sm:$0xff]
    %v1190 = vld [vmem:[#allocation8 + $0x198] sm:$0xff]
    %v1191 = vld [vmem:[#allocation8 + $0x1a0] sm:$0xff]
    %v1192 = vld [vmem:[#allocation8 + $0x1a8] sm:$0xff]
    %v1193 = vld [vmem:[#allocation8 + $0x1b0] sm:$0xff]
    %v1194 = vld [vmem:[#allocation8 + $0x1b8] sm:$0xff]
    %v1195 = vld [vmem:[#allocation8 + $0x1c0] sm:$0xff]
    %v1196 = vld [vmem:[#allocation8 + $0x1c8] sm:$0xff]
    %v1197 = vld [vmem:[#allocation8 + $0x1d0] sm:$0xff]
    %v1198 = vld [vmem:[#allocation8 + $0x1d8] sm:$0xff]
    %v1199 = vld [vmem:[#allocation8 + $0x1e0] sm:$0xff]
    %v1200 = vld [vmem:[#allocation8 + $0x1e8] sm:$0xff]
    %v1201 = vld [vmem:[#allocation8 + $0x1f0] sm:$0xff]
    %v1202 = vld [vmem:[#allocation8 + $0x1f8] sm:$0xff]
    %v1203 = vld [vmem:[#allocation8 + $0x200] sm:$0xff]
    %v1204 = vld [vmem:[#allocation8 + $0x208] sm:$0xff]
    %v1205 = vld [vmem:[#allocation8 + $0x210] sm:$0xff]
    %v1206 = vld [vmem:[#allocation8 + $0x218] sm:$0xff]
    %v1207 = vld [vmem:[#allocation8 + $0x220] sm:$0xff]
    %v1208 = vld [vmem:[#allocation8 + $0x228] sm:$0xff]
    %v1209 = vld [vmem:[#allocation8 + $0x230] sm:$0xff]
    %v1210 = vld [vmem:[#allocation8 + $0x238] sm:$0xff]
    %v1211 = vld [vmem:[#allocation8 + $0x240] sm:$0xff]
    %v1212 = vld [vmem:[#allocation8 + $0x248] sm:$0xff]
    %v1213 = vld [vmem:[#allocation8 + $0x250] sm:$0xff]
    %v1214 = vld [vmem:[#allocation8 + $0x258] sm:$0xff]
    %v1215 = vld [vmem:[#allocation8 + $0x260] sm:$0xff]
    %v1216 = vld [vmem:[#allocation8 + $0x268] sm:$0xff]
    %v1217 = vld [vmem:[#allocation8 + $0x270] sm:$0xff]
    %v1218 = vld [vmem:[#allocation8 + $0x278] sm:$0xff]
    %v1219 = vld [vmem:[#allocation8 + $0x280] sm:$0xff]
    %v1220 = vld [vmem:[#allocation8 + $0x288] sm:$0xff]
    %v1221 = vld [vmem:[#allocation8 + $0x290] sm:$0xff]
    %v1222 = vld [vmem:[#allocation8 + $0x298] sm:$0xff]
    %v1223 = vld [vmem:[#allocation8 + $0x2a0] sm:$0xff]
    %v1224 = vld [vmem:[#allocation8 + $0x2a8] sm:$0xff]
    %v1225 = vld [vmem:[#allocation8 + $0x2b0] sm:$0xff]
    %v1226 = vld [vmem:[#allocation8 + $0x2b8] sm:$0xff]
    %v1227 = vld [vmem:[#allocation8 + $0x2c0] sm:$0xff]
    %v1228 = vld [vmem:[#allocation8 + $0x2c8] sm:$0xff]
    %v1229 = vld [vmem:[#allocation8 + $0x2d0] sm:$0xff]
    %v1230 = vld [vmem:[#allocation8 + $0x2d8] sm:$0xff]
    %v1231 = vld [vmem:[#allocation8 + $0x2e0] sm:$0xff]
    %v1232 = vld [vmem:[#allocation8 + $0x2e8] sm:$0xff]
    %v1233 = vld [vmem:[#allocation8 + $0x2f0] sm:$0xff]
    %v1234 = vld [vmem:[#allocation8 + $0x2f8] sm:$0xff]
    %v1235 = vld [vmem:[#allocation8 + $0x300] sm:$0xff]
    %v1236 = vld [vmem:[#allocation8 + $0x308] sm:$0xff]
    %v1237 = vld [vmem:[#allocation8 + $0x310] sm:$0xff]
    %v1238 = vld [vmem:[#allocation8 + $0x318] sm:$0xff]
    %v1239 = vld [vmem:[#allocation8 + $0x320] sm:$0xff]
    %v1240 = vld [vmem:[#allocation8 + $0x328] sm:$0xff]
    %v1241 = vld [vmem:[#allocation8 + $0x330] sm:$0xff]
    %v1242 = vld [vmem:[#allocation8 + $0x338] sm:$0xff]
    %v1243 = vld [vmem:[#allocation8 + $0x340] sm:$0xff]
    %v1244 = vld [vmem:[#allocation8 + $0x348] sm:$0xff]
    %v1245 = vld [vmem:[#allocation8 + $0x350] sm:$0xff]
    %v1246 = vld [vmem:[#allocation8 + $0x358] sm:$0xff]
    %v1247 = vld [vmem:[#allocation8 + $0x360] sm:$0xff]
    %v1248 = vld [vmem:[#allocation8 + $0x368] sm:$0xff]
    %v1249 = vld [vmem:[#allocation8 + $0x370] sm:$0xff]
    %v1250 = vld [vmem:[#allocation8 + $0x378] sm:$0xff]
    %v1251 = vld [vmem:[#allocation8 + $0x380] sm:$0xff]
    %v1252 = vld [vmem:[#allocation8 + $0x388] sm:$0xff]
    %v1253 = vld [vmem:[#allocation8 + $0x390] sm:$0xff]
    %v1254 = vld [vmem:[#allocation8 + $0x398] sm:$0xff]
    %v1255 = vld [vmem:[#allocation8 + $0x3a0] sm:$0xff]
    %v1256 = vld [vmem:[#allocation8 + $0x3a8] sm:$0xff]
    %v1257 = vld [vmem:[#allocation8 + $0x3b0] sm:$0xff]
    %v1258 = vld [vmem:[#allocation8 + $0x3b8] sm:$0xff]
    %v1259 = vld [vmem:[#allocation8 + $0x3c0] sm:$0xff]
    %v1260 = vld [vmem:[#allocation8 + $0x3c8] sm:$0xff]
    %v1261 = vld [vmem:[#allocation8 + $0x3d0] sm:$0xff]
    %v1262 = vld [vmem:[#allocation8 + $0x3d8] sm:$0xff]
    %v1263 = vld [vmem:[#allocation8 + $0x3e0] sm:$0xff]
    %v1264 = vld [vmem:[#allocation8 + $0x3e8] sm:$0xff]
    %v1265 = vld [vmem:[#allocation8 + $0x3f0] sm:$0xff]
    %v1266 = vld [vmem:[#allocation8 + $0x3f8] sm:$0xff]
    %v1267 = vld [vmem:[#allocation8 + $0x400] sm:$0xff]
    %v1268 = vld [vmem:[#allocation8 + $0x408] sm:$0xff]
    %v1269 = vld [vmem:[#allocation8 + $0x410] sm:$0xff]
    %v1270 = vld [vmem:[#allocation8 + $0x418] sm:$0xff]
    %v1271 = vld [vmem:[#allocation8 + $0x420] sm:$0xff]
    %v1272 = vld [vmem:[#allocation8 + $0x428] sm:$0xff]
    %v1273 = vld [vmem:[#allocation8 + $0x430] sm:$0xff]
    %v1274 = vld [vmem:[#allocation8 + $0x438] sm:$0xff]
    %v1275 = vld [vmem:[#allocation8 + $0x440] sm:$0xff]
    %v1276 = vld [vmem:[#allocation8 + $0x448] sm:$0xff]
    %v1277 = vld [vmem:[#allocation8 + $0x450] sm:$0xff]
    %v1278 = vld [vmem:[#allocation8 + $0x458] sm:$0xff]
    %v1279 = vld [vmem:[#allocation8 + $0x460] sm:$0xff]
    %v1280 = vld [vmem:[#allocation8 + $0x468] sm:$0xff]
    %v1281 = vld [vmem:[#allocation8 + $0x470] sm:$0xff]
    %v1282 = vld [vmem:[#allocation8 + $0x478] sm:$0xff]
    %v1283 = vld [vmem:[#allocation8 + $0x480] sm:$0xff]
    %v1284 = vld [vmem:[#allocation8 + $0x488] sm:$0xff]
    %v1285 = vld [vmem:[#allocation8 + $0x490] sm:$0xff]
    %v1286 = vld [vmem:[#allocation8 + $0x498] sm:$0xff]
    %v1287 = vld [vmem:[#allocation8 + $0x4a0] sm:$0xff]
    %v1288 = vld [vmem:[#allocation8 + $0x4a8] sm:$0xff]
    %v1289 = vld [vmem:[#allocation8 + $0x4b0] sm:$0xff]
    %v1290 = vld [vmem:[#allocation8 + $0x4b8] sm:$0xff]
    %v1291 = vld [vmem:[#allocation8 + $0x4c0] sm:$0xff]
    %v1292 = vld [vmem:[#allocation8 + $0x4c8] sm:$0xff]
    %v1293 = vld [vmem:[#allocation8 + $0x4d0] sm:$0xff]
    %v1294 = vld [vmem:[#allocation8 + $0x4d8] sm:$0xff]
    %v1295 = vld [vmem:[#allocation8 + $0x4e0] sm:$0xff]
    %v1296 = vld [vmem:[#allocation8 + $0x4e8] sm:$0xff]
    %v1297 = vld [vmem:[#allocation8 + $0x4f0] sm:$0xff]
    %v1298 = vld [vmem:[#allocation8 + $0x4f8] sm:$0xff]
    %v1299 = vld [vmem:[#allocation8 + $0x500] sm:$0xff]
    %v1300 = vld [vmem:[#allocation8 + $0x508] sm:$0xff]
    %v1301 = vld [vmem:[#allocation8 + $0x510] sm:$0xff]
    %v1302 = vld [vmem:[#allocation8 + $0x518] sm:$0xff]
    %v1303 = vld [vmem:[#allocation8 + $0x520] sm:$0xff]
    %v1304 = vld [vmem:[#allocation8 + $0x528] sm:$0xff]
    %v1305 = vld [vmem:[#allocation8 + $0x530] sm:$0xff]
    %v1306 = vld [vmem:[#allocation8 + $0x538] sm:$0xff]
    %v1307 = vld [vmem:[#allocation8 + $0x540] sm:$0xff]
    %v1308 = vld [vmem:[#allocation8 + $0x548] sm:$0xff]
    %v1309 = vld [vmem:[#allocation8 + $0x550] sm:$0xff]
    %v1310 = vld [vmem:[#allocation8 + $0x558] sm:$0xff]
    %v1311 = vld [vmem:[#allocation8 + $0x560] sm:$0xff]
    %v1312 = vld [vmem:[#allocation8 + $0x568] sm:$0xff]
    %v1313 = vld [vmem:[#allocation8 + $0x570] sm:$0xff]
    %v1314 = vld [vmem:[#allocation8 + $0x578] sm:$0xff]
    %v1315 = vld [vmem:[#allocation8 + $0x580] sm:$0xff]
    %v1316 = vld [vmem:[#allocation8 + $0x588] sm:$0xff]
    %v1317 = vld [vmem:[#allocation8 + $0x590] sm:$0xff]
    %v1318 = vld [vmem:[#allocation8 + $0x598] sm:$0xff]
    %v1319 = vld [vmem:[#allocation8 + $0x5a0] sm:$0xff]
    %v1320 = vld [vmem:[#allocation8 + $0x5a8] sm:$0xff]
    %v1321 = vld [vmem:[#allocation8 + $0x5b0] sm:$0xff]
    %v1322 = vld [vmem:[#allocation8 + $0x5b8] sm:$0xff]
    %v1323 = vld [vmem:[#allocation8 + $0x5c0] sm:$0xff]
    %v1324 = vld [vmem:[#allocation8 + $0x5c8] sm:$0xff]
    %v1325 = vld [vmem:[#allocation8 + $0x5d0] sm:$0xff]
    %v1326 = vld [vmem:[#allocation8 + $0x5d8] sm:$0xff]
    %v1327 = vld [vmem:[#allocation8 + $0x5e0] sm:$0xff]
    %v1328 = vld [vmem:[#allocation8 + $0x5e8] sm:$0xff]
    %v1329 = vld [vmem:[#allocation8 + $0x5f0] sm:$0xff]
    %v1330 = vld [vmem:[#allocation8 + $0x5f8] sm:$0xff]
    %v1331 = vld [vmem:[#allocation8 + $0x600] sm:$0xff]
    %v1332 = vld [vmem:[#allocation8 + $0x608] sm:$0xff]
    %v1333 = vld [vmem:[#allocation8 + $0x610] sm:$0xff]
    %v1334 = vld [vmem:[#allocation8 + $0x618] sm:$0xff]
    %v1335 = vld [vmem:[#allocation8 + $0x620] sm:$0xff]
    %v1336 = vld [vmem:[#allocation8 + $0x628] sm:$0xff]
    %v1337 = vld [vmem:[#allocation8 + $0x630] sm:$0xff]
    %v1338 = vld [vmem:[#allocation8 + $0x638] sm:$0xff]
    %v1339 = vld [vmem:[#allocation8 + $0x640] sm:$0xff]
    %v1340 = vld [vmem:[#allocation8 + $0x648] sm:$0xff]
    %v1341 = vld [vmem:[#allocation8 + $0x650] sm:$0xff]
    %v1342 = vld [vmem:[#allocation8 + $0x658] sm:$0xff]
    %v1343 = vld [vmem:[#allocation8 + $0x660] sm:$0xff]
    %v1344 = vld [vmem:[#allocation8 + $0x668] sm:$0xff]
    %v1345 = vld [vmem:[#allocation8 + $0x670] sm:$0xff]
    %v1346 = vld [vmem:[#allocation8 + $0x678] sm:$0xff]
    %v1347 = vld [vmem:[#allocation8 + $0x680] sm:$0xff]
    %v1348 = vld [vmem:[#allocation8 + $0x688] sm:$0xff]
    %v1349 = vld [vmem:[#allocation8 + $0x690] sm:$0xff]
    %v1350 = vld [vmem:[#allocation8 + $0x698] sm:$0xff]
    %v1351 = vld [vmem:[#allocation8 + $0x6a0] sm:$0xff]
    %v1352 = vld [vmem:[#allocation8 + $0x6a8] sm:$0xff]
    %v1353 = vld [vmem:[#allocation8 + $0x6b0] sm:$0xff]
    %v1354 = vld [vmem:[#allocation8 + $0x6b8] sm:$0xff]
    %v1355 = vld [vmem:[#allocation8 + $0x6c0] sm:$0xff]
    %v1356 = vld [vmem:[#allocation8 + $0x6c8] sm:$0xff]
    %v1357 = vld [vmem:[#allocation8 + $0x6d0] sm:$0xff]
    %v1358 = vld [vmem:[#allocation8 + $0x6d8] sm:$0xff]
    %v1359 = vld [vmem:[#allocation8 + $0x6e0] sm:$0xff]
    %v1360 = vld [vmem:[#allocation8 + $0x6e8] sm:$0xff]
    %v1361 = vld [vmem:[#allocation8 + $0x6f0] sm:$0xff]
    %v1362 = vld [vmem:[#allocation8 + $0x6f8] sm:$0xff]
    %v1363 = vld [vmem:[#allocation8 + $0x700] sm:$0xff]
    %v1364 = vld [vmem:[#allocation8 + $0x708] sm:$0xff]
    %v1365 = vld [vmem:[#allocation8 + $0x710] sm:$0xff]
    %v1366 = vld [vmem:[#allocation8 + $0x718] sm:$0xff]
    %v1367 = vld [vmem:[#allocation8 + $0x720] sm:$0xff]
    %v1368 = vld [vmem:[#allocation8 + $0x728] sm:$0xff]
    %v1369 = vld [vmem:[#allocation8 + $0x730] sm:$0xff]
    %v1370 = vld [vmem:[#allocation8 + $0x738] sm:$0xff]
    %v1371 = vld [vmem:[#allocation8 + $0x740] sm:$0xff]
    %v1372 = vld [vmem:[#allocation8 + $0x748] sm:$0xff]
    %v1373 = vld [vmem:[#allocation8 + $0x750] sm:$0xff]
    %v1374 = vld [vmem:[#allocation8 + $0x758] sm:$0xff]
    %v1375 = vld [vmem:[#allocation8 + $0x760] sm:$0xff]
    %v1376 = vld [vmem:[#allocation8 + $0x768] sm:$0xff]
    %v1377 = vld [vmem:[#allocation8 + $0x770] sm:$0xff]
    %v1378 = vld [vmem:[#allocation8 + $0x778] sm:$0xff]
    %v1379 = vld [vmem:[#allocation8 + $0x780] sm:$0xff]
    %v1380 = vld [vmem:[#allocation8 + $0x788] sm:$0xff]
    %v1381 = vld [vmem:[#allocation8 + $0x790] sm:$0xff]
    %v1382 = vld [vmem:[#allocation8 + $0x798] sm:$0xff]
    %v1383 = vld [vmem:[#allocation8 + $0x7a0] sm:$0xff]
    %v1384 = vld [vmem:[#allocation8 + $0x7a8] sm:$0xff]
    %v1385 = vld [vmem:[#allocation8 + $0x7b0] sm:$0xff]
    %v1386 = vld [vmem:[#allocation8 + $0x7b8] sm:$0xff]
    %v1387 = vld [vmem:[#allocation8 + $0x7c0] sm:$0xff]
    %v1388 = vld [vmem:[#allocation8 + $0x7c8] sm:$0xff]
    %v1389 = vld [vmem:[#allocation8 + $0x7d0] sm:$0xff]
    %v1390 = vld [vmem:[#allocation8 + $0x7d8] sm:$0xff]
    %v1391 = vld [vmem:[#allocation8 + $0x7e0] sm:$0xff]
    %v1392 = vld [vmem:[#allocation8 + $0x7e8] sm:$0xff]
    %v1393 = vld [vmem:[#allocation8 + $0x7f0] sm:$0xff]
    %v1394 = vld [vmem:[#allocation8 + $0x7f8] sm:$0xff]
    %v1395 = vld [vmem:[#allocation8 + $0x800] sm:$0xff]
    %v1396 = vld [vmem:[#allocation8 + $0x808] sm:$0xff]
    %v1397 = vld [vmem:[#allocation8 + $0x810] sm:$0xff]
    %v1398 = vld [vmem:[#allocation8 + $0x818] sm:$0xff]
    %v1399 = vld [vmem:[#allocation8 + $0x820] sm:$0xff]
    %v1400 = vld [vmem:[#allocation8 + $0x828] sm:$0xff]
    %v1401 = vld [vmem:[#allocation8 + $0x830] sm:$0xff]
    %v1402 = vld [vmem:[#allocation8 + $0x838] sm:$0xff]
    %v1403 = vld [vmem:[#allocation8 + $0x840] sm:$0xff]
    %v1404 = vld [vmem:[#allocation8 + $0x848] sm:$0xff]
    %v1405 = vld [vmem:[#allocation8 + $0x850] sm:$0xff]
    %v1406 = vld [vmem:[#allocation8 + $0x858] sm:$0xff]
    %v1407 = vld [vmem:[#allocation8 + $0x860] sm:$0xff]
    %v1408 = vld [vmem:[#allocation8 + $0x868] sm:$0xff]
    %v1409 = vld [vmem:[#allocation8 + $0x870] sm:$0xff]
    %v1410 = vld [vmem:[#allocation8 + $0x878] sm:$0xff]
    %v1411 = vld [vmem:[#allocation8 + $0x880] sm:$0xff]
    %v1412 = vld [vmem:[#allocation8 + $0x888] sm:$0xff]
    %v1413 = vld [vmem:[#allocation8 + $0x890] sm:$0xff]
    %v1414 = vld [vmem:[#allocation8 + $0x898] sm:$0xff]
    %v1415 = vld [vmem:[#allocation8 + $0x8a0] sm:$0xff]
    %v1416 = vld [vmem:[#allocation8 + $0x8a8] sm:$0xff]
    %v1417 = vld [vmem:[#allocation8 + $0x8b0] sm:$0xff]
    %v1418 = vld [vmem:[#allocation8 + $0x8b8] sm:$0xff]
    %v1419 = vld [vmem:[#allocation8 + $0x8c0] sm:$0xff]
    %v1420 = vld [vmem:[#allocation8 + $0x8c8] sm:$0xff]
    %v1421 = vld [vmem:[#allocation8 + $0x8d0] sm:$0xff]
    %v1422 = vld [vmem:[#allocation8 + $0x8d8] sm:$0xff]
    %v1423 = vld [vmem:[#allocation8 + $0x8e0] sm:$0xff]
    %v1424 = vld [vmem:[#allocation8 + $0x8e8] sm:$0xff]
    %v1425 = vld [vmem:[#allocation8 + $0x8f0] sm:$0xff]
    %v1426 = vld [vmem:[#allocation8 + $0x8f8] sm:$0xff]
    %v1427 = vld [vmem:[#allocation8 + $0x900] sm:$0xff]
    %v1428 = vld [vmem:[#allocation8 + $0x908] sm:$0xff]
    %v1429 = vld [vmem:[#allocation8 + $0x910] sm:$0xff]
    %v1430 = vld [vmem:[#allocation8 + $0x918] sm:$0xff]
    %v1431 = vld [vmem:[#allocation8 + $0x920] sm:$0xff]
    %v1432 = vld [vmem:[#allocation8 + $0x928] sm:$0xff]
    %v1433 = vld [vmem:[#allocation8 + $0x930] sm:$0xff]
    %v1434 = vld [vmem:[#allocation8 + $0x938] sm:$0xff]
    %v1435 = vld [vmem:[#allocation8 + $0x940] sm:$0xff]
    %v1436 = vld [vmem:[#allocation8 + $0x948] sm:$0xff]
    %v1437 = vld [vmem:[#allocation8 + $0x950] sm:$0xff]
    %v1438 = vld [vmem:[#allocation8 + $0x958] sm:$0xff]
    %v1439 = vld [vmem:[#allocation8 + $0x960] sm:$0xff]
    %v1440 = vld [vmem:[#allocation8 + $0x968] sm:$0xff]
    %v1441 = vld [vmem:[#allocation8 + $0x970] sm:$0xff]
    %v1442 = vld [vmem:[#allocation8 + $0x978] sm:$0xff]
    %v1443 = vld [vmem:[#allocation8 + $0x980] sm:$0xff]
    %v1444 = vld [vmem:[#allocation8 + $0x988] sm:$0xff]
    %v1445 = vld [vmem:[#allocation8 + $0x990] sm:$0xff]
    %v1446 = vld [vmem:[#allocation8 + $0x998] sm:$0xff]
    %v1447 = vld [vmem:[#allocation8 + $0x9a0] sm:$0xff]
    %v1448 = vld [vmem:[#allocation8 + $0x9a8] sm:$0xff]
    %v1449 = vld [vmem:[#allocation8 + $0x9b0] sm:$0xff]
    %v1450 = vld [vmem:[#allocation8 + $0x9b8] sm:$0xff]
    %v1451 = vld [vmem:[#allocation8 + $0x9c0] sm:$0xff]
    %v1452 = vld [vmem:[#allocation8 + $0x9c8] sm:$0xff]
    %v1453 = vld [vmem:[#allocation8 + $0x9d0] sm:$0xff]
    %v1454 = vld [vmem:[#allocation8 + $0x9d8] sm:$0xff]
    %v1455 = vld [vmem:[#allocation8 + $0x9e0] sm:$0xff]
    %v1456 = vld [vmem:[#allocation8 + $0x9e8] sm:$0xff]
    %v1457 = vld [vmem:[#allocation8 + $0x9f0] sm:$0xff]
    %v1458 = vld [vmem:[#allocation8 + $0x9f8] sm:$0xff]
    %v1459 = vld [vmem:[#allocation8 + $0xa00] sm:$0xff]
    %v1460 = vld [vmem:[#allocation8 + $0xa08] sm:$0xff]
    %v1461 = vld [vmem:[#allocation8 + $0xa10] sm:$0xff]
    %v1462 = vld [vmem:[#allocation8 + $0xa18] sm:$0xff]
    %v1463 = vld [vmem:[#allocation8 + $0xa20] sm:$0xff]
    %v1464 = vld [vmem:[#allocation8 + $0xa28] sm:$0xff]
    %v1465 = vld [vmem:[#allocation8 + $0xa30] sm:$0xff]
    %v1466 = vld [vmem:[#allocation8 + $0xa38] sm:$0xff]
    %v1467 = vld [vmem:[#allocation8 + $0xa40] sm:$0xff]
    %v1468 = vld [vmem:[#allocation8 + $0xa48] sm:$0xff]
    %v1469 = vld [vmem:[#allocation8 + $0xa50] sm:$0xff]
    %v1470 = vld [vmem:[#allocation8 + $0xa58] sm:$0xff]
    %v1471 = vld [vmem:[#allocation8 + $0xa60] sm:$0xff]
    %v1472 = vld [vmem:[#allocation8 + $0xa68] sm:$0xff]
    %v1473 = vld [vmem:[#allocation8 + $0xa70] sm:$0xff]
    %v1474 = vld [vmem:[#allocation8 + $0xa78] sm:$0xff]
    %v1475 = vld [vmem:[#allocation8 + $0xa80] sm:$0xff]
    %v1476 = vld [vmem:[#allocation8 + $0xa88] sm:$0xff]
    %v1477 = vld [vmem:[#allocation8 + $0xa90] sm:$0xff]
    %v1478 = vld [vmem:[#allocation8 + $0xa98] sm:$0xff]
    %v1479 = vld [vmem:[#allocation8 + $0xaa0] sm:$0xff]
    %v1480 = vld [vmem:[#allocation8 + $0xaa8] sm:$0xff]
    %v1481 = vld [vmem:[#allocation8 + $0xab0] sm:$0xff]
    %v1482 = vld [vmem:[#allocation8 + $0xab8] sm:$0xff]
    %v1483 = vld [vmem:[#allocation8 + $0xac0] sm:$0xff]
    %v1484 = vld [vmem:[#allocation8 + $0xac8] sm:$0xff]
    %v1485 = vld [vmem:[#allocation8 + $0xad0] sm:$0xff]
    %v1486 = vld [vmem:[#allocation8 + $0xad8] sm:$0xff]
    %v1487 = vld [vmem:[#allocation8 + $0xae0] sm:$0xff]
    %v1488 = vld [vmem:[#allocation8 + $0xae8] sm:$0xff]
    %v1489 = vld [vmem:[#allocation8 + $0xaf0] sm:$0xff]
    %v1490 = vld [vmem:[#allocation8 + $0xaf8] sm:$0xff]
    %v1491 = vld [vmem:[#allocation8 + $0xb00] sm:$0xff]
    %v1492 = vld [vmem:[#allocation8 + $0xb08] sm:$0xff]
    %v1493 = vld [vmem:[#allocation8 + $0xb10] sm:$0xff]
    %v1494 = vld [vmem:[#allocation8 + $0xb18] sm:$0xff]
    %v1495 = vld [vmem:[#allocation8 + $0xb20] sm:$0xff]
    %v1496 = vld [vmem:[#allocation8 + $0xb28] sm:$0xff]
    %v1497 = vld [vmem:[#allocation8 + $0xb30] sm:$0xff]
    %v1498 = vld [vmem:[#allocation8 + $0xb38] sm:$0xff]
    %v1499 = vld [vmem:[#allocation8 + $0xb40] sm:$0xff]
    %v1500 = vld [vmem:[#allocation8 + $0xb48] sm:$0xff]
    %v1501 = vld [vmem:[#allocation8 + $0xb50] sm:$0xff]
    %v1502 = vld [vmem:[#allocation8 + $0xb58] sm:$0xff]
    %v1503 = vld [vmem:[#allocation8 + $0xb60] sm:$0xff]
    %v1504 = vld [vmem:[#allocation8 + $0xb68] sm:$0xff]
    %v1505 = vld [vmem:[#allocation8 + $0xb70] sm:$0xff]
    %v1506 = vld [vmem:[#allocation8 + $0xb78] sm:$0xff]
    %v1507 = vld [vmem:[#allocation8 + $0xb80] sm:$0xff]
    %v1508 = vld [vmem:[#allocation8 + $0xb88] sm:$0xff]
    %v1509 = vld [vmem:[#allocation8 + $0xb90] sm:$0xff]
    %v1510 = vld [vmem:[#allocation8 + $0xb98] sm:$0xff]
    %v1511 = vld [vmem:[#allocation8 + $0xba0] sm:$0xff]
    %v1512 = vld [vmem:[#allocation8 + $0xba8] sm:$0xff]
    %v1513 = vld [vmem:[#allocation8 + $0xbb0] sm:$0xff]
    %v1514 = vld [vmem:[#allocation8 + $0xbb8] sm:$0xff]
    %v1515 = vld [vmem:[#allocation8 + $0xbc0] sm:$0xff]
    %v1516 = vld [vmem:[#allocation8 + $0xbc8] sm:$0xff]
    %v1517 = vld [vmem:[#allocation8 + $0xbd0] sm:$0xff]
    %v1518 = vld [vmem:[#allocation8 + $0xbd8] sm:$0xff]
    %v1519 = vld [vmem:[#allocation8 + $0xbe0] sm:$0xff]
    %v1520 = vld [vmem:[#allocation8 + $0xbe8] sm:$0xff]
    %v1521 = vld [vmem:[#allocation8 + $0xbf0] sm:$0xff]
    %v1522 = vld [vmem:[#allocation8 + $0xbf8] sm:$0xff]
    %v1523 = vld [vmem:[#allocation8 + $0xc00] sm:$0xff]
    %v1524 = vld [vmem:[#allocation8 + $0xc08] sm:$0xff]
    %v1525 = vld [vmem:[#allocation8 + $0xc10] sm:$0xff]
    %v1526 = vld [vmem:[#allocation8 + $0xc18] sm:$0xff]
    %v1527 = vld [vmem:[#allocation8 + $0xc20] sm:$0xff]
    %v1528 = vld [vmem:[#allocation8 + $0xc28] sm:$0xff]
    %v1529 = vld [vmem:[#allocation8 + $0xc30] sm:$0xff]
    %v1530 = vld [vmem:[#allocation8 + $0xc38] sm:$0xff]
    %v1531 = vld [vmem:[#allocation8 + $0xc40] sm:$0xff]
    %v1532 = vld [vmem:[#allocation8 + $0xc48] sm:$0xff]
    %v1533 = vld [vmem:[#allocation8 + $0xc50] sm:$0xff]
    %v1534 = vld [vmem:[#allocation8 + $0xc58] sm:$0xff]
    %v1535 = vld [vmem:[#allocation8 + $0xc60] sm:$0xff]
    %v1536 = vld [vmem:[#allocation8 + $0xc68] sm:$0xff]
    %v1537 = vld [vmem:[#allocation8 + $0xc70] sm:$0xff]
    %v1538 = vld [vmem:[#allocation8 + $0xc78] sm:$0xff]
    %v1539 = vld [vmem:[#allocation8 + $0xc80] sm:$0xff]
    %v1540 = vld [vmem:[#allocation8 + $0xc88] sm:$0xff]
    %v1541 = vld [vmem:[#allocation8 + $0xc90] sm:$0xff]
    %v1542 = vld [vmem:[#allocation8 + $0xc98] sm:$0xff]
    %v1543 = vld [vmem:[#allocation8 + $0xca0] sm:$0xff]
    %v1544 = vld [vmem:[#allocation8 + $0xca8] sm:$0xff]
    %v1545 = vld [vmem:[#allocation8 + $0xcb0] sm:$0xff]
    %v1546 = vld [vmem:[#allocation8 + $0xcb8] sm:$0xff]
    %v1547 = vld [vmem:[#allocation8 + $0xcc0] sm:$0xff]
    %v1548 = vld [vmem:[#allocation8 + $0xcc8] sm:$0xff]
    %v1549 = vld [vmem:[#allocation8 + $0xcd0] sm:$0xff]
    %v1550 = vld [vmem:[#allocation8 + $0xcd8] sm:$0xff]
    %v1551 = vld [vmem:[#allocation8 + $0xce0] sm:$0xff]
    %v1552 = vld [vmem:[#allocation8 + $0xce8] sm:$0xff]
    %v1553 = vld [vmem:[#allocation8 + $0xcf0] sm:$0xff]
    %v1554 = vld [vmem:[#allocation8 + $0xcf8] sm:$0xff]
    %v1555 = vld [vmem:[#allocation8 + $0xd00] sm:$0xff]
    %v1556 = vld [vmem:[#allocation8 + $0xd08] sm:$0xff]
    %v1557 = vld [vmem:[#allocation8 + $0xd10] sm:$0xff]
    %v1558 = vld [vmem:[#allocation8 + $0xd18] sm:$0xff]
    %v1559 = vld [vmem:[#allocation8 + $0xd20] sm:$0xff]
    %v1560 = vld [vmem:[#allocation8 + $0xd28] sm:$0xff]
    %v1561 = vld [vmem:[#allocation8 + $0xd30] sm:$0xff]
    %v1562 = vld [vmem:[#allocation8 + $0xd38] sm:$0xff]
    %v1563 = vld [vmem:[#allocation8 + $0xd40] sm:$0xff]
    %v1564 = vld [vmem:[#allocation8 + $0xd48] sm:$0xff]
    %v1565 = vld [vmem:[#allocation8 + $0xd50] sm:$0xff]
    %v1566 = vld [vmem:[#allocation8 + $0xd58] sm:$0xff]
    %v1567 = vld [vmem:[#allocation8 + $0xd60] sm:$0xff]
    %v1568 = vld [vmem:[#allocation8 + $0xd68] sm:$0xff]
    %v1569 = vld [vmem:[#allocation8 + $0xd70] sm:$0xff]
    %v1570 = vld [vmem:[#allocation8 + $0xd78] sm:$0xff]
    %v1571 = vld [vmem:[#allocation8 + $0xd80] sm:$0xff]
    %v1572 = vld [vmem:[#allocation8 + $0xd88] sm:$0xff]
    %v1573 = vld [vmem:[#allocation8 + $0xd90] sm:$0xff]
    %v1574 = vld [vmem:[#allocation8 + $0xd98] sm:$0xff]
    %v1575 = vld [vmem:[#allocation8 + $0xda0] sm:$0xff]
    %v1576 = vld [vmem:[#allocation8 + $0xda8] sm:$0xff]
    %v1577 = vld [vmem:[#allocation8 + $0xdb0] sm:$0xff]
    %v1578 = vld [vmem:[#allocation8 + $0xdb8] sm:$0xff]
    %v1579 = vld [vmem:[#allocation8 + $0xdc0] sm:$0xff]
    %v1580 = vld [vmem:[#allocation8 + $0xdc8] sm:$0xff]
    %v1581 = vld [vmem:[#allocation8 + $0xdd0] sm:$0xff]
    %v1582 = vld [vmem:[#allocation8 + $0xdd8] sm:$0xff]
    %v1583 = vld [vmem:[#allocation8 + $0xde0] sm:$0xff]
    %v1584 = vld [vmem:[#allocation8 + $0xde8] sm:$0xff]
    %v1585 = vld [vmem:[#allocation8 + $0xdf0] sm:$0xff]
    %v1586 = vld [vmem:[#allocation8 + $0xdf8] sm:$0xff]
    %v1587 = vld [vmem:[#allocation8 + $0xe00] sm:$0xff]
    %v1588 = vld [vmem:[#allocation8 + $0xe08] sm:$0xff]
    %v1589 = vld [vmem:[#allocation8 + $0xe10] sm:$0xff]
    %v1590 = vld [vmem:[#allocation8 + $0xe18] sm:$0xff]
    %v1591 = vld [vmem:[#allocation8 + $0xe20] sm:$0xff]
    %v1592 = vld [vmem:[#allocation8 + $0xe28] sm:$0xff]
    %v1593 = vld [vmem:[#allocation8 + $0xe30] sm:$0xff]
    %v1594 = vld [vmem:[#allocation8 + $0xe38] sm:$0xff]
    %v1595 = vld [vmem:[#allocation8 + $0xe40] sm:$0xff]
    %v1596 = vld [vmem:[#allocation8 + $0xe48] sm:$0xff]
    %v1597 = vld [vmem:[#allocation8 + $0xe50] sm:$0xff]
    %v1598 = vld [vmem:[#allocation8 + $0xe58] sm:$0xff]
    %v1599 = vld [vmem:[#allocation8 + $0xe60] sm:$0xff]
    %v1600 = vld [vmem:[#allocation8 + $0xe68] sm:$0xff]
    %v1601 = vld [vmem:[#allocation8 + $0xe70] sm:$0xff]
    %v1602 = vld [vmem:[#allocation8 + $0xe78] sm:$0xff]
    %v1603 = vld [vmem:[#allocation8 + $0xe80] sm:$0xff]
    %v1604 = vld [vmem:[#allocation8 + $0xe88] sm:$0xff]
    %v1605 = vld [vmem:[#allocation8 + $0xe90] sm:$0xff]
    %v1606 = vld [vmem:[#allocation8 + $0xe98] sm:$0xff]
    %v1607 = vld [vmem:[#allocation8 + $0xea0] sm:$0xff]
    %v1608 = vld [vmem:[#allocation8 + $0xea8] sm:$0xff]
    %v1609 = vld [vmem:[#allocation8 + $0xeb0] sm:$0xff]
    %v1610 = vld [vmem:[#allocation8 + $0xeb8] sm:$0xff]
    %v1611 = vld [vmem:[#allocation8 + $0xec0] sm:$0xff]
    %v1612 = vld [vmem:[#allocation8 + $0xec8] sm:$0xff]
    %v1613 = vld [vmem:[#allocation8 + $0xed0] sm:$0xff]
    %v1614 = vld [vmem:[#allocation8 + $0xed8] sm:$0xff]
    %v1615 = vld [vmem:[#allocation8 + $0xee0] sm:$0xff]
    %v1616 = vld [vmem:[#allocation8 + $0xee8] sm:$0xff]
    %v1617 = vld [vmem:[#allocation8 + $0xef0] sm:$0xff]
    %v1618 = vld [vmem:[#allocation8 + $0xef8] sm:$0xff]
    %v1619 = vld [vmem:[#allocation8 + $0xf00] sm:$0xff]
    %v1620 = vld [vmem:[#allocation8 + $0xf08] sm:$0xff]
    %v1621 = vld [vmem:[#allocation8 + $0xf10] sm:$0xff]
    %v1622 = vld [vmem:[#allocation8 + $0xf18] sm:$0xff]
    %v1623 = vld [vmem:[#allocation8 + $0xf20] sm:$0xff]
    %v1624 = vld [vmem:[#allocation8 + $0xf28] sm:$0xff]
    %v1625 = vld [vmem:[#allocation8 + $0xf30] sm:$0xff]
    %v1626 = vld [vmem:[#allocation8 + $0xf38] sm:$0xff]
    %v1627 = vld [vmem:[#allocation8 + $0xf40] sm:$0xff]
    %v1628 = vld [vmem:[#allocation8 + $0xf48] sm:$0xff]
    %v1629 = vld [vmem:[#allocation8 + $0xf50] sm:$0xff]
    %v1630 = vld [vmem:[#allocation8 + $0xf58] sm:$0xff]
    %v1631 = vld [vmem:[#allocation8 + $0xf60] sm:$0xff]
    %v1632 = vld [vmem:[#allocation8 + $0xf68] sm:$0xff]
    %v1633 = vld [vmem:[#allocation8 + $0xf70] sm:$0xff]
    %v1634 = vld [vmem:[#allocation8 + $0xf78] sm:$0xff]
    %v1635 = vld [vmem:[#allocation8 + $0xf80] sm:$0xff]
    %v1636 = vld [vmem:[#allocation8 + $0xf88] sm:$0xff]
    %v1637 = vld [vmem:[#allocation8 + $0xf90] sm:$0xff]
    %v1638 = vld [vmem:[#allocation8 + $0xf98] sm:$0xff]
    %v1639 = vld [vmem:[#allocation8 + $0xfa0] sm:$0xff]
    %v1640 = vld [vmem:[#allocation8 + $0xfa8] sm:$0xff]
    %v1641 = vld [vmem:[#allocation8 + $0xfb0] sm:$0xff]
    %v1642 = vld [vmem:[#allocation8 + $0xfb8] sm:$0xff]
    %v1643 = vld [vmem:[#allocation8 + $0xfc0] sm:$0xff]
    %v1644 = vld [vmem:[#allocation8 + $0xfc8] sm:$0xff]
    %v1645 = vld [vmem:[#allocation8 + $0xfd0] sm:$0xff]
    %v1646 = vld [vmem:[#allocation8 + $0xfd8] sm:$0xff]
    %v1647 = vld [vmem:[#allocation8 + $0xfe0] sm:$0xff]
    %v1648 = vld [vmem:[#allocation8 + $0xfe8] sm:$0xff]
    %v1649 = vld [vmem:[#allocation8 + $0xff0] sm:$0xff]
    %v1650 = vld [vmem:[#allocation8 + $0xff8] sm:$0xff]
    %v1651 = vld [vmem:[#allocation8 + $0x1000] sm:$0xff]
    %v1652 = vld [vmem:[#allocation8 + $0x1008] sm:$0xff]
    %v1653 = vld [vmem:[#allocation8 + $0x1010] sm:$0xff]
    %v1654 = vld [vmem:[#allocation8 + $0x1018] sm:$0xff]
    %v1655 = vld [vmem:[#allocation8 + $0x1020] sm:$0xff]
    %v1656 = vld [vmem:[#allocation8 + $0x1028] sm:$0xff]
    %v1657 = vld [vmem:[#allocation8 + $0x1030] sm:$0xff]
    %v1658 = vld [vmem:[#allocation8 + $0x1038] sm:$0xff]
    %v1659 = vld [vmem:[#allocation8 + $0x1040] sm:$0xff]
    %v1660 = vld [vmem:[#allocation8 + $0x1048] sm:$0xff]
    %v1661 = vld [vmem:[#allocation8 + $0x1050] sm:$0xff]
    %v1662 = vld [vmem:[#allocation8 + $0x1058] sm:$0xff]
    %v1663 = vld [vmem:[#allocation8 + $0x1060] sm:$0xff]
    %v1664 = vld [vmem:[#allocation8 + $0x1068] sm:$0xff]
    %v1665 = vld [vmem:[#allocation8 + $0x1070] sm:$0xff]
    %v1666 = vld [vmem:[#allocation8 + $0x1078] sm:$0xff]
    %v1667 = vld [vmem:[#allocation8 + $0x1080] sm:$0xff]
    %v1668 = vld [vmem:[#allocation8 + $0x1088] sm:$0xff]
    %v1669 = vld [vmem:[#allocation8 + $0x1090] sm:$0xff]
    %v1670 = vld [vmem:[#allocation8 + $0x1098] sm:$0xff]
    %v1671 = vld [vmem:[#allocation8 + $0x10a0] sm:$0xff]
    %v1672 = vld [vmem:[#allocation8 + $0x10a8] sm:$0xff]
    %v1673 = vld [vmem:[#allocation8 + $0x10b0] sm:$0xff]
    %v1674 = vld [vmem:[#allocation8 + $0x10b8] sm:$0xff]
    %v1675 = vld [vmem:[#allocation8 + $0x10c0] sm:$0xff]
    %v1676 = vld [vmem:[#allocation8 + $0x10c8] sm:$0xff]
    %v1677 = vld [vmem:[#allocation8 + $0x10d0] sm:$0xff]
    %v1678 = vld [vmem:[#allocation8 + $0x10d8] sm:$0xff]
    %v1679 = vld [vmem:[#allocation8 + $0x10e0] sm:$0xff]
    %v1680 = vld [vmem:[#allocation8 + $0x10e8] sm:$0xff]
    %v1681 = vld [vmem:[#allocation8 + $0x10f0] sm:$0xff]
    %v1682 = vld [vmem:[#allocation8 + $0x10f8] sm:$0xff]
    %v1683 = vld [vmem:[#allocation8 + $0x1100] sm:$0xff]
    %v1684 = vld [vmem:[#allocation8 + $0x1108] sm:$0xff]
    %v1685 = vld [vmem:[#allocation8 + $0x1110] sm:$0xff]
    %v1686 = vld [vmem:[#allocation8 + $0x1118] sm:$0xff]
    %v1687 = vld [vmem:[#allocation8 + $0x1120] sm:$0xff]
    %v1688 = vld [vmem:[#allocation8 + $0x1128] sm:$0xff]
    %v1689 = vld [vmem:[#allocation8 + $0x1130] sm:$0xff]
    %v1690 = vld [vmem:[#allocation8 + $0x1138] sm:$0xff]
    %v1691 = vld [vmem:[#allocation8 + $0x1140] sm:$0xff]
    %v1692 = vld [vmem:[#allocation8 + $0x1148] sm:$0xff]
    %v1693 = vld [vmem:[#allocation8 + $0x1150] sm:$0xff]
    %v1694 = vld [vmem:[#allocation8 + $0x1158] sm:$0xff]
    %v1695 = vld [vmem:[#allocation8 + $0x1160] sm:$0xff]
    %v1696 = vld [vmem:[#allocation8 + $0x1168] sm:$0xff]
    %v1697 = vld [vmem:[#allocation8 + $0x1170] sm:$0xff]
    %v1698 = vld [vmem:[#allocation8 + $0x1178] sm:$0xff]
    %v1699 = vld [vmem:[#allocation8 + $0x1180] sm:$0xff]
    %v1700 = vld [vmem:[#allocation8 + $0x1188] sm:$0xff]
    %v1701 = vld [vmem:[#allocation8 + $0x1190] sm:$0xff]
    %v1702 = vld [vmem:[#allocation8 + $0x1198] sm:$0xff]
    %v1703 = vld [vmem:[#allocation8 + $0x11a0] sm:$0xff]
    %v1704 = vld [vmem:[#allocation8 + $0x11a8] sm:$0xff]
    %v1705 = vld [vmem:[#allocation8 + $0x11b0] sm:$0xff]
    %v1706 = vld [vmem:[#allocation8 + $0x11b8] sm:$0xff]
    %v1707 = vld [vmem:[#allocation8 + $0x11c0] sm:$0xff]
    %v1708 = vld [vmem:[#allocation8 + $0x11c8] sm:$0xff]
    %v1709 = vld [vmem:[#allocation8 + $0x11d0] sm:$0xff]
    %v1710 = vld [vmem:[#allocation8 + $0x11d8] sm:$0xff]
    %v1711 = vld [vmem:[#allocation8 + $0x11e0] sm:$0xff]
    %v1712 = vld [vmem:[#allocation8 + $0x11e8] sm:$0xff]
    %v1713 = vld [vmem:[#allocation8 + $0x11f0] sm:$0xff]
    %v1714 = vld [vmem:[#allocation8 + $0x11f8] sm:$0xff]
    %v1715 = vld [vmem:[#allocation8 + $0x1200] sm:$0xff]
    %v1716 = vld [vmem:[#allocation8 + $0x1208] sm:$0xff]
    %v1717 = vld [vmem:[#allocation8 + $0x1210] sm:$0xff]
    %v1718 = vld [vmem:[#allocation8 + $0x1218] sm:$0xff]
    %v1719 = vld [vmem:[#allocation8 + $0x1220] sm:$0xff]
    %v1720 = vld [vmem:[#allocation8 + $0x1228] sm:$0xff]
    %v1721 = vld [vmem:[#allocation8 + $0x1230] sm:$0xff]
    %v1722 = vld [vmem:[#allocation8 + $0x1238] sm:$0xff]
    %v1723 = vld [vmem:[#allocation8 + $0x1240] sm:$0xff]
    %v1724 = vld [vmem:[#allocation8 + $0x1248] sm:$0xff]
    %v1725 = vld [vmem:[#allocation8 + $0x1250] sm:$0xff]
    %v1726 = vld [vmem:[#allocation8 + $0x1258] sm:$0xff]
    %v1727 = vld [vmem:[#allocation8 + $0x1260] sm:$0xff]
    %v1728 = vld [vmem:[#allocation8 + $0x1268] sm:$0xff]
    %v1729 = vld [vmem:[#allocation8 + $0x1270] sm:$0xff]
    %v1730 = vld [vmem:[#allocation8 + $0x1278] sm:$0xff]
    %v1731 = vld [vmem:[#allocation8 + $0x1280] sm:$0xff]
    %v1732 = vld [vmem:[#allocation8 + $0x1288] sm:$0xff]
    %v1733 = vld [vmem:[#allocation8 + $0x1290] sm:$0xff]
    %v1734 = vld [vmem:[#allocation8 + $0x1298] sm:$0xff]
    %v1735 = vld [vmem:[#allocation8 + $0x12a0] sm:$0xff]
    %v1736 = vld [vmem:[#allocation8 + $0x12a8] sm:$0xff]
    %v1737 = vld [vmem:[#allocation8 + $0x12b0] sm:$0xff]
    %v1738 = vld [vmem:[#allocation8 + $0x12b8] sm:$0xff]
    %v1739 = vld [vmem:[#allocation8 + $0x12c0] sm:$0xff]
    %v1740 = vld [vmem:[#allocation8 + $0x12c8] sm:$0xff]
    %v1741 = vld [vmem:[#allocation8 + $0x12d0] sm:$0xff]
    %v1742 = vld [vmem:[#allocation8 + $0x12d8] sm:$0xff]
    %v1743 = vld [vmem:[#allocation8 + $0x12e0] sm:$0xff]
    %v1744 = vld [vmem:[#allocation8 + $0x12e8] sm:$0xff]
    %v1745 = vld [vmem:[#allocation8 + $0x12f0] sm:$0xff]
    %v1746 = vld [vmem:[#allocation8 + $0x12f8] sm:$0xff]
    %v1747 = vld [vmem:[#allocation8 + $0x1300] sm:$0xff]
    %v1748 = vld [vmem:[#allocation8 + $0x1308] sm:$0xff]
    %v1749 = vld [vmem:[#allocation8 + $0x1310] sm:$0xff]
    %v1750 = vld [vmem:[#allocation8 + $0x1318] sm:$0xff]
    %v1751 = vld [vmem:[#allocation8 + $0x1320] sm:$0xff]
    %v1752 = vld [vmem:[#allocation8 + $0x1328] sm:$0xff]
    %v1753 = vld [vmem:[#allocation8 + $0x1330] sm:$0xff]
    %v1754 = vld [vmem:[#allocation8 + $0x1338] sm:$0xff]
    %v1755 = vld [vmem:[#allocation8 + $0x1340] sm:$0xff]
    %v1756 = vld [vmem:[#allocation8 + $0x1348] sm:$0xff]
    %v1757 = vld [vmem:[#allocation8 + $0x1350] sm:$0xff]
    %v1758 = vld [vmem:[#allocation8 + $0x1358] sm:$0xff]
    %v1759 = vld [vmem:[#allocation8 + $0x1360] sm:$0xff]
    %v1760 = vld [vmem:[#allocation8 + $0x1368] sm:$0xff]
    %v1761 = vld [vmem:[#allocation8 + $0x1370] sm:$0xff]
    %v1762 = vld [vmem:[#allocation8 + $0x1378] sm:$0xff]
    %v1763 = vld [vmem:[#allocation8 + $0x1380] sm:$0xff]
    %v1764 = vld [vmem:[#allocation8 + $0x1388] sm:$0xff]
    %v1765 = vld [vmem:[#allocation8 + $0x1390] sm:$0xff]
    %v1766 = vld [vmem:[#allocation8 + $0x1398] sm:$0xff]
    %v1767 = vld [vmem:[#allocation8 + $0x13a0] sm:$0xff]
    %v1768 = vld [vmem:[#allocation8 + $0x13a8] sm:$0xff]
    %v1769 = vld [vmem:[#allocation8 + $0x13b0] sm:$0xff]
    %v1770 = vld [vmem:[#allocation8 + $0x13b8] sm:$0xff]
    %v1771 = vld [vmem:[#allocation8 + $0x13c0] sm:$0xff]
    %v1772 = vld [vmem:[#allocation8 + $0x13c8] sm:$0xff]
    %v1773 = vld [vmem:[#allocation8 + $0x13d0] sm:$0xff]
    %v1774 = vld [vmem:[#allocation8 + $0x13d8] sm:$0xff]
    %v1775 = vld [vmem:[#allocation8 + $0x13e0] sm:$0xff]
    %v1776 = vld [vmem:[#allocation8 + $0x13e8] sm:$0xff]
    %v1777 = vld [vmem:[#allocation8 + $0x13f0] sm:$0xff]
    %v1778 = vld [vmem:[#allocation8 + $0x13f8] sm:$0xff]
    %v1779 = vld [vmem:[#allocation8 + $0x1400] sm:$0xff]
    %v1780 = vld [vmem:[#allocation8 + $0x1408] sm:$0xff]
    %v1781 = vld [vmem:[#allocation8 + $0x1410] sm:$0xff]
    %v1782 = vld [vmem:[#allocation8 + $0x1418] sm:$0xff]
    %v1783 = vld [vmem:[#allocation8 + $0x1420] sm:$0xff]
    %v1784 = vld [vmem:[#allocation8 + $0x1428] sm:$0xff]
    %v1785 = vld [vmem:[#allocation8 + $0x1430] sm:$0xff]
    %v1786 = vld [vmem:[#allocation8 + $0x1438] sm:$0xff]
    %v1787 = vld [vmem:[#allocation8 + $0x1440] sm:$0xff]
    %v1788 = vld [vmem:[#allocation8 + $0x1448] sm:$0xff]
    %v1789 = vld [vmem:[#allocation8 + $0x1450] sm:$0xff]
    %v1790 = vld [vmem:[#allocation8 + $0x1458] sm:$0xff]
    %v1791 = vld [vmem:[#allocation8 + $0x1460] sm:$0xff]
    %v1792 = vld [vmem:[#allocation8 + $0x1468] sm:$0xff]
    %v1793 = vld [vmem:[#allocation8 + $0x1470] sm:$0xff]
    %v1794 = vld [vmem:[#allocation8 + $0x1478] sm:$0xff]
    %v1795 = vld [vmem:[#allocation8 + $0x1480] sm:$0xff]
    %v1796 = vld [vmem:[#allocation8 + $0x1488] sm:$0xff]
    %v1797 = vld [vmem:[#allocation8 + $0x1490] sm:$0xff]
    %v1798 = vld [vmem:[#allocation8 + $0x1498] sm:$0xff]
    %v1799 = vld [vmem:[#allocation8 + $0x14a0] sm:$0xff]
    %v1800 = vld [vmem:[#allocation8 + $0x14a8] sm:$0xff]
    %v1801 = vld [vmem:[#allocation8 + $0x14b0] sm:$0xff]
    %v1802 = vld [vmem:[#allocation8 + $0x14b8] sm:$0xff]
    %v1803 = vld [vmem:[#allocation8 + $0x14c0] sm:$0xff]
    %v1804 = vld [vmem:[#allocation8 + $0x14c8] sm:$0xff]
    %v1805 = vld [vmem:[#allocation8 + $0x14d0] sm:$0xff]
    %v1806 = vld [vmem:[#allocation8 + $0x14d8] sm:$0xff]
    %v1807 = vld [vmem:[#allocation8 + $0x14e0] sm:$0xff]
    %v1808 = vld [vmem:[#allocation8 + $0x14e8] sm:$0xff]
    %v1809 = vld [vmem:[#allocation8 + $0x14f0] sm:$0xff]
    %v1810 = vld [vmem:[#allocation8 + $0x14f8] sm:$0xff]
    %v1811 = vld [vmem:[#allocation8 + $0x1500] sm:$0xff]
    %v1812 = vld [vmem:[#allocation8 + $0x1508] sm:$0xff]
    %v1813 = vld [vmem:[#allocation8 + $0x1510] sm:$0xff]
    %v1814 = vld [vmem:[#allocation8 + $0x1518] sm:$0xff]
    %v1815 = vld [vmem:[#allocation8 + $0x1520] sm:$0xff]
    %v1816 = vld [vmem:[#allocation8 + $0x1528] sm:$0xff]
    %v1817 = vld [vmem:[#allocation8 + $0x1530] sm:$0xff]
    %v1818 = vld [vmem:[#allocation8 + $0x1538] sm:$0xff]
    %v1819 = vld [vmem:[#allocation8 + $0x1540] sm:$0xff]
    %v1820 = vld [vmem:[#allocation8 + $0x1548] sm:$0xff]
    %v1821 = vld [vmem:[#allocation8 + $0x1550] sm:$0xff]
    %v1822 = vld [vmem:[#allocation8 + $0x1558] sm:$0xff]
    %v1823 = vld [vmem:[#allocation8 + $0x1560] sm:$0xff]
    %v1824 = vld [vmem:[#allocation8 + $0x1568] sm:$0xff]
    %v1825 = vld [vmem:[#allocation8 + $0x1570] sm:$0xff]
    %v1826 = vld [vmem:[#allocation8 + $0x1578] sm:$0xff]
    %v1827 = vld [vmem:[#allocation8 + $0x1580] sm:$0xff]
    %v1828 = vld [vmem:[#allocation8 + $0x1588] sm:$0xff]
    %v1829 = vld [vmem:[#allocation8 + $0x1590] sm:$0xff]
    %v1830 = vld [vmem:[#allocation8 + $0x1598] sm:$0xff]
    %v1831 = vld [vmem:[#allocation8 + $0x15a0] sm:$0xff]
    %v1832 = vld [vmem:[#allocation8 + $0x15a8] sm:$0xff]
    %v1833 = vld [vmem:[#allocation8 + $0x15b0] sm:$0xff]
    %v1834 = vld [vmem:[#allocation8 + $0x15b8] sm:$0xff]
    %v1835 = vld [vmem:[#allocation8 + $0x15c0] sm:$0xff]
    %v1836 = vld [vmem:[#allocation8 + $0x15c8] sm:$0xff]
    %v1837 = vld [vmem:[#allocation8 + $0x15d0] sm:$0xff]
    %v1838 = vld [vmem:[#allocation8 + $0x15d8] sm:$0xff]
    %v1839 = vld [vmem:[#allocation8 + $0x15e0] sm:$0xff]
    %v1840 = vld [vmem:[#allocation8 + $0x15e8] sm:$0xff]
    %v1841 = vld [vmem:[#allocation8 + $0x15f0] sm:$0xff]
    %v1842 = vld [vmem:[#allocation8 + $0x15f8] sm:$0xff]
    %v1843 = vld [vmem:[#allocation8 + $0x1600] sm:$0xff]
    %v1844 = vld [vmem:[#allocation8 + $0x1608] sm:$0xff]
    %v1845 = vld [vmem:[#allocation8 + $0x1610] sm:$0xff]
    %v1846 = vld [vmem:[#allocation8 + $0x1618] sm:$0xff]
    %v1847 = vld [vmem:[#allocation8 + $0x1620] sm:$0xff]
    %v1848 = vld [vmem:[#allocation8 + $0x1628] sm:$0xff]
    %v1849 = vld [vmem:[#allocation8 + $0x1630] sm:$0xff]
    %v1850 = vld [vmem:[#allocation8 + $0x1638] sm:$0xff]
    %v1851 = vld [vmem:[#allocation8 + $0x1640] sm:$0xff]
    %v1852 = vld [vmem:[#allocation8 + $0x1648] sm:$0xff]
    %v1853 = vld [vmem:[#allocation8 + $0x1650] sm:$0xff]
    %v1854 = vld [vmem:[#allocation8 + $0x1658] sm:$0xff]
    %v1855 = vld [vmem:[#allocation8 + $0x1660] sm:$0xff]
    %v1856 = vld [vmem:[#allocation8 + $0x1668] sm:$0xff]
    %v1857 = vld [vmem:[#allocation8 + $0x1670] sm:$0xff]
    %v1858 = vld [vmem:[#allocation8 + $0x1678] sm:$0xff]
    %v1859 = vld [vmem:[#allocation8 + $0x1680] sm:$0x77]
    %v1860 = vld [vmem:[#allocation8 + $0x1688] sm:$0x77]
    %v1861 = vld [vmem:[#allocation8 + $0x1690] sm:$0x77]
    %v1862 = vld [vmem:[#allocation8 + $0x1698] sm:$0x77]
    %v1863 = vld [vmem:[#allocation8 + $0x16a0] sm:$0x77]
    %v1864 = vld [vmem:[#allocation8 + $0x16a8] sm:$0x77]
    %v1865 = vld [vmem:[#allocation8 + $0x16b0] sm:$0x77]
    %v1866 = vld [vmem:[#allocation8 + $0x16b8] sm:$0x77]
    %v1867 = vld [vmem:[#allocation8 + $0x16c0] sm:$0x77]
    %v1868 = vld [vmem:[#allocation8 + $0x16c8] sm:$0x77]
    %v1869 = vld [vmem:[#allocation8 + $0x16d0] sm:$0x77]
    %v1870 = vld [vmem:[#allocation8 + $0x16d8] sm:$0x77]
    %v1873 = vunpack.c.l.s4 1966171168
    %v1874 = vunpack.c.0.s8 %v1873
    %v1875 = vlaneseq
    %v1876 = vshrl.u32 %v1875, 7
    %v1877 = vsub.s32 %v1874, %v1876
    %v1878 = vrot.slane %v1138, %v1877
    %v1879 = vcombine.high %v1878, %v1878
    %v1881 = vunpack.c.l.s4 1966171168
    %v1882 = vunpack.c.0.s8 %v1881
    %v1883 = vlaneseq
    %v1884 = vshrl.u32 %v1883, 7
    %v1885 = vsub.s32 %v1882, %v1884
    %v1886 = vrot.slane %v1878, %v1885
    %v1888 = vunpack.c.l.s4 1966171168
    %v1889 = vunpack.c.0.s8 %v1888
    %v1890 = vlaneseq
    %v1891 = vshrl.u32 %v1890, 7
    %v1892 = vsub.s32 %v1889, %v1891
    %v1893 = vrot.slane %v1879, %v1892
    %v1894 = vcombine.high %v1886, %v1886
    %v1895 = vcombine.high %v1893, %v1893
    %v2631 = vunpack.c.l.b16 %v1139
    %v2632 = vunpack.c.h.b16 %v1139
    %v2633 = vunpack.c.l.b16 %v1140
    %v2634 = vunpack.c.h.b16 %v1140
    %v2635 = vunpack.c.l.b16 %v1141
    %v2636 = vunpack.c.h.b16 %v1141
    %v2637 = vunpack.c.l.b16 %v1142
    %v2638 = vunpack.c.h.b16 %v1142
    %v2639 = vunpack.c.l.b16 %v1143
    %v2640 = vunpack.c.h.b16 %v1143
    %v2641 = vunpack.c.l.b16 %v1144
    %v2642 = vunpack.c.h.b16 %v1144
    %v2643 = vunpack.c.l.b16 %v1145
    %v2644 = vunpack.c.h.b16 %v1145
    %v2645 = vunpack.c.l.b16 %v1146
    %v2646 = vunpack.c.h.b16 %v1146
    %v2647 = vunpack.c.l.b16 %v1147
    %v2648 = vunpack.c.h.b16 %v1147
    %v2649 = vunpack.c.l.b16 %v1148
    %v2650 = vunpack.c.h.b16 %v1148
    %v2651 = vunpack.c.l.b16 %v1149
    %v2652 = vunpack.c.h.b16 %v1149
    %v2653 = vunpack.c.l.b16 %v1150
    %v2654 = vunpack.c.h.b16 %v1150
    %v2655 = vunpack.c.l.b16 %v1151
    %v2656 = vunpack.c.h.b16 %v1151
    %v2657 = vunpack.c.l.b16 %v1152
    %v2658 = vunpack.c.h.b16 %v1152
    %v2659 = vunpack.c.l.b16 %v1153
    %v2660 = vunpack.c.h.b16 %v1153
    %v2661 = vunpack.c.l.b16 %v1154
    %v2662 = vunpack.c.h.b16 %v1154
    %v2663 = vunpack.c.l.b16 %v1155
    %v2664 = vunpack.c.h.b16 %v1155
    %v2665 = vunpack.c.l.b16 %v1156
    %v2666 = vunpack.c.h.b16 %v1156
    %v2667 = vunpack.c.l.b16 %v1157
    %v2668 = vunpack.c.h.b16 %v1157
    %v2669 = vunpack.c.l.b16 %v1158
    %v2670 = vunpack.c.h.b16 %v1158
    %v2671 = vunpack.c.l.b16 %v1159
    %v2672 = vunpack.c.h.b16 %v1159
    %v2673 = vunpack.c.l.b16 %v1160
    %v2674 = vunpack.c.h.b16 %v1160
    %v2675 = vunpack.c.l.b16 %v1161
    %v2676 = vunpack.c.h.b16 %v1161
    %v2677 = vunpack.c.l.b16 %v1162
    %v2678 = vunpack.c.h.b16 %v1162
    %v2679 = vunpack.c.l.b16 %v1163
    %v2680 = vunpack.c.h.b16 %v1163
    %v2681 = vunpack.c.l.b16 %v1164
    %v2682 = vunpack.c.h.b16 %v1164
    %v2683 = vunpack.c.l.b16 %v1165
    %v2684 = vunpack.c.h.b16 %v1165
    %v2685 = vunpack.c.l.b16 %v1166
    %v2686 = vunpack.c.h.b16 %v1166
    %v2687 = vunpack.c.l.b16 %v1167
    %v2688 = vunpack.c.h.b16 %v1167
    %v2689 = vunpack.c.l.b16 %v1168
    %v2690 = vunpack.c.h.b16 %v1168
    %v2691 = vunpack.c.l.b16 %v1169
    %v2692 = vunpack.c.h.b16 %v1169
    %v2693 = vunpack.c.l.b16 %v1170
    %v2694 = vunpack.c.h.b16 %v1170
    %v2695 = vunpack.c.l.b16 %v1171
    %v2696 = vunpack.c.h.b16 %v1171
    %v2697 = vunpack.c.l.b16 %v1172
    %v2698 = vunpack.c.h.b16 %v1172
    %v2699 = vunpack.c.l.b16 %v1173
    %v2700 = vunpack.c.h.b16 %v1173
    %v2701 = vunpack.c.l.b16 %v1174
    %v2702 = vunpack.c.h.b16 %v1174
    %v2703 = vunpack.c.l.b16 %v1175
    %v2704 = vunpack.c.h.b16 %v1175
    %v2705 = vunpack.c.l.b16 %v1176
    %v2706 = vunpack.c.h.b16 %v1176
    %v2707 = vunpack.c.l.b16 %v1177
    %v2708 = vunpack.c.h.b16 %v1177
    %v2709 = vunpack.c.l.b16 %v1178
    %v2710 = vunpack.c.h.b16 %v1178
    %v2711 = vunpack.c.l.b16 %v1179
    %v2712 = vunpack.c.h.b16 %v1179
    %v2713 = vunpack.c.l.b16 %v1180
    %v2714 = vunpack.c.h.b16 %v1180
    %v2715 = vunpack.c.l.b16 %v1181
    %v2716 = vunpack.c.h.b16 %v1181
    %v2717 = vunpack.c.l.b16 %v1182
    %v2718 = vunpack.c.h.b16 %v1182
    %v2719 = vunpack.c.l.b16 %v1183
    %v2720 = vunpack.c.h.b16 %v1183
    %v2721 = vunpack.c.l.b16 %v1184
    %v2722 = vunpack.c.h.b16 %v1184
    %v2723 = vunpack.c.l.b16 %v1185
    %v2724 = vunpack.c.h.b16 %v1185
    %v2725 = vunpack.c.l.b16 %v1186
    %v2726 = vunpack.c.h.b16 %v1186
    %v2727 = vunpack.c.l.b16 %v1187
    %v2728 = vunpack.c.h.b16 %v1187
    %v2729 = vunpack.c.l.b16 %v1188
    %v2730 = vunpack.c.h.b16 %v1188
    %v2731 = vunpack.c.l.b16 %v1189
    %v2732 = vunpack.c.h.b16 %v1189
    %v2733 = vunpack.c.l.b16 %v1190
    %v2734 = vunpack.c.h.b16 %v1190
    %v2735 = vunpack.c.l.b16 %v1191
    %v2736 = vunpack.c.h.b16 %v1191
    %v2737 = vunpack.c.l.b16 %v1192
    %v2738 = vunpack.c.h.b16 %v1192
    %v2739 = vunpack.c.l.b16 %v1193
    %v2740 = vunpack.c.h.b16 %v1193
    %v2741 = vunpack.c.l.b16 %v1194
    %v2742 = vunpack.c.h.b16 %v1194
    %v2743 = vunpack.c.l.b16 %v1195
    %v2744 = vunpack.c.h.b16 %v1195
    %v2745 = vunpack.c.l.b16 %v1196
    %v2746 = vunpack.c.h.b16 %v1196
    %v2747 = vunpack.c.l.b16 %v1197
    %v2748 = vunpack.c.h.b16 %v1197
    %v2749 = vunpack.c.l.b16 %v1198
    %v2750 = vunpack.c.h.b16 %v1198
    %v2751 = vunpack.c.l.b16 %v1199
    %v2752 = vunpack.c.h.b16 %v1199
    %v2753 = vunpack.c.l.b16 %v1200
    %v2754 = vunpack.c.h.b16 %v1200
    %v2755 = vunpack.c.l.b16 %v1201
    %v2756 = vunpack.c.h.b16 %v1201
    %v2757 = vunpack.c.l.b16 %v1202
    %v2758 = vunpack.c.h.b16 %v1202
    %v2759 = vunpack.c.l.b16 %v1203
    %v2760 = vunpack.c.h.b16 %v1203
    %v2761 = vunpack.c.l.b16 %v1204
    %v2762 = vunpack.c.h.b16 %v1204
    %v2763 = vunpack.c.l.b16 %v1205
    %v2764 = vunpack.c.h.b16 %v1205
    %v2765 = vunpack.c.l.b16 %v1206
    %v2766 = vunpack.c.h.b16 %v1206
    %v2767 = vunpack.c.l.b16 %v1207
    %v2768 = vunpack.c.h.b16 %v1207
    %v2769 = vunpack.c.l.b16 %v1208
    %v2770 = vunpack.c.h.b16 %v1208
    %v2771 = vunpack.c.l.b16 %v1209
    %v2772 = vunpack.c.h.b16 %v1209
    %v2773 = vunpack.c.l.b16 %v1210
    %v2774 = vunpack.c.h.b16 %v1210
    %v2775 = vunpack.c.l.b16 %v1211
    %v2776 = vunpack.c.h.b16 %v1211
    %v2777 = vunpack.c.l.b16 %v1212
    %v2778 = vunpack.c.h.b16 %v1212
    %v2779 = vunpack.c.l.b16 %v1213
    %v2780 = vunpack.c.h.b16 %v1213
    %v2781 = vunpack.c.l.b16 %v1214
    %v2782 = vunpack.c.h.b16 %v1214
    %v2783 = vunpack.c.l.b16 %v1215
    %v2784 = vunpack.c.h.b16 %v1215
    %v2785 = vunpack.c.l.b16 %v1216
    %v2786 = vunpack.c.h.b16 %v1216
    %v2787 = vunpack.c.l.b16 %v1217
    %v2788 = vunpack.c.h.b16 %v1217
    %v2789 = vunpack.c.l.b16 %v1218
    %v2790 = vunpack.c.h.b16 %v1218
    %v2791 = vunpack.c.l.b16 %v1219
    %v2792 = vunpack.c.h.b16 %v1219
    %v2793 = vunpack.c.l.b16 %v1220
    %v2794 = vunpack.c.h.b16 %v1220
    %v2795 = vunpack.c.l.b16 %v1221
    %v2796 = vunpack.c.h.b16 %v1221
    %v2797 = vunpack.c.l.b16 %v1222
    %v2798 = vunpack.c.h.b16 %v1222
    %v2799 = vunpack.c.l.b16 %v1223
    %v2800 = vunpack.c.h.b16 %v1223
    %v2801 = vunpack.c.l.b16 %v1224
    %v2802 = vunpack.c.h.b16 %v1224
    %v2803 = vunpack.c.l.b16 %v1225
    %v2804 = vunpack.c.h.b16 %v1225
    %v2805 = vunpack.c.l.b16 %v1226
    %v2806 = vunpack.c.h.b16 %v1226
    %v2807 = vunpack.c.l.b16 %v1227
    %v2808 = vunpack.c.h.b16 %v1227
    %v2809 = vunpack.c.l.b16 %v1228
    %v2810 = vunpack.c.h.b16 %v1228
    %v2811 = vunpack.c.l.b16 %v1229
    %v2812 = vunpack.c.h.b16 %v1229
    %v2813 = vunpack.c.l.b16 %v1230
    %v2814 = vunpack.c.h.b16 %v1230
    %v2815 = vunpack.c.l.b16 %v1231
    %v2816 = vunpack.c.h.b16 %v1231
    %v2817 = vunpack.c.l.b16 %v1232
    %v2818 = vunpack.c.h.b16 %v1232
    %v2819 = vunpack.c.l.b16 %v1233
    %v2820 = vunpack.c.h.b16 %v1233
    %v2821 = vunpack.c.l.b16 %v1234
    %v2822 = vunpack.c.h.b16 %v1234
    %v2823 = vunpack.c.l.b16 %v1235
    %v2824 = vunpack.c.h.b16 %v1235
    %v2825 = vunpack.c.l.b16 %v1236
    %v2826 = vunpack.c.h.b16 %v1236
    %v2827 = vunpack.c.l.b16 %v1237
    %v2828 = vunpack.c.h.b16 %v1237
    %v2829 = vunpack.c.l.b16 %v1238
    %v2830 = vunpack.c.h.b16 %v1238
    %v2831 = vunpack.c.l.b16 %v1239
    %v2832 = vunpack.c.h.b16 %v1239
    %v2833 = vunpack.c.l.b16 %v1240
    %v2834 = vunpack.c.h.b16 %v1240
    %v2835 = vunpack.c.l.b16 %v1241
    %v2836 = vunpack.c.h.b16 %v1241
    %v2837 = vunpack.c.l.b16 %v1242
    %v2838 = vunpack.c.h.b16 %v1242
    %v2839 = vunpack.c.l.b16 %v1243
    %v2840 = vunpack.c.h.b16 %v1243
    %v2841 = vunpack.c.l.b16 %v1244
    %v2842 = vunpack.c.h.b16 %v1244
    %v2843 = vunpack.c.l.b16 %v1245
    %v2844 = vunpack.c.h.b16 %v1245
    %v2845 = vunpack.c.l.b16 %v1246
    %v2846 = vunpack.c.h.b16 %v1246
    %v2847 = vunpack.c.l.b16 %v1247
    %v2848 = vunpack.c.h.b16 %v1247
    %v2849 = vunpack.c.l.b16 %v1248
    %v2850 = vunpack.c.h.b16 %v1248
    %v2851 = vunpack.c.l.b16 %v1249
    %v2852 = vunpack.c.h.b16 %v1249
    %v2853 = vunpack.c.l.b16 %v1250
    %v2854 = vunpack.c.h.b16 %v1250
    %v2855 = vunpack.c.l.b16 %v1251
    %v2856 = vunpack.c.h.b16 %v1251
    %v2857 = vunpack.c.l.b16 %v1252
    %v2858 = vunpack.c.h.b16 %v1252
    %v2859 = vunpack.c.l.b16 %v1253
    %v2860 = vunpack.c.h.b16 %v1253
    %v2861 = vunpack.c.l.b16 %v1254
    %v2862 = vunpack.c.h.b16 %v1254
    %v2863 = vunpack.c.l.b16 %v1255
    %v2864 = vunpack.c.h.b16 %v1255
    %v2865 = vunpack.c.l.b16 %v1256
    %v2866 = vunpack.c.h.b16 %v1256
    %v2867 = vunpack.c.l.b16 %v1257
    %v2868 = vunpack.c.h.b16 %v1257
    %v2869 = vunpack.c.l.b16 %v1258
    %v2870 = vunpack.c.h.b16 %v1258
    %v2871 = vunpack.c.l.b16 %v1259
    %v2872 = vunpack.c.h.b16 %v1259
    %v2873 = vunpack.c.l.b16 %v1260
    %v2874 = vunpack.c.h.b16 %v1260
    %v2875 = vunpack.c.l.b16 %v1261
    %v2876 = vunpack.c.h.b16 %v1261
    %v2877 = vunpack.c.l.b16 %v1262
    %v2878 = vunpack.c.h.b16 %v1262
    %v2879 = vunpack.c.l.b16 %v1263
    %v2880 = vunpack.c.h.b16 %v1263
    %v2881 = vunpack.c.l.b16 %v1264
    %v2882 = vunpack.c.h.b16 %v1264
    %v2883 = vunpack.c.l.b16 %v1265
    %v2884 = vunpack.c.h.b16 %v1265
    %v2885 = vunpack.c.l.b16 %v1266
    %v2886 = vunpack.c.h.b16 %v1266
    %v2887 = vunpack.c.l.b16 %v1267
    %v2888 = vunpack.c.h.b16 %v1267
    %v2889 = vunpack.c.l.b16 %v1268
    %v2890 = vunpack.c.h.b16 %v1268
    %v2891 = vunpack.c.l.b16 %v1269
    %v2892 = vunpack.c.h.b16 %v1269
    %v2893 = vunpack.c.l.b16 %v1270
    %v2894 = vunpack.c.h.b16 %v1270
    %v2895 = vunpack.c.l.b16 %v1271
    %v2896 = vunpack.c.h.b16 %v1271
    %v2897 = vunpack.c.l.b16 %v1272
    %v2898 = vunpack.c.h.b16 %v1272
    %v2899 = vunpack.c.l.b16 %v1273
    %v2900 = vunpack.c.h.b16 %v1273
    %v2901 = vunpack.c.l.b16 %v1274
    %v2902 = vunpack.c.h.b16 %v1274
    %v2903 = vunpack.c.l.b16 %v1275
    %v2904 = vunpack.c.h.b16 %v1275
    %v2905 = vunpack.c.l.b16 %v1276
    %v2906 = vunpack.c.h.b16 %v1276
    %v2907 = vunpack.c.l.b16 %v1277
    %v2908 = vunpack.c.h.b16 %v1277
    %v2909 = vunpack.c.l.b16 %v1278
    %v2910 = vunpack.c.h.b16 %v1278
    %v2911 = vunpack.c.l.b16 %v1279
    %v2912 = vunpack.c.h.b16 %v1279
    %v2913 = vunpack.c.l.b16 %v1280
    %v2914 = vunpack.c.h.b16 %v1280
    %v2915 = vunpack.c.l.b16 %v1281
    %v2916 = vunpack.c.h.b16 %v1281
    %v2917 = vunpack.c.l.b16 %v1282
    %v2918 = vunpack.c.h.b16 %v1282
    %v2919 = vunpack.c.l.b16 %v1283
    %v2920 = vunpack.c.h.b16 %v1283
    %v2921 = vunpack.c.l.b16 %v1284
    %v2922 = vunpack.c.h.b16 %v1284
    %v2923 = vunpack.c.l.b16 %v1285
    %v2924 = vunpack.c.h.b16 %v1285
    %v2925 = vunpack.c.l.b16 %v1286
    %v2926 = vunpack.c.h.b16 %v1286
    %v2927 = vunpack.c.l.b16 %v1287
    %v2928 = vunpack.c.h.b16 %v1287
    %v2929 = vunpack.c.l.b16 %v1288
    %v2930 = vunpack.c.h.b16 %v1288
    %v2931 = vunpack.c.l.b16 %v1289
    %v2932 = vunpack.c.h.b16 %v1289
    %v2933 = vunpack.c.l.b16 %v1290
    %v2934 = vunpack.c.h.b16 %v1290
    %v2935 = vunpack.c.l.b16 %v1291
    %v2936 = vunpack.c.h.b16 %v1291
    %v2937 = vunpack.c.l.b16 %v1292
    %v2938 = vunpack.c.h.b16 %v1292
    %v2939 = vunpack.c.l.b16 %v1293
    %v2940 = vunpack.c.h.b16 %v1293
    %v2941 = vunpack.c.l.b16 %v1294
    %v2942 = vunpack.c.h.b16 %v1294
    %v2943 = vunpack.c.l.b16 %v1295
    %v2944 = vunpack.c.h.b16 %v1295
    %v2945 = vunpack.c.l.b16 %v1296
    %v2946 = vunpack.c.h.b16 %v1296
    %v2947 = vunpack.c.l.b16 %v1297
    %v2948 = vunpack.c.h.b16 %v1297
    %v2949 = vunpack.c.l.b16 %v1298
    %v2950 = vunpack.c.h.b16 %v1298
    %v2951 = vunpack.c.l.b16 %v1299
    %v2952 = vunpack.c.h.b16 %v1299
    %v2953 = vunpack.c.l.b16 %v1300
    %v2954 = vunpack.c.h.b16 %v1300
    %v2955 = vunpack.c.l.b16 %v1301
    %v2956 = vunpack.c.h.b16 %v1301
    %v2957 = vunpack.c.l.b16 %v1302
    %v2958 = vunpack.c.h.b16 %v1302
    %v2959 = vunpack.c.l.b16 %v1303
    %v2960 = vunpack.c.h.b16 %v1303
    %v2961 = vunpack.c.l.b16 %v1304
    %v2962 = vunpack.c.h.b16 %v1304
    %v2963 = vunpack.c.l.b16 %v1305
    %v2964 = vunpack.c.h.b16 %v1305
    %v2965 = vunpack.c.l.b16 %v1306
    %v2966 = vunpack.c.h.b16 %v1306
    %v2967 = vunpack.c.l.b16 %v1307
    %v2968 = vunpack.c.h.b16 %v1307
    %v2969 = vunpack.c.l.b16 %v1308
    %v2970 = vunpack.c.h.b16 %v1308
    %v2971 = vunpack.c.l.b16 %v1309
    %v2972 = vunpack.c.h.b16 %v1309
    %v2973 = vunpack.c.l.b16 %v1310
    %v2974 = vunpack.c.h.b16 %v1310
    %v2975 = vunpack.c.l.b16 %v1311
    %v2976 = vunpack.c.h.b16 %v1311
    %v2977 = vunpack.c.l.b16 %v1312
    %v2978 = vunpack.c.h.b16 %v1312
    %v2979 = vunpack.c.l.b16 %v1313
    %v2980 = vunpack.c.h.b16 %v1313
    %v2981 = vunpack.c.l.b16 %v1314
    %v2982 = vunpack.c.h.b16 %v1314
    %v2983 = vunpack.c.l.b16 %v1315
    %v2984 = vunpack.c.h.b16 %v1315
    %v2985 = vunpack.c.l.b16 %v1316
    %v2986 = vunpack.c.h.b16 %v1316
    %v2987 = vunpack.c.l.b16 %v1317
    %v2988 = vunpack.c.h.b16 %v1317
    %v2989 = vunpack.c.l.b16 %v1318
    %v2990 = vunpack.c.h.b16 %v1318
    %v2991 = vunpack.c.l.b16 %v1319
    %v2992 = vunpack.c.h.b16 %v1319
    %v2993 = vunpack.c.l.b16 %v1320
    %v2994 = vunpack.c.h.b16 %v1320
    %v2995 = vunpack.c.l.b16 %v1321
    %v2996 = vunpack.c.h.b16 %v1321
    %v2997 = vunpack.c.l.b16 %v1322
    %v2998 = vunpack.c.h.b16 %v1322
    %v2999 = vunpack.c.l.b16 %v1323
    %v3000 = vunpack.c.h.b16 %v1323
    %v3001 = vunpack.c.l.b16 %v1324
    %v3002 = vunpack.c.h.b16 %v1324
    %v3003 = vunpack.c.l.b16 %v1325
    %v3004 = vunpack.c.h.b16 %v1325
    %v3005 = vunpack.c.l.b16 %v1326
    %v3006 = vunpack.c.h.b16 %v1326
    %v3007 = vunpack.c.l.b16 %v1327
    %v3008 = vunpack.c.h.b16 %v1327
    %v3009 = vunpack.c.l.b16 %v1328
    %v3010 = vunpack.c.h.b16 %v1328
    %v3011 = vunpack.c.l.b16 %v1329
    %v3012 = vunpack.c.h.b16 %v1329
    %v3013 = vunpack.c.l.b16 %v1330
    %v3014 = vunpack.c.h.b16 %v1330
    %v3015 = vunpack.c.l.b16 %v1331
    %v3016 = vunpack.c.h.b16 %v1331
    %v3017 = vunpack.c.l.b16 %v1332
    %v3018 = vunpack.c.h.b16 %v1332
    %v3019 = vunpack.c.l.b16 %v1333
    %v3020 = vunpack.c.h.b16 %v1333
    %v3021 = vunpack.c.l.b16 %v1334
    %v3022 = vunpack.c.h.b16 %v1334
    %v3023 = vunpack.c.l.b16 %v1335
    %v3024 = vunpack.c.h.b16 %v1335
    %v3025 = vunpack.c.l.b16 %v1336
    %v3026 = vunpack.c.h.b16 %v1336
    %v3027 = vunpack.c.l.b16 %v1337
    %v3028 = vunpack.c.h.b16 %v1337
    %v3029 = vunpack.c.l.b16 %v1338
    %v3030 = vunpack.c.h.b16 %v1338
    %v3031 = vunpack.c.l.b16 %v1339
    %v3032 = vunpack.c.h.b16 %v1339
    %v3033 = vunpack.c.l.b16 %v1340
    %v3034 = vunpack.c.h.b16 %v1340
    %v3035 = vunpack.c.l.b16 %v1341
    %v3036 = vunpack.c.h.b16 %v1341
    %v3037 = vunpack.c.l.b16 %v1342
    %v3038 = vunpack.c.h.b16 %v1342
    %v3039 = vunpack.c.l.b16 %v1343
    %v3040 = vunpack.c.h.b16 %v1343
    %v3041 = vunpack.c.l.b16 %v1344
    %v3042 = vunpack.c.h.b16 %v1344
    %v3043 = vunpack.c.l.b16 %v1345
    %v3044 = vunpack.c.h.b16 %v1345
    %v3045 = vunpack.c.l.b16 %v1346
    %v3046 = vunpack.c.h.b16 %v1346
    %v3047 = vunpack.c.l.b16 %v1347
    %v3048 = vunpack.c.h.b16 %v1347
    %v3049 = vunpack.c.l.b16 %v1348
    %v3050 = vunpack.c.h.b16 %v1348
    %v3051 = vunpack.c.l.b16 %v1349
    %v3052 = vunpack.c.h.b16 %v1349
    %v3053 = vunpack.c.l.b16 %v1350
    %v3054 = vunpack.c.h.b16 %v1350
    %v3055 = vunpack.c.l.b16 %v1351
    %v3056 = vunpack.c.h.b16 %v1351
    %v3057 = vunpack.c.l.b16 %v1352
    %v3058 = vunpack.c.h.b16 %v1352
    %v3059 = vunpack.c.l.b16 %v1353
    %v3060 = vunpack.c.h.b16 %v1353
    %v3061 = vunpack.c.l.b16 %v1354
    %v3062 = vunpack.c.h.b16 %v1354
    %v3063 = vunpack.c.l.b16 %v1355
    %v3064 = vunpack.c.h.b16 %v1355
    %v3065 = vunpack.c.l.b16 %v1356
    %v3066 = vunpack.c.h.b16 %v1356
    %v3067 = vunpack.c.l.b16 %v1357
    %v3068 = vunpack.c.h.b16 %v1357
    %v3069 = vunpack.c.l.b16 %v1358
    %v3070 = vunpack.c.h.b16 %v1358
    %v3071 = vunpack.c.l.b16 %v1359
    %v3072 = vunpack.c.h.b16 %v1359
    %v3073 = vunpack.c.l.b16 %v1360
    %v3074 = vunpack.c.h.b16 %v1360
    %v3075 = vunpack.c.l.b16 %v1361
    %v3076 = vunpack.c.h.b16 %v1361
    %v3077 = vunpack.c.l.b16 %v1362
    %v3078 = vunpack.c.h.b16 %v1362
    %v3079 = vunpack.c.l.b16 %v1363
    %v3080 = vunpack.c.h.b16 %v1363
    %v3081 = vunpack.c.l.b16 %v1364
    %v3082 = vunpack.c.h.b16 %v1364
    %v3083 = vunpack.c.l.b16 %v1365
    %v3084 = vunpack.c.h.b16 %v1365
    %v3085 = vunpack.c.l.b16 %v1366
    %v3086 = vunpack.c.h.b16 %v1366
    %v3087 = vunpack.c.l.b16 %v1367
    %v3088 = vunpack.c.h.b16 %v1367
    %v3089 = vunpack.c.l.b16 %v1368
    %v3090 = vunpack.c.h.b16 %v1368
    %v3091 = vunpack.c.l.b16 %v1369
    %v3092 = vunpack.c.h.b16 %v1369
    %v3093 = vunpack.c.l.b16 %v1370
    %v3094 = vunpack.c.h.b16 %v1370
    %v3095 = vunpack.c.l.b16 %v1371
    %v3096 = vunpack.c.h.b16 %v1371
    %v3097 = vunpack.c.l.b16 %v1372
    %v3098 = vunpack.c.h.b16 %v1372
    %v3099 = vunpack.c.l.b16 %v1373
    %v3100 = vunpack.c.h.b16 %v1373
    %v3101 = vunpack.c.l.b16 %v1374
    %v3102 = vunpack.c.h.b16 %v1374
    %v3103 = vunpack.c.l.b16 %v1375
    %v3104 = vunpack.c.h.b16 %v1375
    %v3105 = vunpack.c.l.b16 %v1376
    %v3106 = vunpack.c.h.b16 %v1376
    %v3107 = vunpack.c.l.b16 %v1377
    %v3108 = vunpack.c.h.b16 %v1377
    %v3109 = vunpack.c.l.b16 %v1378
    %v3110 = vunpack.c.h.b16 %v1378
    %v3111 = vunpack.c.l.b16 %v1379
    %v3112 = vunpack.c.h.b16 %v1379
    %v3113 = vunpack.c.l.b16 %v1380
    %v3114 = vunpack.c.h.b16 %v1380
    %v3115 = vunpack.c.l.b16 %v1381
    %v3116 = vunpack.c.h.b16 %v1381
    %v3117 = vunpack.c.l.b16 %v1382
    %v3118 = vunpack.c.h.b16 %v1382
    %v3119 = vunpack.c.l.b16 %v1383
    %v3120 = vunpack.c.h.b16 %v1383
    %v3121 = vunpack.c.l.b16 %v1384
    %v3122 = vunpack.c.h.b16 %v1384
    %v3123 = vunpack.c.l.b16 %v1385
    %v3124 = vunpack.c.h.b16 %v1385
    %v3125 = vunpack.c.l.b16 %v1386
    %v3126 = vunpack.c.h.b16 %v1386
    %v3127 = vunpack.c.l.b16 %v1387
    %v3128 = vunpack.c.h.b16 %v1387
    %v3129 = vunpack.c.l.b16 %v1388
    %v3130 = vunpack.c.h.b16 %v1388
    %v3131 = vunpack.c.l.b16 %v1389
    %v3132 = vunpack.c.h.b16 %v1389
    %v3133 = vunpack.c.l.b16 %v1390
    %v3134 = vunpack.c.h.b16 %v1390
    %v3135 = vunpack.c.l.b16 %v1391
    %v3136 = vunpack.c.h.b16 %v1391
    %v3137 = vunpack.c.l.b16 %v1392
    %v3138 = vunpack.c.h.b16 %v1392
    %v3139 = vunpack.c.l.b16 %v1393
    %v3140 = vunpack.c.h.b16 %v1393
    %v3141 = vunpack.c.l.b16 %v1394
    %v3142 = vunpack.c.h.b16 %v1394
    %v3143 = vunpack.c.l.b16 %v1395
    %v3144 = vunpack.c.h.b16 %v1395
    %v3145 = vunpack.c.l.b16 %v1396
    %v3146 = vunpack.c.h.b16 %v1396
    %v3147 = vunpack.c.l.b16 %v1397
    %v3148 = vunpack.c.h.b16 %v1397
    %v3149 = vunpack.c.l.b16 %v1398
    %v3150 = vunpack.c.h.b16 %v1398
    %v3151 = vunpack.c.l.b16 %v1399
    %v3152 = vunpack.c.h.b16 %v1399
    %v3153 = vunpack.c.l.b16 %v1400
    %v3154 = vunpack.c.h.b16 %v1400
    %v3155 = vunpack.c.l.b16 %v1401
    %v3156 = vunpack.c.h.b16 %v1401
    %v3157 = vunpack.c.l.b16 %v1402
    %v3158 = vunpack.c.h.b16 %v1402
    %v3159 = vunpack.c.l.b16 %v1403
    %v3160 = vunpack.c.h.b16 %v1403
    %v3161 = vunpack.c.l.b16 %v1404
    %v3162 = vunpack.c.h.b16 %v1404
    %v3163 = vunpack.c.l.b16 %v1405
    %v3164 = vunpack.c.h.b16 %v1405
    %v3165 = vunpack.c.l.b16 %v1406
    %v3166 = vunpack.c.h.b16 %v1406
    %v3167 = vunpack.c.l.b16 %v1407
    %v3168 = vunpack.c.h.b16 %v1407
    %v3169 = vunpack.c.l.b16 %v1408
    %v3170 = vunpack.c.h.b16 %v1408
    %v3171 = vunpack.c.l.b16 %v1409
    %v3172 = vunpack.c.h.b16 %v1409
    %v3173 = vunpack.c.l.b16 %v1410
    %v3174 = vunpack.c.h.b16 %v1410
    %v3175 = vunpack.c.l.b16 %v1411
    %v3176 = vunpack.c.h.b16 %v1411
    %v3177 = vunpack.c.l.b16 %v1412
    %v3178 = vunpack.c.h.b16 %v1412
    %v3179 = vunpack.c.l.b16 %v1413
    %v3180 = vunpack.c.h.b16 %v1413
    %v3181 = vunpack.c.l.b16 %v1414
    %v3182 = vunpack.c.h.b16 %v1414
    %v3183 = vunpack.c.l.b16 %v1415
    %v3184 = vunpack.c.h.b16 %v1415
    %v3185 = vunpack.c.l.b16 %v1416
    %v3186 = vunpack.c.h.b16 %v1416
    %v3187 = vunpack.c.l.b16 %v1417
    %v3188 = vunpack.c.h.b16 %v1417
    %v3189 = vunpack.c.l.b16 %v1418
    %v3190 = vunpack.c.h.b16 %v1418
    %v3191 = vunpack.c.l.b16 %v1419
    %v3192 = vunpack.c.h.b16 %v1419
    %v3193 = vunpack.c.l.b16 %v1420
    %v3194 = vunpack.c.h.b16 %v1420
    %v3195 = vunpack.c.l.b16 %v1421
    %v3196 = vunpack.c.h.b16 %v1421
    %v3197 = vunpack.c.l.b16 %v1422
    %v3198 = vunpack.c.h.b16 %v1422
    %v3199 = vunpack.c.l.b16 %v1423
    %v3200 = vunpack.c.h.b16 %v1423
    %v3201 = vunpack.c.l.b16 %v1424
    %v3202 = vunpack.c.h.b16 %v1424
    %v3203 = vunpack.c.l.b16 %v1425
    %v3204 = vunpack.c.h.b16 %v1425
    %v3205 = vunpack.c.l.b16 %v1426
    %v3206 = vunpack.c.h.b16 %v1426
    %v3207 = vunpack.c.l.b16 %v1427
    %v3208 = vunpack.c.h.b16 %v1427
    %v3209 = vunpack.c.l.b16 %v1428
    %v3210 = vunpack.c.h.b16 %v1428
    %v3211 = vunpack.c.l.b16 %v1429
    %v3212 = vunpack.c.h.b16 %v1429
    %v3213 = vunpack.c.l.b16 %v1430
    %v3214 = vunpack.c.h.b16 %v1430
    %v3215 = vunpack.c.l.b16 %v1431
    %v3216 = vunpack.c.h.b16 %v1431
    %v3217 = vunpack.c.l.b16 %v1432
    %v3218 = vunpack.c.h.b16 %v1432
    %v3219 = vunpack.c.l.b16 %v1433
    %v3220 = vunpack.c.h.b16 %v1433
    %v3221 = vunpack.c.l.b16 %v1434
    %v3222 = vunpack.c.h.b16 %v1434
    %v3223 = vunpack.c.l.b16 %v1435
    %v3224 = vunpack.c.h.b16 %v1435
    %v3225 = vunpack.c.l.b16 %v1436
    %v3226 = vunpack.c.h.b16 %v1436
    %v3227 = vunpack.c.l.b16 %v1437
    %v3228 = vunpack.c.h.b16 %v1437
    %v3229 = vunpack.c.l.b16 %v1438
    %v3230 = vunpack.c.h.b16 %v1438
    %v3231 = vunpack.c.l.b16 %v1439
    %v3232 = vunpack.c.h.b16 %v1439
    %v3233 = vunpack.c.l.b16 %v1440
    %v3234 = vunpack.c.h.b16 %v1440
    %v3235 = vunpack.c.l.b16 %v1441
    %v3236 = vunpack.c.h.b16 %v1441
    %v3237 = vunpack.c.l.b16 %v1442
    %v3238 = vunpack.c.h.b16 %v1442
    %v3239 = vunpack.c.l.b16 %v1443
    %v3240 = vunpack.c.h.b16 %v1443
    %v3241 = vunpack.c.l.b16 %v1444
    %v3242 = vunpack.c.h.b16 %v1444
    %v3243 = vunpack.c.l.b16 %v1445
    %v3244 = vunpack.c.h.b16 %v1445
    %v3245 = vunpack.c.l.b16 %v1446
    %v3246 = vunpack.c.h.b16 %v1446
    %v3247 = vunpack.c.l.b16 %v1447
    %v3248 = vunpack.c.h.b16 %v1447
    %v3249 = vunpack.c.l.b16 %v1448
    %v3250 = vunpack.c.h.b16 %v1448
    %v3251 = vunpack.c.l.b16 %v1449
    %v3252 = vunpack.c.h.b16 %v1449
    %v3253 = vunpack.c.l.b16 %v1450
    %v3254 = vunpack.c.h.b16 %v1450
    %v3255 = vunpack.c.l.b16 %v1451
    %v3256 = vunpack.c.h.b16 %v1451
    %v3257 = vunpack.c.l.b16 %v1452
    %v3258 = vunpack.c.h.b16 %v1452
    %v3259 = vunpack.c.l.b16 %v1453
    %v3260 = vunpack.c.h.b16 %v1453
    %v3261 = vunpack.c.l.b16 %v1454
    %v3262 = vunpack.c.h.b16 %v1454
    %v3263 = vunpack.c.l.b16 %v1455
    %v3264 = vunpack.c.h.b16 %v1455
    %v3265 = vunpack.c.l.b16 %v1456
    %v3266 = vunpack.c.h.b16 %v1456
    %v3267 = vunpack.c.l.b16 %v1457
    %v3268 = vunpack.c.h.b16 %v1457
    %v3269 = vunpack.c.l.b16 %v1458
    %v3270 = vunpack.c.h.b16 %v1458
    %v3271 = vunpack.c.l.b16 %v1459
    %v3272 = vunpack.c.h.b16 %v1459
    %v3273 = vunpack.c.l.b16 %v1460
    %v3274 = vunpack.c.h.b16 %v1460
    %v3275 = vunpack.c.l.b16 %v1461
    %v3276 = vunpack.c.h.b16 %v1461
    %v3277 = vunpack.c.l.b16 %v1462
    %v3278 = vunpack.c.h.b16 %v1462
    %v3279 = vunpack.c.l.b16 %v1463
    %v3280 = vunpack.c.h.b16 %v1463
    %v3281 = vunpack.c.l.b16 %v1464
    %v3282 = vunpack.c.h.b16 %v1464
    %v3283 = vunpack.c.l.b16 %v1465
    %v3284 = vunpack.c.h.b16 %v1465
    %v3285 = vunpack.c.l.b16 %v1466
    %v3286 = vunpack.c.h.b16 %v1466
    %v3287 = vunpack.c.l.b16 %v1467
    %v3288 = vunpack.c.h.b16 %v1467
    %v3289 = vunpack.c.l.b16 %v1468
    %v3290 = vunpack.c.h.b16 %v1468
    %v3291 = vunpack.c.l.b16 %v1469
    %v3292 = vunpack.c.h.b16 %v1469
    %v3293 = vunpack.c.l.b16 %v1470
    %v3294 = vunpack.c.h.b16 %v1470
    %v3295 = vunpack.c.l.b16 %v1471
    %v3296 = vunpack.c.h.b16 %v1471
    %v3297 = vunpack.c.l.b16 %v1472
    %v3298 = vunpack.c.h.b16 %v1472
    %v3299 = vunpack.c.l.b16 %v1473
    %v3300 = vunpack.c.h.b16 %v1473
    %v3301 = vunpack.c.l.b16 %v1474
    %v3302 = vunpack.c.h.b16 %v1474
    %v3303 = vunpack.c.l.b16 %v1475
    %v3304 = vunpack.c.h.b16 %v1475
    %v3305 = vunpack.c.l.b16 %v1476
    %v3306 = vunpack.c.h.b16 %v1476
    %v3307 = vunpack.c.l.b16 %v1477
    %v3308 = vunpack.c.h.b16 %v1477
    %v3309 = vunpack.c.l.b16 %v1478
    %v3310 = vunpack.c.h.b16 %v1478
    %v3311 = vunpack.c.l.b16 %v1479
    %v3312 = vunpack.c.h.b16 %v1479
    %v3313 = vunpack.c.l.b16 %v1480
    %v3314 = vunpack.c.h.b16 %v1480
    %v3315 = vunpack.c.l.b16 %v1481
    %v3316 = vunpack.c.h.b16 %v1481
    %v3317 = vunpack.c.l.b16 %v1482
    %v3318 = vunpack.c.h.b16 %v1482
    %v3319 = vunpack.c.l.b16 %v1483
    %v3320 = vunpack.c.h.b16 %v1483
    %v3321 = vunpack.c.l.b16 %v1484
    %v3322 = vunpack.c.h.b16 %v1484
    %v3323 = vunpack.c.l.b16 %v1485
    %v3324 = vunpack.c.h.b16 %v1485
    %v3325 = vunpack.c.l.b16 %v1486
    %v3326 = vunpack.c.h.b16 %v1486
    %v3327 = vunpack.c.l.b16 %v1487
    %v3328 = vunpack.c.h.b16 %v1487
    %v3329 = vunpack.c.l.b16 %v1488
    %v3330 = vunpack.c.h.b16 %v1488
    %v3331 = vunpack.c.l.b16 %v1489
    %v3332 = vunpack.c.h.b16 %v1489
    %v3333 = vunpack.c.l.b16 %v1490
    %v3334 = vunpack.c.h.b16 %v1490
    %v3335 = vunpack.c.l.b16 %v1491
    %v3336 = vunpack.c.h.b16 %v1491
    %v3337 = vunpack.c.l.b16 %v1492
    %v3338 = vunpack.c.h.b16 %v1492
    %v3339 = vunpack.c.l.b16 %v1493
    %v3340 = vunpack.c.h.b16 %v1493
    %v3341 = vunpack.c.l.b16 %v1494
    %v3342 = vunpack.c.h.b16 %v1494
    %v3343 = vunpack.c.l.b16 %v1495
    %v3344 = vunpack.c.h.b16 %v1495
    %v3345 = vunpack.c.l.b16 %v1496
    %v3346 = vunpack.c.h.b16 %v1496
    %v3347 = vunpack.c.l.b16 %v1497
    %v3348 = vunpack.c.h.b16 %v1497
    %v3349 = vunpack.c.l.b16 %v1498
    %v3350 = vunpack.c.h.b16 %v1498
    %v3351 = vunpack.c.l.b16 %v1499
    %v3352 = vunpack.c.h.b16 %v1499
    %v3353 = vunpack.c.l.b16 %v1500
    %v3354 = vunpack.c.h.b16 %v1500
    %v3355 = vunpack.c.l.b16 %v1501
    %v3356 = vunpack.c.h.b16 %v1501
    %v3357 = vunpack.c.l.b16 %v1502
    %v3358 = vunpack.c.h.b16 %v1502
    %v3359 = vunpack.c.l.b16 %v1503
    %v3360 = vunpack.c.h.b16 %v1503
    %v3361 = vunpack.c.l.b16 %v1504
    %v3362 = vunpack.c.h.b16 %v1504
    %v3363 = vunpack.c.l.b16 %v1505
    %v3364 = vunpack.c.h.b16 %v1505
    %v3365 = vunpack.c.l.b16 %v1506
    %v3366 = vunpack.c.h.b16 %v1506
    %v3367 = vunpack.c.l.b16 %v1507
    %v3368 = vunpack.c.h.b16 %v1507
    %v3369 = vunpack.c.l.b16 %v1508
    %v3370 = vunpack.c.h.b16 %v1508
    %v3371 = vunpack.c.l.b16 %v1509
    %v3372 = vunpack.c.h.b16 %v1509
    %v3373 = vunpack.c.l.b16 %v1510
    %v3374 = vunpack.c.h.b16 %v1510
    %v3375 = vunpack.c.l.b16 %v1511
    %v3376 = vunpack.c.h.b16 %v1511
    %v3377 = vunpack.c.l.b16 %v1512
    %v3378 = vunpack.c.h.b16 %v1512
    %v3379 = vunpack.c.l.b16 %v1513
    %v3380 = vunpack.c.h.b16 %v1513
    %v3381 = vunpack.c.l.b16 %v1514
    %v3382 = vunpack.c.h.b16 %v1514
    %v3383 = vunpack.c.l.b16 %v1515
    %v3384 = vunpack.c.h.b16 %v1515
    %v3385 = vunpack.c.l.b16 %v1516
    %v3386 = vunpack.c.h.b16 %v1516
    %v3387 = vunpack.c.l.b16 %v1517
    %v3388 = vunpack.c.h.b16 %v1517
    %v3389 = vunpack.c.l.b16 %v1518
    %v3390 = vunpack.c.h.b16 %v1518
    %v3391 = vunpack.c.l.b16 %v1519
    %v3392 = vunpack.c.h.b16 %v1519
    %v3393 = vunpack.c.l.b16 %v1520
    %v3394 = vunpack.c.h.b16 %v1520
    %v3395 = vunpack.c.l.b16 %v1521
    %v3396 = vunpack.c.h.b16 %v1521
    %v3397 = vunpack.c.l.b16 %v1522
    %v3398 = vunpack.c.h.b16 %v1522
    %v3399 = vunpack.c.l.b16 %v1523
    %v3400 = vunpack.c.h.b16 %v1523
    %v3401 = vunpack.c.l.b16 %v1524
    %v3402 = vunpack.c.h.b16 %v1524
    %v3403 = vunpack.c.l.b16 %v1525
    %v3404 = vunpack.c.h.b16 %v1525
    %v3405 = vunpack.c.l.b16 %v1526
    %v3406 = vunpack.c.h.b16 %v1526
    %v3407 = vunpack.c.l.b16 %v1527
    %v3408 = vunpack.c.h.b16 %v1527
    %v3409 = vunpack.c.l.b16 %v1528
    %v3410 = vunpack.c.h.b16 %v1528
    %v3411 = vunpack.c.l.b16 %v1529
    %v3412 = vunpack.c.h.b16 %v1529
    %v3413 = vunpack.c.l.b16 %v1530
    %v3414 = vunpack.c.h.b16 %v1530
    %v3415 = vunpack.c.l.b16 %v1531
    %v3416 = vunpack.c.h.b16 %v1531
    %v3417 = vunpack.c.l.b16 %v1532
    %v3418 = vunpack.c.h.b16 %v1532
    %v3419 = vunpack.c.l.b16 %v1533
    %v3420 = vunpack.c.h.b16 %v1533
    %v3421 = vunpack.c.l.b16 %v1534
    %v3422 = vunpack.c.h.b16 %v1534
    %v3423 = vunpack.c.l.b16 %v1535
    %v3424 = vunpack.c.h.b16 %v1535
    %v3425 = vunpack.c.l.b16 %v1536
    %v3426 = vunpack.c.h.b16 %v1536
    %v3427 = vunpack.c.l.b16 %v1537
    %v3428 = vunpack.c.h.b16 %v1537
    %v3429 = vunpack.c.l.b16 %v1538
    %v3430 = vunpack.c.h.b16 %v1538
    %v3431 = vunpack.c.l.b16 %v1539
    %v3432 = vunpack.c.h.b16 %v1539
    %v3433 = vunpack.c.l.b16 %v1540
    %v3434 = vunpack.c.h.b16 %v1540
    %v3435 = vunpack.c.l.b16 %v1541
    %v3436 = vunpack.c.h.b16 %v1541
    %v3437 = vunpack.c.l.b16 %v1542
    %v3438 = vunpack.c.h.b16 %v1542
    %v3439 = vunpack.c.l.b16 %v1543
    %v3440 = vunpack.c.h.b16 %v1543
    %v3441 = vunpack.c.l.b16 %v1544
    %v3442 = vunpack.c.h.b16 %v1544
    %v3443 = vunpack.c.l.b16 %v1545
    %v3444 = vunpack.c.h.b16 %v1545
    %v3445 = vunpack.c.l.b16 %v1546
    %v3446 = vunpack.c.h.b16 %v1546
    %v3447 = vunpack.c.l.b16 %v1547
    %v3448 = vunpack.c.h.b16 %v1547
    %v3449 = vunpack.c.l.b16 %v1548
    %v3450 = vunpack.c.h.b16 %v1548
    %v3451 = vunpack.c.l.b16 %v1549
    %v3452 = vunpack.c.h.b16 %v1549
    %v3453 = vunpack.c.l.b16 %v1550
    %v3454 = vunpack.c.h.b16 %v1550
    %v3455 = vunpack.c.l.b16 %v1551
    %v3456 = vunpack.c.h.b16 %v1551
    %v3457 = vunpack.c.l.b16 %v1552
    %v3458 = vunpack.c.h.b16 %v1552
    %v3459 = vunpack.c.l.b16 %v1553
    %v3460 = vunpack.c.h.b16 %v1553
    %v3461 = vunpack.c.l.b16 %v1554
    %v3462 = vunpack.c.h.b16 %v1554
    %v3463 = vunpack.c.l.b16 %v1555
    %v3464 = vunpack.c.h.b16 %v1555
    %v3465 = vunpack.c.l.b16 %v1556
    %v3466 = vunpack.c.h.b16 %v1556
    %v3467 = vunpack.c.l.b16 %v1557
    %v3468 = vunpack.c.h.b16 %v1557
    %v3469 = vunpack.c.l.b16 %v1558
    %v3470 = vunpack.c.h.b16 %v1558
    %v3471 = vunpack.c.l.b16 %v1559
    %v3472 = vunpack.c.h.b16 %v1559
    %v3473 = vunpack.c.l.b16 %v1560
    %v3474 = vunpack.c.h.b16 %v1560
    %v3475 = vunpack.c.l.b16 %v1561
    %v3476 = vunpack.c.h.b16 %v1561
    %v3477 = vunpack.c.l.b16 %v1562
    %v3478 = vunpack.c.h.b16 %v1562
    %v3479 = vunpack.c.l.b16 %v1563
    %v3480 = vunpack.c.h.b16 %v1563
    %v3481 = vunpack.c.l.b16 %v1564
    %v3482 = vunpack.c.h.b16 %v1564
    %v3483 = vunpack.c.l.b16 %v1565
    %v3484 = vunpack.c.h.b16 %v1565
    %v3485 = vunpack.c.l.b16 %v1566
    %v3486 = vunpack.c.h.b16 %v1566
    %v3487 = vunpack.c.l.b16 %v1567
    %v3488 = vunpack.c.h.b16 %v1567
    %v3489 = vunpack.c.l.b16 %v1568
    %v3490 = vunpack.c.h.b16 %v1568
    %v3491 = vunpack.c.l.b16 %v1569
    %v3492 = vunpack.c.h.b16 %v1569
    %v3493 = vunpack.c.l.b16 %v1570
    %v3494 = vunpack.c.h.b16 %v1570
    %v3495 = vunpack.c.l.b16 %v1571
    %v3496 = vunpack.c.h.b16 %v1571
    %v3497 = vunpack.c.l.b16 %v1572
    %v3498 = vunpack.c.h.b16 %v1572
    %v3499 = vunpack.c.l.b16 %v1573
    %v3500 = vunpack.c.h.b16 %v1573
    %v3501 = vunpack.c.l.b16 %v1574
    %v3502 = vunpack.c.h.b16 %v1574
    %v3503 = vunpack.c.l.b16 %v1575
    %v3504 = vunpack.c.h.b16 %v1575
    %v3505 = vunpack.c.l.b16 %v1576
    %v3506 = vunpack.c.h.b16 %v1576
    %v3507 = vunpack.c.l.b16 %v1577
    %v3508 = vunpack.c.h.b16 %v1577
    %v3509 = vunpack.c.l.b16 %v1578
    %v3510 = vunpack.c.h.b16 %v1578
    %v3511 = vunpack.c.l.b16 %v1579
    %v3512 = vunpack.c.h.b16 %v1579
    %v3513 = vunpack.c.l.b16 %v1580
    %v3514 = vunpack.c.h.b16 %v1580
    %v3515 = vunpack.c.l.b16 %v1581
    %v3516 = vunpack.c.h.b16 %v1581
    %v3517 = vunpack.c.l.b16 %v1582
    %v3518 = vunpack.c.h.b16 %v1582
    %v3519 = vunpack.c.l.b16 %v1583
    %v3520 = vunpack.c.h.b16 %v1583
    %v3521 = vunpack.c.l.b16 %v1584
    %v3522 = vunpack.c.h.b16 %v1584
    %v3523 = vunpack.c.l.b16 %v1585
    %v3524 = vunpack.c.h.b16 %v1585
    %v3525 = vunpack.c.l.b16 %v1586
    %v3526 = vunpack.c.h.b16 %v1586
    %v3527 = vunpack.c.l.b16 %v1587
    %v3528 = vunpack.c.h.b16 %v1587
    %v3529 = vunpack.c.l.b16 %v1588
    %v3530 = vunpack.c.h.b16 %v1588
    %v3531 = vunpack.c.l.b16 %v1589
    %v3532 = vunpack.c.h.b16 %v1589
    %v3533 = vunpack.c.l.b16 %v1590
    %v3534 = vunpack.c.h.b16 %v1590
    %v3535 = vunpack.c.l.b16 %v1591
    %v3536 = vunpack.c.h.b16 %v1591
    %v3537 = vunpack.c.l.b16 %v1592
    %v3538 = vunpack.c.h.b16 %v1592
    %v3539 = vunpack.c.l.b16 %v1593
    %v3540 = vunpack.c.h.b16 %v1593
    %v3541 = vunpack.c.l.b16 %v1594
    %v3542 = vunpack.c.h.b16 %v1594
    %v3543 = vunpack.c.l.b16 %v1595
    %v3544 = vunpack.c.h.b16 %v1595
    %v3545 = vunpack.c.l.b16 %v1596
    %v3546 = vunpack.c.h.b16 %v1596
    %v3547 = vunpack.c.l.b16 %v1597
    %v3548 = vunpack.c.h.b16 %v1597
    %v3549 = vunpack.c.l.b16 %v1598
    %v3550 = vunpack.c.h.b16 %v1598
    %v3551 = vunpack.c.l.b16 %v1599
    %v3552 = vunpack.c.h.b16 %v1599
    %v3553 = vunpack.c.l.b16 %v1600
    %v3554 = vunpack.c.h.b16 %v1600
    %v3555 = vunpack.c.l.b16 %v1601
    %v3556 = vunpack.c.h.b16 %v1601
    %v3557 = vunpack.c.l.b16 %v1602
    %v3558 = vunpack.c.h.b16 %v1602
    %v3559 = vunpack.c.l.b16 %v1603
    %v3560 = vunpack.c.h.b16 %v1603
    %v3561 = vunpack.c.l.b16 %v1604
    %v3562 = vunpack.c.h.b16 %v1604
    %v3563 = vunpack.c.l.b16 %v1605
    %v3564 = vunpack.c.h.b16 %v1605
    %v3565 = vunpack.c.l.b16 %v1606
    %v3566 = vunpack.c.h.b16 %v1606
    %v3567 = vunpack.c.l.b16 %v1607
    %v3568 = vunpack.c.h.b16 %v1607
    %v3569 = vunpack.c.l.b16 %v1608
    %v3570 = vunpack.c.h.b16 %v1608
    %v3571 = vunpack.c.l.b16 %v1609
    %v3572 = vunpack.c.h.b16 %v1609
    %v3573 = vunpack.c.l.b16 %v1610
    %v3574 = vunpack.c.h.b16 %v1610
    %v3575 = vunpack.c.l.b16 %v1611
    %v3576 = vunpack.c.h.b16 %v1611
    %v3577 = vunpack.c.l.b16 %v1612
    %v3578 = vunpack.c.h.b16 %v1612
    %v3579 = vunpack.c.l.b16 %v1613
    %v3580 = vunpack.c.h.b16 %v1613
    %v3581 = vunpack.c.l.b16 %v1614
    %v3582 = vunpack.c.h.b16 %v1614
    %v3583 = vunpack.c.l.b16 %v1615
    %v3584 = vunpack.c.h.b16 %v1615
    %v3585 = vunpack.c.l.b16 %v1616
    %v3586 = vunpack.c.h.b16 %v1616
    %v3587 = vunpack.c.l.b16 %v1617
    %v3588 = vunpack.c.h.b16 %v1617
    %v3589 = vunpack.c.l.b16 %v1618
    %v3590 = vunpack.c.h.b16 %v1618
    %v3591 = vunpack.c.l.b16 %v1619
    %v3592 = vunpack.c.h.b16 %v1619
    %v3593 = vunpack.c.l.b16 %v1620
    %v3594 = vunpack.c.h.b16 %v1620
    %v3595 = vunpack.c.l.b16 %v1621
    %v3596 = vunpack.c.h.b16 %v1621
    %v3597 = vunpack.c.l.b16 %v1622
    %v3598 = vunpack.c.h.b16 %v1622
    %v3599 = vunpack.c.l.b16 %v1623
    %v3600 = vunpack.c.h.b16 %v1623
    %v3601 = vunpack.c.l.b16 %v1624
    %v3602 = vunpack.c.h.b16 %v1624
    %v3603 = vunpack.c.l.b16 %v1625
    %v3604 = vunpack.c.h.b16 %v1625
    %v3605 = vunpack.c.l.b16 %v1626
    %v3606 = vunpack.c.h.b16 %v1626
    %v3607 = vunpack.c.l.b16 %v1627
    %v3608 = vunpack.c.h.b16 %v1627
    %v3609 = vunpack.c.l.b16 %v1628
    %v3610 = vunpack.c.h.b16 %v1628
    %v3611 = vunpack.c.l.b16 %v1629
    %v3612 = vunpack.c.h.b16 %v1629
    %v3613 = vunpack.c.l.b16 %v1630
    %v3614 = vunpack.c.h.b16 %v1630
    %v3615 = vunpack.c.l.b16 %v1631
    %v3616 = vunpack.c.h.b16 %v1631
    %v3617 = vunpack.c.l.b16 %v1632
    %v3618 = vunpack.c.h.b16 %v1632
    %v3619 = vunpack.c.l.b16 %v1633
    %v3620 = vunpack.c.h.b16 %v1633
    %v3621 = vunpack.c.l.b16 %v1634
    %v3622 = vunpack.c.h.b16 %v1634
    %v3623 = vunpack.c.l.b16 %v1635
    %v3624 = vunpack.c.h.b16 %v1635
    %v3625 = vunpack.c.l.b16 %v1636
    %v3626 = vunpack.c.h.b16 %v1636
    %v3627 = vunpack.c.l.b16 %v1637
    %v3628 = vunpack.c.h.b16 %v1637
    %v3629 = vunpack.c.l.b16 %v1638
    %v3630 = vunpack.c.h.b16 %v1638
    %v3631 = vunpack.c.l.b16 %v1639
    %v3632 = vunpack.c.h.b16 %v1639
    %v3633 = vunpack.c.l.b16 %v1640
    %v3634 = vunpack.c.h.b16 %v1640
    %v3635 = vunpack.c.l.b16 %v1641
    %v3636 = vunpack.c.h.b16 %v1641
    %v3637 = vunpack.c.l.b16 %v1642
    %v3638 = vunpack.c.h.b16 %v1642
    %v3639 = vunpack.c.l.b16 %v1643
    %v3640 = vunpack.c.h.b16 %v1643
    %v3641 = vunpack.c.l.b16 %v1644
    %v3642 = vunpack.c.h.b16 %v1644
    %v3643 = vunpack.c.l.b16 %v1645
    %v3644 = vunpack.c.h.b16 %v1645
    %v3645 = vunpack.c.l.b16 %v1646
    %v3646 = vunpack.c.h.b16 %v1646
    %v3647 = vunpack.c.l.b16 %v1647
    %v3648 = vunpack.c.h.b16 %v1647
    %v3649 = vunpack.c.l.b16 %v1648
    %v3650 = vunpack.c.h.b16 %v1648
    %v3651 = vunpack.c.l.b16 %v1649
    %v3652 = vunpack.c.h.b16 %v1649
    %v3653 = vunpack.c.l.b16 %v1650
    %v3654 = vunpack.c.h.b16 %v1650
    %v3655 = vunpack.c.l.b16 %v1651
    %v3656 = vunpack.c.h.b16 %v1651
    %v3657 = vunpack.c.l.b16 %v1652
    %v3658 = vunpack.c.h.b16 %v1652
    %v3659 = vunpack.c.l.b16 %v1653
    %v3660 = vunpack.c.h.b16 %v1653
    %v3661 = vunpack.c.l.b16 %v1654
    %v3662 = vunpack.c.h.b16 %v1654
    %v3663 = vunpack.c.l.b16 %v1655
    %v3664 = vunpack.c.h.b16 %v1655
    %v3665 = vunpack.c.l.b16 %v1656
    %v3666 = vunpack.c.h.b16 %v1656
    %v3667 = vunpack.c.l.b16 %v1657
    %v3668 = vunpack.c.h.b16 %v1657
    %v3669 = vunpack.c.l.b16 %v1658
    %v3670 = vunpack.c.h.b16 %v1658
    %v3671 = vunpack.c.l.b16 %v1659
    %v3672 = vunpack.c.h.b16 %v1659
    %v3673 = vunpack.c.l.b16 %v1660
    %v3674 = vunpack.c.h.b16 %v1660
    %v3675 = vunpack.c.l.b16 %v1661
    %v3676 = vunpack.c.h.b16 %v1661
    %v3677 = vunpack.c.l.b16 %v1662
    %v3678 = vunpack.c.h.b16 %v1662
    %v3679 = vunpack.c.l.b16 %v1663
    %v3680 = vunpack.c.h.b16 %v1663
    %v3681 = vunpack.c.l.b16 %v1664
    %v3682 = vunpack.c.h.b16 %v1664
    %v3683 = vunpack.c.l.b16 %v1665
    %v3684 = vunpack.c.h.b16 %v1665
    %v3685 = vunpack.c.l.b16 %v1666
    %v3686 = vunpack.c.h.b16 %v1666
    %v3687 = vunpack.c.l.b16 %v1667
    %v3688 = vunpack.c.h.b16 %v1667
    %v3689 = vunpack.c.l.b16 %v1668
    %v3690 = vunpack.c.h.b16 %v1668
    %v3691 = vunpack.c.l.b16 %v1669
    %v3692 = vunpack.c.h.b16 %v1669
    %v3693 = vunpack.c.l.b16 %v1670
    %v3694 = vunpack.c.h.b16 %v1670
    %v3695 = vunpack.c.l.b16 %v1671
    %v3696 = vunpack.c.h.b16 %v1671
    %v3697 = vunpack.c.l.b16 %v1672
    %v3698 = vunpack.c.h.b16 %v1672
    %v3699 = vunpack.c.l.b16 %v1673
    %v3700 = vunpack.c.h.b16 %v1673
    %v3701 = vunpack.c.l.b16 %v1674
    %v3702 = vunpack.c.h.b16 %v1674
    %v3703 = vunpack.c.l.b16 %v1675
    %v3704 = vunpack.c.h.b16 %v1675
    %v3705 = vunpack.c.l.b16 %v1676
    %v3706 = vunpack.c.h.b16 %v1676
    %v3707 = vunpack.c.l.b16 %v1677
    %v3708 = vunpack.c.h.b16 %v1677
    %v3709 = vunpack.c.l.b16 %v1678
    %v3710 = vunpack.c.h.b16 %v1678
    %v3711 = vunpack.c.l.b16 %v1679
    %v3712 = vunpack.c.h.b16 %v1679
    %v3713 = vunpack.c.l.b16 %v1680
    %v3714 = vunpack.c.h.b16 %v1680
    %v3715 = vunpack.c.l.b16 %v1681
    %v3716 = vunpack.c.h.b16 %v1681
    %v3717 = vunpack.c.l.b16 %v1682
    %v3718 = vunpack.c.h.b16 %v1682
    %v3719 = vunpack.c.l.b16 %v1683
    %v3720 = vunpack.c.h.b16 %v1683
    %v3721 = vunpack.c.l.b16 %v1684
    %v3722 = vunpack.c.h.b16 %v1684
    %v3723 = vunpack.c.l.b16 %v1685
    %v3724 = vunpack.c.h.b16 %v1685
    %v3725 = vunpack.c.l.b16 %v1686
    %v3726 = vunpack.c.h.b16 %v1686
    %v3727 = vunpack.c.l.b16 %v1687
    %v3728 = vunpack.c.h.b16 %v1687
    %v3729 = vunpack.c.l.b16 %v1688
    %v3730 = vunpack.c.h.b16 %v1688
    %v3731 = vunpack.c.l.b16 %v1689
    %v3732 = vunpack.c.h.b16 %v1689
    %v3733 = vunpack.c.l.b16 %v1690
    %v3734 = vunpack.c.h.b16 %v1690
    %v3735 = vunpack.c.l.b16 %v1691
    %v3736 = vunpack.c.h.b16 %v1691
    %v3737 = vunpack.c.l.b16 %v1692
    %v3738 = vunpack.c.h.b16 %v1692
    %v3739 = vunpack.c.l.b16 %v1693
    %v3740 = vunpack.c.h.b16 %v1693
    %v3741 = vunpack.c.l.b16 %v1694
    %v3742 = vunpack.c.h.b16 %v1694
    %v3743 = vunpack.c.l.b16 %v1695
    %v3744 = vunpack.c.h.b16 %v1695
    %v3745 = vunpack.c.l.b16 %v1696
    %v3746 = vunpack.c.h.b16 %v1696
    %v3747 = vunpack.c.l.b16 %v1697
    %v3748 = vunpack.c.h.b16 %v1697
    %v3749 = vunpack.c.l.b16 %v1698
    %v3750 = vunpack.c.h.b16 %v1698
    %v3751 = vunpack.c.l.b16 %v1699
    %v3752 = vunpack.c.h.b16 %v1699
    %v3753 = vunpack.c.l.b16 %v1700
    %v3754 = vunpack.c.h.b16 %v1700
    %v3755 = vunpack.c.l.b16 %v1701
    %v3756 = vunpack.c.h.b16 %v1701
    %v3757 = vunpack.c.l.b16 %v1702
    %v3758 = vunpack.c.h.b16 %v1702
    %v3759 = vunpack.c.l.b16 %v1703
    %v3760 = vunpack.c.h.b16 %v1703
    %v3761 = vunpack.c.l.b16 %v1704
    %v3762 = vunpack.c.h.b16 %v1704
    %v3763 = vunpack.c.l.b16 %v1705
    %v3764 = vunpack.c.h.b16 %v1705
    %v3765 = vunpack.c.l.b16 %v1706
    %v3766 = vunpack.c.h.b16 %v1706
    %v3767 = vunpack.c.l.b16 %v1707
    %v3768 = vunpack.c.h.b16 %v1707
    %v3769 = vunpack.c.l.b16 %v1708
    %v3770 = vunpack.c.h.b16 %v1708
    %v3771 = vunpack.c.l.b16 %v1709
    %v3772 = vunpack.c.h.b16 %v1709
    %v3773 = vunpack.c.l.b16 %v1710
    %v3774 = vunpack.c.h.b16 %v1710
    %v3775 = vunpack.c.l.b16 %v1711
    %v3776 = vunpack.c.h.b16 %v1711
    %v3777 = vunpack.c.l.b16 %v1712
    %v3778 = vunpack.c.h.b16 %v1712
    %v3779 = vunpack.c.l.b16 %v1713
    %v3780 = vunpack.c.h.b16 %v1713
    %v3781 = vunpack.c.l.b16 %v1714
    %v3782 = vunpack.c.h.b16 %v1714
    %v3783 = vunpack.c.l.b16 %v1715
    %v3784 = vunpack.c.h.b16 %v1715
    %v3785 = vunpack.c.l.b16 %v1716
    %v3786 = vunpack.c.h.b16 %v1716
    %v3787 = vunpack.c.l.b16 %v1717
    %v3788 = vunpack.c.h.b16 %v1717
    %v3789 = vunpack.c.l.b16 %v1718
    %v3790 = vunpack.c.h.b16 %v1718
    %v3791 = vunpack.c.l.b16 %v1719
    %v3792 = vunpack.c.h.b16 %v1719
    %v3793 = vunpack.c.l.b16 %v1720
    %v3794 = vunpack.c.h.b16 %v1720
    %v3795 = vunpack.c.l.b16 %v1721
    %v3796 = vunpack.c.h.b16 %v1721
    %v3797 = vunpack.c.l.b16 %v1722
    %v3798 = vunpack.c.h.b16 %v1722
    %v3799 = vunpack.c.l.b16 %v1723
    %v3800 = vunpack.c.h.b16 %v1723
    %v3801 = vunpack.c.l.b16 %v1724
    %v3802 = vunpack.c.h.b16 %v1724
    %v3803 = vunpack.c.l.b16 %v1725
    %v3804 = vunpack.c.h.b16 %v1725
    %v3805 = vunpack.c.l.b16 %v1726
    %v3806 = vunpack.c.h.b16 %v1726
    %v3807 = vunpack.c.l.b16 %v1727
    %v3808 = vunpack.c.h.b16 %v1727
    %v3809 = vunpack.c.l.b16 %v1728
    %v3810 = vunpack.c.h.b16 %v1728
    %v3811 = vunpack.c.l.b16 %v1729
    %v3812 = vunpack.c.h.b16 %v1729
    %v3813 = vunpack.c.l.b16 %v1730
    %v3814 = vunpack.c.h.b16 %v1730
    %v3815 = vunpack.c.l.b16 %v1731
    %v3816 = vunpack.c.h.b16 %v1731
    %v3817 = vunpack.c.l.b16 %v1732
    %v3818 = vunpack.c.h.b16 %v1732
    %v3819 = vunpack.c.l.b16 %v1733
    %v3820 = vunpack.c.h.b16 %v1733
    %v3821 = vunpack.c.l.b16 %v1734
    %v3822 = vunpack.c.h.b16 %v1734
    %v3823 = vunpack.c.l.b16 %v1735
    %v3824 = vunpack.c.h.b16 %v1735
    %v3825 = vunpack.c.l.b16 %v1736
    %v3826 = vunpack.c.h.b16 %v1736
    %v3827 = vunpack.c.l.b16 %v1737
    %v3828 = vunpack.c.h.b16 %v1737
    %v3829 = vunpack.c.l.b16 %v1738
    %v3830 = vunpack.c.h.b16 %v1738
    %v3831 = vunpack.c.l.b16 %v1739
    %v3832 = vunpack.c.h.b16 %v1739
    %v3833 = vunpack.c.l.b16 %v1740
    %v3834 = vunpack.c.h.b16 %v1740
    %v3835 = vunpack.c.l.b16 %v1741
    %v3836 = vunpack.c.h.b16 %v1741
    %v3837 = vunpack.c.l.b16 %v1742
    %v3838 = vunpack.c.h.b16 %v1742
    %v3839 = vunpack.c.l.b16 %v1743
    %v3840 = vunpack.c.h.b16 %v1743
    %v3841 = vunpack.c.l.b16 %v1744
    %v3842 = vunpack.c.h.b16 %v1744
    %v3843 = vunpack.c.l.b16 %v1745
    %v3844 = vunpack.c.h.b16 %v1745
    %v3845 = vunpack.c.l.b16 %v1746
    %v3846 = vunpack.c.h.b16 %v1746
    %v3847 = vunpack.c.l.b16 %v1747
    %v3848 = vunpack.c.h.b16 %v1747
    %v3849 = vunpack.c.l.b16 %v1748
    %v3850 = vunpack.c.h.b16 %v1748
    %v3851 = vunpack.c.l.b16 %v1749
    %v3852 = vunpack.c.h.b16 %v1749
    %v3853 = vunpack.c.l.b16 %v1750
    %v3854 = vunpack.c.h.b16 %v1750
    %v3855 = vunpack.c.l.b16 %v1751
    %v3856 = vunpack.c.h.b16 %v1751
    %v3857 = vunpack.c.l.b16 %v1752
    %v3858 = vunpack.c.h.b16 %v1752
    %v3859 = vunpack.c.l.b16 %v1753
    %v3860 = vunpack.c.h.b16 %v1753
    %v3861 = vunpack.c.l.b16 %v1754
    %v3862 = vunpack.c.h.b16 %v1754
    %v3863 = vunpack.c.l.b16 %v1755
    %v3864 = vunpack.c.h.b16 %v1755
    %v3865 = vunpack.c.l.b16 %v1756
    %v3866 = vunpack.c.h.b16 %v1756
    %v3867 = vunpack.c.l.b16 %v1757
    %v3868 = vunpack.c.h.b16 %v1757
    %v3869 = vunpack.c.l.b16 %v1758
    %v3870 = vunpack.c.h.b16 %v1758
    %v3871 = vunpack.c.l.b16 %v1759
    %v3872 = vunpack.c.h.b16 %v1759
    %v3873 = vunpack.c.l.b16 %v1760
    %v3874 = vunpack.c.h.b16 %v1760
    %v3875 = vunpack.c.l.b16 %v1761
    %v3876 = vunpack.c.h.b16 %v1761
    %v3877 = vunpack.c.l.b16 %v1762
    %v3878 = vunpack.c.h.b16 %v1762
    %v3879 = vunpack.c.l.b16 %v1763
    %v3880 = vunpack.c.h.b16 %v1763
    %v3881 = vunpack.c.l.b16 %v1764
    %v3882 = vunpack.c.h.b16 %v1764
    %v3883 = vunpack.c.l.b16 %v1765
    %v3884 = vunpack.c.h.b16 %v1765
    %v3885 = vunpack.c.l.b16 %v1766
    %v3886 = vunpack.c.h.b16 %v1766
    %v3887 = vunpack.c.l.b16 %v1767
    %v3888 = vunpack.c.h.b16 %v1767
    %v3889 = vunpack.c.l.b16 %v1768
    %v3890 = vunpack.c.h.b16 %v1768
    %v3891 = vunpack.c.l.b16 %v1769
    %v3892 = vunpack.c.h.b16 %v1769
    %v3893 = vunpack.c.l.b16 %v1770
    %v3894 = vunpack.c.h.b16 %v1770
    %v3895 = vunpack.c.l.b16 %v1771
    %v3896 = vunpack.c.h.b16 %v1771
    %v3897 = vunpack.c.l.b16 %v1772
    %v3898 = vunpack.c.h.b16 %v1772
    %v3899 = vunpack.c.l.b16 %v1773
    %v3900 = vunpack.c.h.b16 %v1773
    %v3901 = vunpack.c.l.b16 %v1774
    %v3902 = vunpack.c.h.b16 %v1774
    %v3903 = vunpack.c.l.b16 %v1775
    %v3904 = vunpack.c.h.b16 %v1775
    %v3905 = vunpack.c.l.b16 %v1776
    %v3906 = vunpack.c.h.b16 %v1776
    %v3907 = vunpack.c.l.b16 %v1777
    %v3908 = vunpack.c.h.b16 %v1777
    %v3909 = vunpack.c.l.b16 %v1778
    %v3910 = vunpack.c.h.b16 %v1778
    %v3911 = vunpack.c.l.b16 %v1779
    %v3912 = vunpack.c.h.b16 %v1779
    %v3913 = vunpack.c.l.b16 %v1780
    %v3914 = vunpack.c.h.b16 %v1780
    %v3915 = vunpack.c.l.b16 %v1781
    %v3916 = vunpack.c.h.b16 %v1781
    %v3917 = vunpack.c.l.b16 %v1782
    %v3918 = vunpack.c.h.b16 %v1782
    %v3919 = vunpack.c.l.b16 %v1783
    %v3920 = vunpack.c.h.b16 %v1783
    %v3921 = vunpack.c.l.b16 %v1784
    %v3922 = vunpack.c.h.b16 %v1784
    %v3923 = vunpack.c.l.b16 %v1785
    %v3924 = vunpack.c.h.b16 %v1785
    %v3925 = vunpack.c.l.b16 %v1786
    %v3926 = vunpack.c.h.b16 %v1786
    %v3927 = vunpack.c.l.b16 %v1787
    %v3928 = vunpack.c.h.b16 %v1787
    %v3929 = vunpack.c.l.b16 %v1788
    %v3930 = vunpack.c.h.b16 %v1788
    %v3931 = vunpack.c.l.b16 %v1789
    %v3932 = vunpack.c.h.b16 %v1789
    %v3933 = vunpack.c.l.b16 %v1790
    %v3934 = vunpack.c.h.b16 %v1790
    %v3935 = vunpack.c.l.b16 %v1791
    %v3936 = vunpack.c.h.b16 %v1791
    %v3937 = vunpack.c.l.b16 %v1792
    %v3938 = vunpack.c.h.b16 %v1792
    %v3939 = vunpack.c.l.b16 %v1793
    %v3940 = vunpack.c.h.b16 %v1793
    %v3941 = vunpack.c.l.b16 %v1794
    %v3942 = vunpack.c.h.b16 %v1794
    %v3943 = vunpack.c.l.b16 %v1795
    %v3944 = vunpack.c.h.b16 %v1795
    %v3945 = vunpack.c.l.b16 %v1796
    %v3946 = vunpack.c.h.b16 %v1796
    %v3947 = vunpack.c.l.b16 %v1797
    %v3948 = vunpack.c.h.b16 %v1797
    %v3949 = vunpack.c.l.b16 %v1798
    %v3950 = vunpack.c.h.b16 %v1798
    %v3951 = vunpack.c.l.b16 %v1799
    %v3952 = vunpack.c.h.b16 %v1799
    %v3953 = vunpack.c.l.b16 %v1800
    %v3954 = vunpack.c.h.b16 %v1800
    %v3955 = vunpack.c.l.b16 %v1801
    %v3956 = vunpack.c.h.b16 %v1801
    %v3957 = vunpack.c.l.b16 %v1802
    %v3958 = vunpack.c.h.b16 %v1802
    %v3959 = vunpack.c.l.b16 %v1803
    %v3960 = vunpack.c.h.b16 %v1803
    %v3961 = vunpack.c.l.b16 %v1804
    %v3962 = vunpack.c.h.b16 %v1804
    %v3963 = vunpack.c.l.b16 %v1805
    %v3964 = vunpack.c.h.b16 %v1805
    %v3965 = vunpack.c.l.b16 %v1806
    %v3966 = vunpack.c.h.b16 %v1806
    %v3967 = vunpack.c.l.b16 %v1807
    %v3968 = vunpack.c.h.b16 %v1807
    %v3969 = vunpack.c.l.b16 %v1808
    %v3970 = vunpack.c.h.b16 %v1808
    %v3971 = vunpack.c.l.b16 %v1809
    %v3972 = vunpack.c.h.b16 %v1809
    %v3973 = vunpack.c.l.b16 %v1810
    %v3974 = vunpack.c.h.b16 %v1810
    %v3975 = vunpack.c.l.b16 %v1811
    %v3976 = vunpack.c.h.b16 %v1811
    %v3977 = vunpack.c.l.b16 %v1812
    %v3978 = vunpack.c.h.b16 %v1812
    %v3979 = vunpack.c.l.b16 %v1813
    %v3980 = vunpack.c.h.b16 %v1813
    %v3981 = vunpack.c.l.b16 %v1814
    %v3982 = vunpack.c.h.b16 %v1814
    %v3983 = vunpack.c.l.b16 %v1815
    %v3984 = vunpack.c.h.b16 %v1815
    %v3985 = vunpack.c.l.b16 %v1816
    %v3986 = vunpack.c.h.b16 %v1816
    %v3987 = vunpack.c.l.b16 %v1817
    %v3988 = vunpack.c.h.b16 %v1817
    %v3989 = vunpack.c.l.b16 %v1818
    %v3990 = vunpack.c.h.b16 %v1818
    %v3991 = vunpack.c.l.b16 %v1819
    %v3992 = vunpack.c.h.b16 %v1819
    %v3993 = vunpack.c.l.b16 %v1820
    %v3994 = vunpack.c.h.b16 %v1820
    %v3995 = vunpack.c.l.b16 %v1821
    %v3996 = vunpack.c.h.b16 %v1821
    %v3997 = vunpack.c.l.b16 %v1822
    %v3998 = vunpack.c.h.b16 %v1822
    %v3999 = vunpack.c.l.b16 %v1823
    %v4000 = vunpack.c.h.b16 %v1823
    %v4001 = vunpack.c.l.b16 %v1824
    %v4002 = vunpack.c.h.b16 %v1824
    %v4003 = vunpack.c.l.b16 %v1825
    %v4004 = vunpack.c.h.b16 %v1825
    %v4005 = vunpack.c.l.b16 %v1826
    %v4006 = vunpack.c.h.b16 %v1826
    %v4007 = vunpack.c.l.b16 %v1827
    %v4008 = vunpack.c.h.b16 %v1827
    %v4009 = vunpack.c.l.b16 %v1828
    %v4010 = vunpack.c.h.b16 %v1828
    %v4011 = vunpack.c.l.b16 %v1829
    %v4012 = vunpack.c.h.b16 %v1829
    %v4013 = vunpack.c.l.b16 %v1830
    %v4014 = vunpack.c.h.b16 %v1830
    %v4015 = vunpack.c.l.b16 %v1831
    %v4016 = vunpack.c.h.b16 %v1831
    %v4017 = vunpack.c.l.b16 %v1832
    %v4018 = vunpack.c.h.b16 %v1832
    %v4019 = vunpack.c.l.b16 %v1833
    %v4020 = vunpack.c.h.b16 %v1833
    %v4021 = vunpack.c.l.b16 %v1834
    %v4022 = vunpack.c.h.b16 %v1834
    %v4023 = vunpack.c.l.b16 %v1835
    %v4024 = vunpack.c.h.b16 %v1835
    %v4025 = vunpack.c.l.b16 %v1836
    %v4026 = vunpack.c.h.b16 %v1836
    %v4027 = vunpack.c.l.b16 %v1837
    %v4028 = vunpack.c.h.b16 %v1837
    %v4029 = vunpack.c.l.b16 %v1838
    %v4030 = vunpack.c.h.b16 %v1838
    %v4031 = vunpack.c.l.b16 %v1839
    %v4032 = vunpack.c.h.b16 %v1839
    %v4033 = vunpack.c.l.b16 %v1840
    %v4034 = vunpack.c.h.b16 %v1840
    %v4035 = vunpack.c.l.b16 %v1841
    %v4036 = vunpack.c.h.b16 %v1841
    %v4037 = vunpack.c.l.b16 %v1842
    %v4038 = vunpack.c.h.b16 %v1842
    %v4039 = vunpack.c.l.b16 %v1843
    %v4040 = vunpack.c.h.b16 %v1843
    %v4041 = vunpack.c.l.b16 %v1844
    %v4042 = vunpack.c.h.b16 %v1844
    %v4043 = vunpack.c.l.b16 %v1845
    %v4044 = vunpack.c.h.b16 %v1845
    %v4045 = vunpack.c.l.b16 %v1846
    %v4046 = vunpack.c.h.b16 %v1846
    %v4047 = vunpack.c.l.b16 %v1847
    %v4048 = vunpack.c.h.b16 %v1847
    %v4049 = vunpack.c.l.b16 %v1848
    %v4050 = vunpack.c.h.b16 %v1848
    %v4051 = vunpack.c.l.b16 %v1849
    %v4052 = vunpack.c.h.b16 %v1849
    %v4053 = vunpack.c.l.b16 %v1850
    %v4054 = vunpack.c.h.b16 %v1850
    %v4055 = vunpack.c.l.b16 %v1851
    %v4056 = vunpack.c.h.b16 %v1851
    %v4057 = vunpack.c.l.b16 %v1852
    %v4058 = vunpack.c.h.b16 %v1852
    %v4059 = vunpack.c.l.b16 %v1853
    %v4060 = vunpack.c.h.b16 %v1853
    %v4061 = vunpack.c.l.b16 %v1854
    %v4062 = vunpack.c.h.b16 %v1854
    %v4063 = vunpack.c.l.b16 %v1855
    %v4064 = vunpack.c.h.b16 %v1855
    %v4065 = vunpack.c.l.b16 %v1856
    %v4066 = vunpack.c.h.b16 %v1856
    %v4067 = vunpack.c.l.b16 %v1857
    %v4068 = vunpack.c.h.b16 %v1857
    %v4069 = vunpack.c.l.b16 %v1858
    %v4070 = vunpack.c.h.b16 %v1858
    %v4071 = vunpack.c.l.b16 %v1859
    %v4072 = vunpack.c.h.b16 %v1859
    %v4073 = vunpack.c.l.b16 %v1860
    %v4074 = vunpack.c.h.b16 %v1860
    %v4075 = vunpack.c.l.b16 %v1861
    %v4076 = vunpack.c.h.b16 %v1861
    %v4077 = vunpack.c.l.b16 %v1862
    %v4078 = vunpack.c.h.b16 %v1862
    %v4079 = vunpack.c.l.b16 %v1863
    %v4080 = vunpack.c.h.b16 %v1863
    %v4081 = vunpack.c.l.b16 %v1864
    %v4082 = vunpack.c.h.b16 %v1864
    %v4083 = vunpack.c.l.b16 %v1865
    %v4084 = vunpack.c.h.b16 %v1865
    %v4085 = vunpack.c.l.b16 %v1866
    %v4086 = vunpack.c.h.b16 %v1866
    %v4087 = vunpack.c.l.b16 %v1867
    %v4088 = vunpack.c.h.b16 %v1867
    %v4089 = vunpack.c.l.b16 %v1868
    %v4090 = vunpack.c.h.b16 %v1868
    %v4091 = vunpack.c.l.b16 %v1869
    %v4092 = vunpack.c.h.b16 %v1869
    %v4093 = vunpack.c.l.b16 %v1870
    %v4094 = vunpack.c.h.b16 %v1870
    %v4095 = vpack.c.b16 %v2655, %v2631
    %v4096 = vpack.c.b16 %v2656, %v2632
    %v4097 = vpack.c.b16 %v2657, %v2633
    %v4098 = vpack.c.b16 %v2658, %v2634
    %v4099 = vpack.c.b16 %v2659, %v2635
    %v4100 = vpack.c.b16 %v2660, %v2636
    %v4101 = vpack.c.b16 %v2661, %v2637
    %v4102 = vpack.c.b16 %v2662, %v2638
    %v4103 = vpack.c.b16 %v2663, %v2639
    %v4104 = vpack.c.b16 %v2664, %v2640
    %v4105 = vpack.c.b16 %v2665, %v2641
    %v4106 = vpack.c.b16 %v2666, %v2642
    %v4107 = vpack.c.b16 %v2667, %v2643
    %v4108 = vpack.c.b16 %v2668, %v2644
    %v4109 = vpack.c.b16 %v2669, %v2645
    %v4110 = vpack.c.b16 %v2670, %v2646
    %v4111 = vpack.c.b16 %v2671, %v2647
    %v4112 = vpack.c.b16 %v2672, %v2648
    %v4113 = vpack.c.b16 %v2673, %v2649
    %v4114 = vpack.c.b16 %v2674, %v2650
    %v4115 = vpack.c.b16 %v2675, %v2651
    %v4116 = vpack.c.b16 %v2676, %v2652
    %v4117 = vpack.c.b16 %v2677, %v2653
    %v4118 = vpack.c.b16 %v2678, %v2654
    %v4119 = vpack.c.b16 %v2703, %v2679
    %v4120 = vpack.c.b16 %v2704, %v2680
    %v4121 = vpack.c.b16 %v2705, %v2681
    %v4122 = vpack.c.b16 %v2706, %v2682
    %v4123 = vpack.c.b16 %v2707, %v2683
    %v4124 = vpack.c.b16 %v2708, %v2684
    %v4125 = vpack.c.b16 %v2709, %v2685
    %v4126 = vpack.c.b16 %v2710, %v2686
    %v4127 = vpack.c.b16 %v2711, %v2687
    %v4128 = vpack.c.b16 %v2712, %v2688
    %v4129 = vpack.c.b16 %v2713, %v2689
    %v4130 = vpack.c.b16 %v2714, %v2690
    %v4131 = vpack.c.b16 %v2715, %v2691
    %v4132 = vpack.c.b16 %v2716, %v2692
    %v4133 = vpack.c.b16 %v2717, %v2693
    %v4134 = vpack.c.b16 %v2718, %v2694
    %v4135 = vpack.c.b16 %v2719, %v2695
    %v4136 = vpack.c.b16 %v2720, %v2696
    %v4137 = vpack.c.b16 %v2721, %v2697
    %v4138 = vpack.c.b16 %v2722, %v2698
    %v4139 = vpack.c.b16 %v2723, %v2699
    %v4140 = vpack.c.b16 %v2724, %v2700
    %v4141 = vpack.c.b16 %v2725, %v2701
    %v4142 = vpack.c.b16 %v2726, %v2702
    %v4143 = vpack.c.b16 %v2751, %v2727
    %v4144 = vpack.c.b16 %v2752, %v2728
    %v4145 = vpack.c.b16 %v2753, %v2729
    %v4146 = vpack.c.b16 %v2754, %v2730
    %v4147 = vpack.c.b16 %v2755, %v2731
    %v4148 = vpack.c.b16 %v2756, %v2732
    %v4149 = vpack.c.b16 %v2757, %v2733
    %v4150 = vpack.c.b16 %v2758, %v2734
    %v4151 = vpack.c.b16 %v2759, %v2735
    %v4152 = vpack.c.b16 %v2760, %v2736
    %v4153 = vpack.c.b16 %v2761, %v2737
    %v4154 = vpack.c.b16 %v2762, %v2738
    %v4155 = vpack.c.b16 %v2763, %v2739
    %v4156 = vpack.c.b16 %v2764, %v2740
    %v4157 = vpack.c.b16 %v2765, %v2741
    %v4158 = vpack.c.b16 %v2766, %v2742
    %v4159 = vpack.c.b16 %v2767, %v2743
    %v4160 = vpack.c.b16 %v2768, %v2744
    %v4161 = vpack.c.b16 %v2769, %v2745
    %v4162 = vpack.c.b16 %v2770, %v2746
    %v4163 = vpack.c.b16 %v2771, %v2747
    %v4164 = vpack.c.b16 %v2772, %v2748
    %v4165 = vpack.c.b16 %v2773, %v2749
    %v4166 = vpack.c.b16 %v2774, %v2750
    %v4167 = vpack.c.b16 %v2799, %v2775
    %v4168 = vpack.c.b16 %v2800, %v2776
    %v4169 = vpack.c.b16 %v2801, %v2777
    %v4170 = vpack.c.b16 %v2802, %v2778
    %v4171 = vpack.c.b16 %v2803, %v2779
    %v4172 = vpack.c.b16 %v2804, %v2780
    %v4173 = vpack.c.b16 %v2805, %v2781
    %v4174 = vpack.c.b16 %v2806, %v2782
    %v4175 = vpack.c.b16 %v2807, %v2783
    %v4176 = vpack.c.b16 %v2808, %v2784
    %v4177 = vpack.c.b16 %v2809, %v2785
    %v4178 = vpack.c.b16 %v2810, %v2786
    %v4179 = vpack.c.b16 %v2811, %v2787
    %v4180 = vpack.c.b16 %v2812, %v2788
    %v4181 = vpack.c.b16 %v2813, %v2789
    %v4182 = vpack.c.b16 %v2814, %v2790
    %v4183 = vpack.c.b16 %v2815, %v2791
    %v4184 = vpack.c.b16 %v2816, %v2792
    %v4185 = vpack.c.b16 %v2817, %v2793
    %v4186 = vpack.c.b16 %v2818, %v2794
    %v4187 = vpack.c.b16 %v2819, %v2795
    %v4188 = vpack.c.b16 %v2820, %v2796
    %v4189 = vpack.c.b16 %v2821, %v2797
    %v4190 = vpack.c.b16 %v2822, %v2798
    %v4191 = vpack.c.b16 %v2847, %v2823
    %v4192 = vpack.c.b16 %v2848, %v2824
    %v4193 = vpack.c.b16 %v2849, %v2825
    %v4194 = vpack.c.b16 %v2850, %v2826
    %v4195 = vpack.c.b16 %v2851, %v2827
    %v4196 = vpack.c.b16 %v2852, %v2828
    %v4197 = vpack.c.b16 %v2853, %v2829
    %v4198 = vpack.c.b16 %v2854, %v2830
    %v4199 = vpack.c.b16 %v2855, %v2831
    %v4200 = vpack.c.b16 %v2856, %v2832
    %v4201 = vpack.c.b16 %v2857, %v2833
    %v4202 = vpack.c.b16 %v2858, %v2834
    %v4203 = vpack.c.b16 %v2859, %v2835
    %v4204 = vpack.c.b16 %v2860, %v2836
    %v4205 = vpack.c.b16 %v2861, %v2837
    %v4206 = vpack.c.b16 %v2862, %v2838
    %v4207 = vpack.c.b16 %v2863, %v2839
    %v4208 = vpack.c.b16 %v2864, %v2840
    %v4209 = vpack.c.b16 %v2865, %v2841
    %v4210 = vpack.c.b16 %v2866, %v2842
    %v4211 = vpack.c.b16 %v2867, %v2843
    %v4212 = vpack.c.b16 %v2868, %v2844
    %v4213 = vpack.c.b16 %v2869, %v2845
    %v4214 = vpack.c.b16 %v2870, %v2846
    %v4215 = vpack.c.b16 %v2895, %v2871
    %v4216 = vpack.c.b16 %v2896, %v2872
    %v4217 = vpack.c.b16 %v2897, %v2873
    %v4218 = vpack.c.b16 %v2898, %v2874
    %v4219 = vpack.c.b16 %v2899, %v2875
    %v4220 = vpack.c.b16 %v2900, %v2876
    %v4221 = vpack.c.b16 %v2901, %v2877
    %v4222 = vpack.c.b16 %v2902, %v2878
    %v4223 = vpack.c.b16 %v2903, %v2879
    %v4224 = vpack.c.b16 %v2904, %v2880
    %v4225 = vpack.c.b16 %v2905, %v2881
    %v4226 = vpack.c.b16 %v2906, %v2882
    %v4227 = vpack.c.b16 %v2907, %v2883
    %v4228 = vpack.c.b16 %v2908, %v2884
    %v4229 = vpack.c.b16 %v2909, %v2885
    %v4230 = vpack.c.b16 %v2910, %v2886
    %v4231 = vpack.c.b16 %v2911, %v2887
    %v4232 = vpack.c.b16 %v2912, %v2888
    %v4233 = vpack.c.b16 %v2913, %v2889
    %v4234 = vpack.c.b16 %v2914, %v2890
    %v4235 = vpack.c.b16 %v2915, %v2891
    %v4236 = vpack.c.b16 %v2916, %v2892
    %v4237 = vpack.c.b16 %v2917, %v2893
    %v4238 = vpack.c.b16 %v2918, %v2894
    %v4239 = vpack.c.b16 %v2943, %v2919
    %v4240 = vpack.c.b16 %v2944, %v2920
    %v4241 = vpack.c.b16 %v2945, %v2921
    %v4242 = vpack.c.b16 %v2946, %v2922
    %v4243 = vpack.c.b16 %v2947, %v2923
    %v4244 = vpack.c.b16 %v2948, %v2924
    %v4245 = vpack.c.b16 %v2949, %v2925
    %v4246 = vpack.c.b16 %v2950, %v2926
    %v4247 = vpack.c.b16 %v2951, %v2927
    %v4248 = vpack.c.b16 %v2952, %v2928
    %v4249 = vpack.c.b16 %v2953, %v2929
    %v4250 = vpack.c.b16 %v2954, %v2930
    %v4251 = vpack.c.b16 %v2955, %v2931
    %v4252 = vpack.c.b16 %v2956, %v2932
    %v4253 = vpack.c.b16 %v2957, %v2933
    %v4254 = vpack.c.b16 %v2958, %v2934
    %v4255 = vpack.c.b16 %v2959, %v2935
    %v4256 = vpack.c.b16 %v2960, %v2936
    %v4257 = vpack.c.b16 %v2961, %v2937
    %v4258 = vpack.c.b16 %v2962, %v2938
    %v4259 = vpack.c.b16 %v2963, %v2939
    %v4260 = vpack.c.b16 %v2964, %v2940
    %v4261 = vpack.c.b16 %v2965, %v2941
    %v4262 = vpack.c.b16 %v2966, %v2942
    %v4263 = vpack.c.b16 %v2991, %v2967
    %v4264 = vpack.c.b16 %v2992, %v2968
    %v4265 = vpack.c.b16 %v2993, %v2969
    %v4266 = vpack.c.b16 %v2994, %v2970
    %v4267 = vpack.c.b16 %v2995, %v2971
    %v4268 = vpack.c.b16 %v2996, %v2972
    %v4269 = vpack.c.b16 %v2997, %v2973
    %v4270 = vpack.c.b16 %v2998, %v2974
    %v4271 = vpack.c.b16 %v2999, %v2975
    %v4272 = vpack.c.b16 %v3000, %v2976
    %v4273 = vpack.c.b16 %v3001, %v2977
    %v4274 = vpack.c.b16 %v3002, %v2978
    %v4275 = vpack.c.b16 %v3003, %v2979
    %v4276 = vpack.c.b16 %v3004, %v2980
    %v4277 = vpack.c.b16 %v3005, %v2981
    %v4278 = vpack.c.b16 %v3006, %v2982
    %v4279 = vpack.c.b16 %v3007, %v2983
    %v4280 = vpack.c.b16 %v3008, %v2984
    %v4281 = vpack.c.b16 %v3009, %v2985
    %v4282 = vpack.c.b16 %v3010, %v2986
    %v4283 = vpack.c.b16 %v3011, %v2987
    %v4284 = vpack.c.b16 %v3012, %v2988
    %v4285 = vpack.c.b16 %v3013, %v2989
    %v4286 = vpack.c.b16 %v3014, %v2990
    %v4287 = vpack.c.b16 %v3039, %v3015
    %v4288 = vpack.c.b16 %v3040, %v3016
    %v4289 = vpack.c.b16 %v3041, %v3017
    %v4290 = vpack.c.b16 %v3042, %v3018
    %v4291 = vpack.c.b16 %v3043, %v3019
    %v4292 = vpack.c.b16 %v3044, %v3020
    %v4293 = vpack.c.b16 %v3045, %v3021
    %v4294 = vpack.c.b16 %v3046, %v3022
    %v4295 = vpack.c.b16 %v3047, %v3023
    %v4296 = vpack.c.b16 %v3048, %v3024
    %v4297 = vpack.c.b16 %v3049, %v3025
    %v4298 = vpack.c.b16 %v3050, %v3026
    %v4299 = vpack.c.b16 %v3051, %v3027
    %v4300 = vpack.c.b16 %v3052, %v3028
    %v4301 = vpack.c.b16 %v3053, %v3029
    %v4302 = vpack.c.b16 %v3054, %v3030
    %v4303 = vpack.c.b16 %v3055, %v3031
    %v4304 = vpack.c.b16 %v3056, %v3032
    %v4305 = vpack.c.b16 %v3057, %v3033
    %v4306 = vpack.c.b16 %v3058, %v3034
    %v4307 = vpack.c.b16 %v3059, %v3035
    %v4308 = vpack.c.b16 %v3060, %v3036
    %v4309 = vpack.c.b16 %v3061, %v3037
    %v4310 = vpack.c.b16 %v3062, %v3038
    %v4311 = vpack.c.b16 %v3087, %v3063
    %v4312 = vpack.c.b16 %v3088, %v3064
    %v4313 = vpack.c.b16 %v3089, %v3065
    %v4314 = vpack.c.b16 %v3090, %v3066
    %v4315 = vpack.c.b16 %v3091, %v3067
    %v4316 = vpack.c.b16 %v3092, %v3068
    %v4317 = vpack.c.b16 %v3093, %v3069
    %v4318 = vpack.c.b16 %v3094, %v3070
    %v4319 = vpack.c.b16 %v3095, %v3071
    %v4320 = vpack.c.b16 %v3096, %v3072
    %v4321 = vpack.c.b16 %v3097, %v3073
    %v4322 = vpack.c.b16 %v3098, %v3074
    %v4323 = vpack.c.b16 %v3099, %v3075
    %v4324 = vpack.c.b16 %v3100, %v3076
    %v4325 = vpack.c.b16 %v3101, %v3077
    %v4326 = vpack.c.b16 %v3102, %v3078
    %v4327 = vpack.c.b16 %v3103, %v3079
    %v4328 = vpack.c.b16 %v3104, %v3080
    %v4329 = vpack.c.b16 %v3105, %v3081
    %v4330 = vpack.c.b16 %v3106, %v3082
    %v4331 = vpack.c.b16 %v3107, %v3083
    %v4332 = vpack.c.b16 %v3108, %v3084
    %v4333 = vpack.c.b16 %v3109, %v3085
    %v4334 = vpack.c.b16 %v3110, %v3086
    %v4335 = vpack.c.b16 %v3135, %v3111
    %v4336 = vpack.c.b16 %v3136, %v3112
    %v4337 = vpack.c.b16 %v3137, %v3113
    %v4338 = vpack.c.b16 %v3138, %v3114
    %v4339 = vpack.c.b16 %v3139, %v3115
    %v4340 = vpack.c.b16 %v3140, %v3116
    %v4341 = vpack.c.b16 %v3141, %v3117
    %v4342 = vpack.c.b16 %v3142, %v3118
    %v4343 = vpack.c.b16 %v3143, %v3119
    %v4344 = vpack.c.b16 %v3144, %v3120
    %v4345 = vpack.c.b16 %v3145, %v3121
    %v4346 = vpack.c.b16 %v3146, %v3122
    %v4347 = vpack.c.b16 %v3147, %v3123
    %v4348 = vpack.c.b16 %v3148, %v3124
    %v4349 = vpack.c.b16 %v3149, %v3125
    %v4350 = vpack.c.b16 %v3150, %v3126
    %v4351 = vpack.c.b16 %v3151, %v3127
    %v4352 = vpack.c.b16 %v3152, %v3128
    %v4353 = vpack.c.b16 %v3153, %v3129
    %v4354 = vpack.c.b16 %v3154, %v3130
    %v4355 = vpack.c.b16 %v3155, %v3131
    %v4356 = vpack.c.b16 %v3156, %v3132
    %v4357 = vpack.c.b16 %v3157, %v3133
    %v4358 = vpack.c.b16 %v3158, %v3134
    %v4359 = vpack.c.b16 %v3183, %v3159
    %v4360 = vpack.c.b16 %v3184, %v3160
    %v4361 = vpack.c.b16 %v3185, %v3161
    %v4362 = vpack.c.b16 %v3186, %v3162
    %v4363 = vpack.c.b16 %v3187, %v3163
    %v4364 = vpack.c.b16 %v3188, %v3164
    %v4365 = vpack.c.b16 %v3189, %v3165
    %v4366 = vpack.c.b16 %v3190, %v3166
    %v4367 = vpack.c.b16 %v3191, %v3167
    %v4368 = vpack.c.b16 %v3192, %v3168
    %v4369 = vpack.c.b16 %v3193, %v3169
    %v4370 = vpack.c.b16 %v3194, %v3170
    %v4371 = vpack.c.b16 %v3195, %v3171
    %v4372 = vpack.c.b16 %v3196, %v3172
    %v4373 = vpack.c.b16 %v3197, %v3173
    %v4374 = vpack.c.b16 %v3198, %v3174
    %v4375 = vpack.c.b16 %v3199, %v3175
    %v4376 = vpack.c.b16 %v3200, %v3176
    %v4377 = vpack.c.b16 %v3201, %v3177
    %v4378 = vpack.c.b16 %v3202, %v3178
    %v4379 = vpack.c.b16 %v3203, %v3179
    %v4380 = vpack.c.b16 %v3204, %v3180
    %v4381 = vpack.c.b16 %v3205, %v3181
    %v4382 = vpack.c.b16 %v3206, %v3182
    %v4383 = vpack.c.b16 %v3231, %v3207
    %v4384 = vpack.c.b16 %v3232, %v3208
    %v4385 = vpack.c.b16 %v3233, %v3209
    %v4386 = vpack.c.b16 %v3234, %v3210
    %v4387 = vpack.c.b16 %v3235, %v3211
    %v4388 = vpack.c.b16 %v3236, %v3212
    %v4389 = vpack.c.b16 %v3237, %v3213
    %v4390 = vpack.c.b16 %v3238, %v3214
    %v4391 = vpack.c.b16 %v3239, %v3215
    %v4392 = vpack.c.b16 %v3240, %v3216
    %v4393 = vpack.c.b16 %v3241, %v3217
    %v4394 = vpack.c.b16 %v3242, %v3218
    %v4395 = vpack.c.b16 %v3243, %v3219
    %v4396 = vpack.c.b16 %v3244, %v3220
    %v4397 = vpack.c.b16 %v3245, %v3221
    %v4398 = vpack.c.b16 %v3246, %v3222
    %v4399 = vpack.c.b16 %v3247, %v3223
    %v4400 = vpack.c.b16 %v3248, %v3224
    %v4401 = vpack.c.b16 %v3249, %v3225
    %v4402 = vpack.c.b16 %v3250, %v3226
    %v4403 = vpack.c.b16 %v3251, %v3227
    %v4404 = vpack.c.b16 %v3252, %v3228
    %v4405 = vpack.c.b16 %v3253, %v3229
    %v4406 = vpack.c.b16 %v3254, %v3230
    %v4407 = vpack.c.b16 %v3279, %v3255
    %v4408 = vpack.c.b16 %v3280, %v3256
    %v4409 = vpack.c.b16 %v3281, %v3257
    %v4410 = vpack.c.b16 %v3282, %v3258
    %v4411 = vpack.c.b16 %v3283, %v3259
    %v4412 = vpack.c.b16 %v3284, %v3260
    %v4413 = vpack.c.b16 %v3285, %v3261
    %v4414 = vpack.c.b16 %v3286, %v3262
    %v4415 = vpack.c.b16 %v3287, %v3263
    %v4416 = vpack.c.b16 %v3288, %v3264
    %v4417 = vpack.c.b16 %v3289, %v3265
    %v4418 = vpack.c.b16 %v3290, %v3266
    %v4419 = vpack.c.b16 %v3291, %v3267
    %v4420 = vpack.c.b16 %v3292, %v3268
    %v4421 = vpack.c.b16 %v3293, %v3269
    %v4422 = vpack.c.b16 %v3294, %v3270
    %v4423 = vpack.c.b16 %v3295, %v3271
    %v4424 = vpack.c.b16 %v3296, %v3272
    %v4425 = vpack.c.b16 %v3297, %v3273
    %v4426 = vpack.c.b16 %v3298, %v3274
    %v4427 = vpack.c.b16 %v3299, %v3275
    %v4428 = vpack.c.b16 %v3300, %v3276
    %v4429 = vpack.c.b16 %v3301, %v3277
    %v4430 = vpack.c.b16 %v3302, %v3278
    %v4431 = vpack.c.b16 %v3327, %v3303
    %v4432 = vpack.c.b16 %v3328, %v3304
    %v4433 = vpack.c.b16 %v3329, %v3305
    %v4434 = vpack.c.b16 %v3330, %v3306
    %v4435 = vpack.c.b16 %v3331, %v3307
    %v4436 = vpack.c.b16 %v3332, %v3308
    %v4437 = vpack.c.b16 %v3333, %v3309
    %v4438 = vpack.c.b16 %v3334, %v3310
    %v4439 = vpack.c.b16 %v3335, %v3311
    %v4440 = vpack.c.b16 %v3336, %v3312
    %v4441 = vpack.c.b16 %v3337, %v3313
    %v4442 = vpack.c.b16 %v3338, %v3314
    %v4443 = vpack.c.b16 %v3339, %v3315
    %v4444 = vpack.c.b16 %v3340, %v3316
    %v4445 = vpack.c.b16 %v3341, %v3317
    %v4446 = vpack.c.b16 %v3342, %v3318
    %v4447 = vpack.c.b16 %v3343, %v3319
    %v4448 = vpack.c.b16 %v3344, %v3320
    %v4449 = vpack.c.b16 %v3345, %v3321
    %v4450 = vpack.c.b16 %v3346, %v3322
    %v4451 = vpack.c.b16 %v3347, %v3323
    %v4452 = vpack.c.b16 %v3348, %v3324
    %v4453 = vpack.c.b16 %v3349, %v3325
    %v4454 = vpack.c.b16 %v3350, %v3326
    %v4455 = vpack.c.b16 %v3375, %v3351
    %v4456 = vpack.c.b16 %v3376, %v3352
    %v4457 = vpack.c.b16 %v3377, %v3353
    %v4458 = vpack.c.b16 %v3378, %v3354
    %v4459 = vpack.c.b16 %v3379, %v3355
    %v4460 = vpack.c.b16 %v3380, %v3356
    %v4461 = vpack.c.b16 %v3381, %v3357
    %v4462 = vpack.c.b16 %v3382, %v3358
    %v4463 = vpack.c.b16 %v3383, %v3359
    %v4464 = vpack.c.b16 %v3384, %v3360
    %v4465 = vpack.c.b16 %v3385, %v3361
    %v4466 = vpack.c.b16 %v3386, %v3362
    %v4467 = vpack.c.b16 %v3387, %v3363
    %v4468 = vpack.c.b16 %v3388, %v3364
    %v4469 = vpack.c.b16 %v3389, %v3365
    %v4470 = vpack.c.b16 %v3390, %v3366
    %v4471 = vpack.c.b16 %v3391, %v3367
    %v4472 = vpack.c.b16 %v3392, %v3368
    %v4473 = vpack.c.b16 %v3393, %v3369
    %v4474 = vpack.c.b16 %v3394, %v3370
    %v4475 = vpack.c.b16 %v3395, %v3371
    %v4476 = vpack.c.b16 %v3396, %v3372
    %v4477 = vpack.c.b16 %v3397, %v3373
    %v4478 = vpack.c.b16 %v3398, %v3374
    %v4479 = vpack.c.b16 %v3423, %v3399
    %v4480 = vpack.c.b16 %v3424, %v3400
    %v4481 = vpack.c.b16 %v3425, %v3401
    %v4482 = vpack.c.b16 %v3426, %v3402
    %v4483 = vpack.c.b16 %v3427, %v3403
    %v4484 = vpack.c.b16 %v3428, %v3404
    %v4485 = vpack.c.b16 %v3429, %v3405
    %v4486 = vpack.c.b16 %v3430, %v3406
    %v4487 = vpack.c.b16 %v3431, %v3407
    %v4488 = vpack.c.b16 %v3432, %v3408
    %v4489 = vpack.c.b16 %v3433, %v3409
    %v4490 = vpack.c.b16 %v3434, %v3410
    %v4491 = vpack.c.b16 %v3435, %v3411
    %v4492 = vpack.c.b16 %v3436, %v3412
    %v4493 = vpack.c.b16 %v3437, %v3413
    %v4494 = vpack.c.b16 %v3438, %v3414
    %v4495 = vpack.c.b16 %v3439, %v3415
    %v4496 = vpack.c.b16 %v3440, %v3416
    %v4497 = vpack.c.b16 %v3441, %v3417
    %v4498 = vpack.c.b16 %v3442, %v3418
    %v4499 = vpack.c.b16 %v3443, %v3419
    %v4500 = vpack.c.b16 %v3444, %v3420
    %v4501 = vpack.c.b16 %v3445, %v3421
    %v4502 = vpack.c.b16 %v3446, %v3422
    %v4503 = vpack.c.b16 %v3471, %v3447
    %v4504 = vpack.c.b16 %v3472, %v3448
    %v4505 = vpack.c.b16 %v3473, %v3449
    %v4506 = vpack.c.b16 %v3474, %v3450
    %v4507 = vpack.c.b16 %v3475, %v3451
    %v4508 = vpack.c.b16 %v3476, %v3452
    %v4509 = vpack.c.b16 %v3477, %v3453
    %v4510 = vpack.c.b16 %v3478, %v3454
    %v4511 = vpack.c.b16 %v3479, %v3455
    %v4512 = vpack.c.b16 %v3480, %v3456
    %v4513 = vpack.c.b16 %v3481, %v3457
    %v4514 = vpack.c.b16 %v3482, %v3458
    %v4515 = vpack.c.b16 %v3483, %v3459
    %v4516 = vpack.c.b16 %v3484, %v3460
    %v4517 = vpack.c.b16 %v3485, %v3461
    %v4518 = vpack.c.b16 %v3486, %v3462
    %v4519 = vpack.c.b16 %v3487, %v3463
    %v4520 = vpack.c.b16 %v3488, %v3464
    %v4521 = vpack.c.b16 %v3489, %v3465
    %v4522 = vpack.c.b16 %v3490, %v3466
    %v4523 = vpack.c.b16 %v3491, %v3467
    %v4524 = vpack.c.b16 %v3492, %v3468
    %v4525 = vpack.c.b16 %v3493, %v3469
    %v4526 = vpack.c.b16 %v3494, %v3470
    %v4527 = vpack.c.b16 %v3519, %v3495
    %v4528 = vpack.c.b16 %v3520, %v3496
    %v4529 = vpack.c.b16 %v3521, %v3497
    %v4530 = vpack.c.b16 %v3522, %v3498
    %v4531 = vpack.c.b16 %v3523, %v3499
    %v4532 = vpack.c.b16 %v3524, %v3500
    %v4533 = vpack.c.b16 %v3525, %v3501
    %v4534 = vpack.c.b16 %v3526, %v3502
    %v4535 = vpack.c.b16 %v3527, %v3503
    %v4536 = vpack.c.b16 %v3528, %v3504
    %v4537 = vpack.c.b16 %v3529, %v3505
    %v4538 = vpack.c.b16 %v3530, %v3506
    %v4539 = vpack.c.b16 %v3531, %v3507
    %v4540 = vpack.c.b16 %v3532, %v3508
    %v4541 = vpack.c.b16 %v3533, %v3509
    %v4542 = vpack.c.b16 %v3534, %v3510
    %v4543 = vpack.c.b16 %v3535, %v3511
    %v4544 = vpack.c.b16 %v3536, %v3512
    %v4545 = vpack.c.b16 %v3537, %v3513
    %v4546 = vpack.c.b16 %v3538, %v3514
    %v4547 = vpack.c.b16 %v3539, %v3515
    %v4548 = vpack.c.b16 %v3540, %v3516
    %v4549 = vpack.c.b16 %v3541, %v3517
    %v4550 = vpack.c.b16 %v3542, %v3518
    %v4551 = vpack.c.b16 %v3567, %v3543
    %v4552 = vpack.c.b16 %v3568, %v3544
    %v4553 = vpack.c.b16 %v3569, %v3545
    %v4554 = vpack.c.b16 %v3570, %v3546
    %v4555 = vpack.c.b16 %v3571, %v3547
    %v4556 = vpack.c.b16 %v3572, %v3548
    %v4557 = vpack.c.b16 %v3573, %v3549
    %v4558 = vpack.c.b16 %v3574, %v3550
    %v4559 = vpack.c.b16 %v3575, %v3551
    %v4560 = vpack.c.b16 %v3576, %v3552
    %v4561 = vpack.c.b16 %v3577, %v3553
    %v4562 = vpack.c.b16 %v3578, %v3554
    %v4563 = vpack.c.b16 %v3579, %v3555
    %v4564 = vpack.c.b16 %v3580, %v3556
    %v4565 = vpack.c.b16 %v3581, %v3557
    %v4566 = vpack.c.b16 %v3582, %v3558
    %v4567 = vpack.c.b16 %v3583, %v3559
    %v4568 = vpack.c.b16 %v3584, %v3560
    %v4569 = vpack.c.b16 %v3585, %v3561
    %v4570 = vpack.c.b16 %v3586, %v3562
    %v4571 = vpack.c.b16 %v3587, %v3563
    %v4572 = vpack.c.b16 %v3588, %v3564
    %v4573 = vpack.c.b16 %v3589, %v3565
    %v4574 = vpack.c.b16 %v3590, %v3566
    %v4575 = vpack.c.b16 %v3615, %v3591
    %v4576 = vpack.c.b16 %v3616, %v3592
    %v4577 = vpack.c.b16 %v3617, %v3593
    %v4578 = vpack.c.b16 %v3618, %v3594
    %v4579 = vpack.c.b16 %v3619, %v3595
    %v4580 = vpack.c.b16 %v3620, %v3596
    %v4581 = vpack.c.b16 %v3621, %v3597
    %v4582 = vpack.c.b16 %v3622, %v3598
    %v4583 = vpack.c.b16 %v3623, %v3599
    %v4584 = vpack.c.b16 %v3624, %v3600
    %v4585 = vpack.c.b16 %v3625, %v3601
    %v4586 = vpack.c.b16 %v3626, %v3602
    %v4587 = vpack.c.b16 %v3627, %v3603
    %v4588 = vpack.c.b16 %v3628, %v3604
    %v4589 = vpack.c.b16 %v3629, %v3605
    %v4590 = vpack.c.b16 %v3630, %v3606
    %v4591 = vpack.c.b16 %v3631, %v3607
    %v4592 = vpack.c.b16 %v3632, %v3608
    %v4593 = vpack.c.b16 %v3633, %v3609
    %v4594 = vpack.c.b16 %v3634, %v3610
    %v4595 = vpack.c.b16 %v3635, %v3611
    %v4596 = vpack.c.b16 %v3636, %v3612
    %v4597 = vpack.c.b16 %v3637, %v3613
    %v4598 = vpack.c.b16 %v3638, %v3614
    %v4599 = vpack.c.b16 %v3663, %v3639
    %v4600 = vpack.c.b16 %v3664, %v3640
    %v4601 = vpack.c.b16 %v3665, %v3641
    %v4602 = vpack.c.b16 %v3666, %v3642
    %v4603 = vpack.c.b16 %v3667, %v3643
    %v4604 = vpack.c.b16 %v3668, %v3644
    %v4605 = vpack.c.b16 %v3669, %v3645
    %v4606 = vpack.c.b16 %v3670, %v3646
    %v4607 = vpack.c.b16 %v3671, %v3647
    %v4608 = vpack.c.b16 %v3672, %v3648
    %v4609 = vpack.c.b16 %v3673, %v3649
    %v4610 = vpack.c.b16 %v3674, %v3650
    %v4611 = vpack.c.b16 %v3675, %v3651
    %v4612 = vpack.c.b16 %v3676, %v3652
    %v4613 = vpack.c.b16 %v3677, %v3653
    %v4614 = vpack.c.b16 %v3678, %v3654
    %v4615 = vpack.c.b16 %v3679, %v3655
    %v4616 = vpack.c.b16 %v3680, %v3656
    %v4617 = vpack.c.b16 %v3681, %v3657
    %v4618 = vpack.c.b16 %v3682, %v3658
    %v4619 = vpack.c.b16 %v3683, %v3659
    %v4620 = vpack.c.b16 %v3684, %v3660
    %v4621 = vpack.c.b16 %v3685, %v3661
    %v4622 = vpack.c.b16 %v3686, %v3662
    %v4623 = vpack.c.b16 %v3711, %v3687
    %v4624 = vpack.c.b16 %v3712, %v3688
    %v4625 = vpack.c.b16 %v3713, %v3689
    %v4626 = vpack.c.b16 %v3714, %v3690
    %v4627 = vpack.c.b16 %v3715, %v3691
    %v4628 = vpack.c.b16 %v3716, %v3692
    %v4629 = vpack.c.b16 %v3717, %v3693
    %v4630 = vpack.c.b16 %v3718, %v3694
    %v4631 = vpack.c.b16 %v3719, %v3695
    %v4632 = vpack.c.b16 %v3720, %v3696
    %v4633 = vpack.c.b16 %v3721, %v3697
    %v4634 = vpack.c.b16 %v3722, %v3698
    %v4635 = vpack.c.b16 %v3723, %v3699
    %v4636 = vpack.c.b16 %v3724, %v3700
    %v4637 = vpack.c.b16 %v3725, %v3701
    %v4638 = vpack.c.b16 %v3726, %v3702
    %v4639 = vpack.c.b16 %v3727, %v3703
    %v4640 = vpack.c.b16 %v3728, %v3704
    %v4641 = vpack.c.b16 %v3729, %v3705
    %v4642 = vpack.c.b16 %v3730, %v3706
    %v4643 = vpack.c.b16 %v3731, %v3707
    %v4644 = vpack.c.b16 %v3732, %v3708
    %v4645 = vpack.c.b16 %v3733, %v3709
    %v4646 = vpack.c.b16 %v3734, %v3710
    %v4647 = vpack.c.b16 %v3759, %v3735
    %v4648 = vpack.c.b16 %v3760, %v3736
    %v4649 = vpack.c.b16 %v3761, %v3737
    %v4650 = vpack.c.b16 %v3762, %v3738
    %v4651 = vpack.c.b16 %v3763, %v3739
    %v4652 = vpack.c.b16 %v3764, %v3740
    %v4653 = vpack.c.b16 %v3765, %v3741
    %v4654 = vpack.c.b16 %v3766, %v3742
    %v4655 = vpack.c.b16 %v3767, %v3743
    %v4656 = vpack.c.b16 %v3768, %v3744
    %v4657 = vpack.c.b16 %v3769, %v3745
    %v4658 = vpack.c.b16 %v3770, %v3746
    %v4659 = vpack.c.b16 %v3771, %v3747
    %v4660 = vpack.c.b16 %v3772, %v3748
    %v4661 = vpack.c.b16 %v3773, %v3749
    %v4662 = vpack.c.b16 %v3774, %v3750
    %v4663 = vpack.c.b16 %v3775, %v3751
    %v4664 = vpack.c.b16 %v3776, %v3752
    %v4665 = vpack.c.b16 %v3777, %v3753
    %v4666 = vpack.c.b16 %v3778, %v3754
    %v4667 = vpack.c.b16 %v3779, %v3755
    %v4668 = vpack.c.b16 %v3780, %v3756
    %v4669 = vpack.c.b16 %v3781, %v3757
    %v4670 = vpack.c.b16 %v3782, %v3758
    %v4671 = vpack.c.b16 %v3807, %v3783
    %v4672 = vpack.c.b16 %v3808, %v3784
    %v4673 = vpack.c.b16 %v3809, %v3785
    %v4674 = vpack.c.b16 %v3810, %v3786
    %v4675 = vpack.c.b16 %v3811, %v3787
    %v4676 = vpack.c.b16 %v3812, %v3788
    %v4677 = vpack.c.b16 %v3813, %v3789
    %v4678 = vpack.c.b16 %v3814, %v3790
    %v4679 = vpack.c.b16 %v3815, %v3791
    %v4680 = vpack.c.b16 %v3816, %v3792
    %v4681 = vpack.c.b16 %v3817, %v3793
    %v4682 = vpack.c.b16 %v3818, %v3794
    %v4683 = vpack.c.b16 %v3819, %v3795
    %v4684 = vpack.c.b16 %v3820, %v3796
    %v4685 = vpack.c.b16 %v3821, %v3797
    %v4686 = vpack.c.b16 %v3822, %v3798
    %v4687 = vpack.c.b16 %v3823, %v3799
    %v4688 = vpack.c.b16 %v3824, %v3800
    %v4689 = vpack.c.b16 %v3825, %v3801
    %v4690 = vpack.c.b16 %v3826, %v3802
    %v4691 = vpack.c.b16 %v3827, %v3803
    %v4692 = vpack.c.b16 %v3828, %v3804
    %v4693 = vpack.c.b16 %v3829, %v3805
    %v4694 = vpack.c.b16 %v3830, %v3806
    %v4695 = vpack.c.b16 %v3855, %v3831
    %v4696 = vpack.c.b16 %v3856, %v3832
    %v4697 = vpack.c.b16 %v3857, %v3833
    %v4698 = vpack.c.b16 %v3858, %v3834
    %v4699 = vpack.c.b16 %v3859, %v3835
    %v4700 = vpack.c.b16 %v3860, %v3836
    %v4701 = vpack.c.b16 %v3861, %v3837
    %v4702 = vpack.c.b16 %v3862, %v3838
    %v4703 = vpack.c.b16 %v3863, %v3839
    %v4704 = vpack.c.b16 %v3864, %v3840
    %v4705 = vpack.c.b16 %v3865, %v3841
    %v4706 = vpack.c.b16 %v3866, %v3842
    %v4707 = vpack.c.b16 %v3867, %v3843
    %v4708 = vpack.c.b16 %v3868, %v3844
    %v4709 = vpack.c.b16 %v3869, %v3845
    %v4710 = vpack.c.b16 %v3870, %v3846
    %v4711 = vpack.c.b16 %v3871, %v3847
    %v4712 = vpack.c.b16 %v3872, %v3848
    %v4713 = vpack.c.b16 %v3873, %v3849
    %v4714 = vpack.c.b16 %v3874, %v3850
    %v4715 = vpack.c.b16 %v3875, %v3851
    %v4716 = vpack.c.b16 %v3876, %v3852
    %v4717 = vpack.c.b16 %v3877, %v3853
    %v4718 = vpack.c.b16 %v3878, %v3854
    %v4719 = vpack.c.b16 %v3903, %v3879
    %v4720 = vpack.c.b16 %v3904, %v3880
    %v4721 = vpack.c.b16 %v3905, %v3881
    %v4722 = vpack.c.b16 %v3906, %v3882
    %v4723 = vpack.c.b16 %v3907, %v3883
    %v4724 = vpack.c.b16 %v3908, %v3884
    %v4725 = vpack.c.b16 %v3909, %v3885
    %v4726 = vpack.c.b16 %v3910, %v3886
    %v4727 = vpack.c.b16 %v3911, %v3887
    %v4728 = vpack.c.b16 %v3912, %v3888
    %v4729 = vpack.c.b16 %v3913, %v3889
    %v4730 = vpack.c.b16 %v3914, %v3890
    %v4731 = vpack.c.b16 %v3915, %v3891
    %v4732 = vpack.c.b16 %v3916, %v3892
    %v4733 = vpack.c.b16 %v3917, %v3893
    %v4734 = vpack.c.b16 %v3918, %v3894
    %v4735 = vpack.c.b16 %v3919, %v3895
    %v4736 = vpack.c.b16 %v3920, %v3896
    %v4737 = vpack.c.b16 %v3921, %v3897
    %v4738 = vpack.c.b16 %v3922, %v3898
    %v4739 = vpack.c.b16 %v3923, %v3899
    %v4740 = vpack.c.b16 %v3924, %v3900
    %v4741 = vpack.c.b16 %v3925, %v3901
    %v4742 = vpack.c.b16 %v3926, %v3902
    %v4743 = vpack.c.b16 %v3951, %v3927
    %v4744 = vpack.c.b16 %v3952, %v3928
    %v4745 = vpack.c.b16 %v3953, %v3929
    %v4746 = vpack.c.b16 %v3954, %v3930
    %v4747 = vpack.c.b16 %v3955, %v3931
    %v4748 = vpack.c.b16 %v3956, %v3932
    %v4749 = vpack.c.b16 %v3957, %v3933
    %v4750 = vpack.c.b16 %v3958, %v3934
    %v4751 = vpack.c.b16 %v3959, %v3935
    %v4752 = vpack.c.b16 %v3960, %v3936
    %v4753 = vpack.c.b16 %v3961, %v3937
    %v4754 = vpack.c.b16 %v3962, %v3938
    %v4755 = vpack.c.b16 %v3963, %v3939
    %v4756 = vpack.c.b16 %v3964, %v3940
    %v4757 = vpack.c.b16 %v3965, %v3941
    %v4758 = vpack.c.b16 %v3966, %v3942
    %v4759 = vpack.c.b16 %v3967, %v3943
    %v4760 = vpack.c.b16 %v3968, %v3944
    %v4761 = vpack.c.b16 %v3969, %v3945
    %v4762 = vpack.c.b16 %v3970, %v3946
    %v4763 = vpack.c.b16 %v3971, %v3947
    %v4764 = vpack.c.b16 %v3972, %v3948
    %v4765 = vpack.c.b16 %v3973, %v3949
    %v4766 = vpack.c.b16 %v3974, %v3950
    %v4767 = vpack.c.b16 %v3999, %v3975
    %v4768 = vpack.c.b16 %v4000, %v3976
    %v4769 = vpack.c.b16 %v4001, %v3977
    %v4770 = vpack.c.b16 %v4002, %v3978
    %v4771 = vpack.c.b16 %v4003, %v3979
    %v4772 = vpack.c.b16 %v4004, %v3980
    %v4773 = vpack.c.b16 %v4005, %v3981
    %v4774 = vpack.c.b16 %v4006, %v3982
    %v4775 = vpack.c.b16 %v4007, %v3983
    %v4776 = vpack.c.b16 %v4008, %v3984
    %v4777 = vpack.c.b16 %v4009, %v3985
    %v4778 = vpack.c.b16 %v4010, %v3986
    %v4779 = vpack.c.b16 %v4011, %v3987
    %v4780 = vpack.c.b16 %v4012, %v3988
    %v4781 = vpack.c.b16 %v4013, %v3989
    %v4782 = vpack.c.b16 %v4014, %v3990
    %v4783 = vpack.c.b16 %v4015, %v3991
    %v4784 = vpack.c.b16 %v4016, %v3992
    %v4785 = vpack.c.b16 %v4017, %v3993
    %v4786 = vpack.c.b16 %v4018, %v3994
    %v4787 = vpack.c.b16 %v4019, %v3995
    %v4788 = vpack.c.b16 %v4020, %v3996
    %v4789 = vpack.c.b16 %v4021, %v3997
    %v4790 = vpack.c.b16 %v4022, %v3998
    %v4791 = vpack.c.b16 %v4047, %v4023
    %v4792 = vpack.c.b16 %v4048, %v4024
    %v4793 = vpack.c.b16 %v4049, %v4025
    %v4794 = vpack.c.b16 %v4050, %v4026
    %v4795 = vpack.c.b16 %v4051, %v4027
    %v4796 = vpack.c.b16 %v4052, %v4028
    %v4797 = vpack.c.b16 %v4053, %v4029
    %v4798 = vpack.c.b16 %v4054, %v4030
    %v4799 = vpack.c.b16 %v4055, %v4031
    %v4800 = vpack.c.b16 %v4056, %v4032
    %v4801 = vpack.c.b16 %v4057, %v4033
    %v4802 = vpack.c.b16 %v4058, %v4034
    %v4803 = vpack.c.b16 %v4059, %v4035
    %v4804 = vpack.c.b16 %v4060, %v4036
    %v4805 = vpack.c.b16 %v4061, %v4037
    %v4806 = vpack.c.b16 %v4062, %v4038
    %v4807 = vpack.c.b16 %v4063, %v4039
    %v4808 = vpack.c.b16 %v4064, %v4040
    %v4809 = vpack.c.b16 %v4065, %v4041
    %v4810 = vpack.c.b16 %v4066, %v4042
    %v4811 = vpack.c.b16 %v4067, %v4043
    %v4812 = vpack.c.b16 %v4068, %v4044
    %v4813 = vpack.c.b16 %v4069, %v4045
    %v4814 = vpack.c.b16 %v4070, %v4046
    %v4815 = vpack.c.b16 %v4071, %v4071
    %v4816 = vpack.c.b16 %v4072, %v4072
    %v4817 = vpack.c.b16 %v4073, %v4073
    %v4818 = vpack.c.b16 %v4074, %v4074
    %v4819 = vpack.c.b16 %v4075, %v4075
    %v4820 = vpack.c.b16 %v4076, %v4076
    %v4821 = vpack.c.b16 %v4077, %v4077
    %v4822 = vpack.c.b16 %v4078, %v4078
    %v4823 = vpack.c.b16 %v4079, %v4079
    %v4824 = vpack.c.b16 %v4080, %v4080
    %v4825 = vpack.c.b16 %v4081, %v4081
    %v4826 = vpack.c.b16 %v4082, %v4082
    %v4827 = vpack.c.b16 %v4083, %v4083
    %v4828 = vpack.c.b16 %v4084, %v4084
    %v4829 = vpack.c.b16 %v4085, %v4085
    %v4830 = vpack.c.b16 %v4086, %v4086
    %v4831 = vpack.c.b16 %v4087, %v4087
    %v4832 = vpack.c.b16 %v4088, %v4088
    %v4833 = vpack.c.b16 %v4089, %v4089
    %v4834 = vpack.c.b16 %v4090, %v4090
    %v4835 = vpack.c.b16 %v4091, %v4091
    %v4836 = vpack.c.b16 %v4092, %v4092
    %v4837 = vpack.c.b16 %v4093, %v4093
    %v4838 = vpack.c.b16 %v4094, %v4094
    %vm5559 = vcmask 834560
    %v5561 = vsel %vm5559, %v1895, 0
    %vm5563 = vcmask 1042432
    %v5565 = vsel %vm5563, %v4815, 0
    %v5568 = vsel %vm5563, %v4816, 0
    %v5571 = vsel %vm5563, %v4817, 0
    %v5574 = vsel %vm5563, %v4818, 0
    %v5577 = vsel %vm5563, %v4819, 0
    %v5580 = vsel %vm5563, %v4820, 0
    %v5583 = vsel %vm5563, %v4821, 0
    %v5586 = vsel %vm5563, %v4822, 0
    %v5589 = vsel %vm5563, %v4823, 0
    %v5592 = vsel %vm5563, %v4824, 0
    %v5595 = vsel %vm5563, %v4825, 0
    %v5598 = vsel %vm5563, %v4826, 0
    %v5601 = vsel %vm5563, %v4827, 0
    %v5604 = vsel %vm5563, %v4828, 0
    %v5607 = vsel %vm5563, %v4829, 0
    %v5610 = vsel %vm5563, %v4830, 0
    %v5613 = vsel %vm5563, %v4831, 0
    %v5616 = vsel %vm5563, %v4832, 0
    %v5619 = vsel %vm5563, %v4833, 0
    %v5622 = vsel %vm5563, %v4834, 0
    %v5625 = vsel %vm5563, %v4835, 0
    %v5628 = vsel %vm5563, %v4836, 0
    %v5631 = vsel %vm5563, %v4837, 0
    %v5634 = vsel %vm5563, %v4838, 0
    %5636 = vmatprep.subr.bf16.mxu0 %v4096
    %5637 = vmatpush1.bf16.msra.mxu0 %v4095
    %5638 = vmatprep.subr.bf16.mxu0 %v4120
    %5639 = vmatpush1.bf16.msra.mxu0 %v4119
    %5640 = vmatprep.subr.bf16.mxu0 %v4144
    %5641 = vmatpush1.bf16.msra.mxu0 %v4143
    %5642 = vmatprep.subr.bf16.mxu0 %v4168
    %5643 = vmatpush1.bf16.msra.mxu0 %v4167
    %5644 = vmatprep.subr.bf16.mxu0 %v4192
    %5645 = vmatpush1.bf16.msra.mxu0 %v4191
    %5646 = vmatprep.subr.bf16.mxu0 %v4216
    %5647 = vmatpush1.bf16.msra.mxu0 %v4215
    %5648 = vmatprep.subr.bf16.mxu0 %v4240
    %5649 = vmatpush1.bf16.msra.mxu0 %v4239
    %5650 = vmatprep.subr.bf16.mxu0 %v4264
    %5651 = vmatpush1.bf16.msra.mxu0 %v4263
    %5652 = vmatprep.subr.bf16.mxu0 %v4288
    %5653 = vmatpush1.bf16.msra.mxu0 %v4287
    %5654 = vmatprep.subr.bf16.mxu0 %v4312
    %5655 = vmatpush1.bf16.msra.mxu0 %v4311
    %5656 = vmatprep.subr.bf16.mxu0 %v4336
    %5657 = vmatpush1.bf16.msra.mxu0 %v4335
    %5658 = vmatprep.subr.bf16.mxu0 %v4360
    %5659 = vmatpush1.bf16.msra.mxu0 %v4359
    %5660 = vmatprep.subr.bf16.mxu0 %v4384
    %5661 = vmatpush1.bf16.msra.mxu0 %v4383
    %5662 = vmatprep.subr.bf16.mxu0 %v4408
    %5663 = vmatpush1.bf16.msra.mxu0 %v4407
    %5664 = vmatprep.subr.bf16.mxu0 %v4432
    %5665 = vmatpush1.bf16.msra.mxu0 %v4431
    %5666 = vmatprep.subr.bf16.mxu0 %v4456
    %5667 = vmatpush1.bf16.msra.mxu0 %v4455
    %5668 = vmatprep.mubr.bf16.mxu0 %v1893
    %5669 = vmatmul.mubr.bf16.gmra.mrb[0].mxu0 %v1886
    %v5670 = vpop.f32.mrb[0].mxu0
    %v5671 = vadd.f32 0.0, %v5670
    %v5672 = vpop.f32.mrb[0].mxu0
    %v5673 = vadd.f32 0.0, %v5672
    %v5674 = vpop.f32.mrb[0].mxu0
    %v5675 = vpop.f32.mrb[0].mxu0
    %5676 = vdwg.mxu0
    %5677 = vmatprep.subr.bf16.mxu0 %v4480
    %5678 = vmatpush1.bf16.msra.mxu0 %v4479
    %5679 = vmatprep.subr.bf16.mxu0 %v4504
    %5680 = vmatpush1.bf16.msra.mxu0 %v4503
    %5681 = vmatprep.subr.bf16.mxu0 %v4528
    %5682 = vmatpush1.bf16.msra.mxu0 %v4527
    %5683 = vmatprep.subr.bf16.mxu0 %v4552
    %5684 = vmatpush1.bf16.msra.mxu0 %v4551
    %5685 = vmatprep.subr.bf16.mxu0 %v4576
    %5686 = vmatpush1.bf16.msra.mxu0 %v4575
    %5687 = vmatprep.subr.bf16.mxu0 %v4600
    %5688 = vmatpush1.bf16.msra.mxu0 %v4599
    %5689 = vmatprep.subr.bf16.mxu0 %v4624
    %5690 = vmatpush1.bf16.msra.mxu0 %v4623
    %5691 = vmatprep.subr.bf16.mxu0 %v4648
    %5692 = vmatpush1.bf16.msra.mxu0 %v4647
    %5693 = vmatprep.subr.bf16.mxu0 %v4672
    %5694 = vmatpush1.bf16.msra.mxu0 %v4671
    %5695 = vmatprep.subr.bf16.mxu0 %v4696
    %5696 = vmatpush1.bf16.msra.mxu0 %v4695
    %5697 = vmatprep.subr.bf16.mxu0 %v4720
    %5698 = vmatpush1.bf16.msra.mxu0 %v4719
    %5699 = vmatprep.subr.bf16.mxu0 %v4744
    %5700 = vmatpush1.bf16.msra.mxu0 %v4743
    %5701 = vmatprep.subr.bf16.mxu0 %v4768
    %5702 = vmatpush1.bf16.msra.mxu0 %v4767
    %5703 = vmatprep.subr.bf16.mxu0 %v4792
    %5704 = vmatpush1.bf16.msra.mxu0 %v4791
    %5705 = vmatprep.subr.bf16.mxu0 %v5568
    %5706 = vmatpush1.bf16.msra.mxu0 %v5565
    %5707 = vmatprep.subr.bf16.mxu0 0
    %5708 = vmatpush1.bf16.msra.mxu0 0
    %5709 = vmatprep.mubr.bf16.mxu0 %v5561
    %5710 = vmatmul.mubr.bf16.gmra.mrb[0].mxu0 %v1894
    %v5711 = vpop.f32.mrb[0].mxu0
    %v5712 = vadd.f32 %v5671, %v5711
    %v5713 = vpop.f32.mrb[0].mxu0
    %v5714 = vadd.f32 %v5673, %v5713
    %v5715 = vpop.f32.mrb[0].mxu0
    %v5716 = vpop.f32.mrb[0].mxu0
    %5717 = vdwg.mxu0
    %5718 = vmatprep.subr.bf16.mxu0 %v4098
    %5719 = vmatpush1.bf16.msra.mxu0 %v4097
    %5720 = vmatprep.subr.bf16.mxu0 %v4122
    %5721 = vmatpush1.bf16.msra.mxu0 %v4121
    %5722 = vmatprep.subr.bf16.mxu0 %v4146
    %5723 = vmatpush1.bf16.msra.mxu0 %v4145
    %5724 = vmatprep.subr.bf16.mxu0 %v4170
    %5725 = vmatpush1.bf16.msra.mxu0 %v4169
    %5726 = vmatprep.subr.bf16.mxu0 %v4194
    %5727 = vmatpush1.bf16.msra.mxu0 %v4193
    %5728 = vmatprep.subr.bf16.mxu0 %v4218
    %5729 = vmatpush1.bf16.msra.mxu0 %v4217
    %5730 = vmatprep.subr.bf16.mxu0 %v4242
    %5731 = vmatpush1.bf16.msra.mxu0 %v4241
    %5732 = vmatprep.subr.bf16.mxu0 %v4266
    %5733 = vmatpush1.bf16.msra.mxu0 %v4265
    %5734 = vmatprep.subr.bf16.mxu0 %v4290
    %5735 = vmatpush1.bf16.msra.mxu0 %v4289
    %5736 = vmatprep.subr.bf16.mxu0 %v4314
    %5737 = vmatpush1.bf16.msra.mxu0 %v4313
    %5738 = vmatprep.subr.bf16.mxu0 %v4338
    %5739 = vmatpush1.bf16.msra.mxu0 %v4337
    %5740 = vmatprep.subr.bf16.mxu0 %v4362
    %5741 = vmatpush1.bf16.msra.mxu0 %v4361
    %5742 = vmatprep.subr.bf16.mxu0 %v4386
    %5743 = vmatpush1.bf16.msra.mxu0 %v4385
    %5744 = vmatprep.subr.bf16.mxu0 %v4410
    %5745 = vmatpush1.bf16.msra.mxu0 %v4409
    %5746 = vmatprep.subr.bf16.mxu0 %v4434
    %5747 = vmatpush1.bf16.msra.mxu0 %v4433
    %5748 = vmatprep.subr.bf16.mxu0 %v4458
    %5749 = vmatpush1.bf16.msra.mxu0 %v4457
    %5750 = vmatprep.mubr.bf16.mxu0 %v1893
    %5751 = vmatmul.mubr.bf16.gmra.mrb[0].mxu0 %v1886
    %v5752 = vpop.f32.mrb[0].mxu0
    %v5753 = vadd.f32 0.0, %v5752
    %v5754 = vpop.f32.mrb[0].mxu0
    %v5755 = vadd.f32 0.0, %v5754
    %v5756 = vpop.f32.mrb[0].mxu0
    %v5757 = vpop.f32.mrb[0].mxu0
    %5758 = vdwg.mxu0
    %5759 = vmatprep.subr.bf16.mxu0 %v4482
    %5760 = vmatpush1.bf16.msra.mxu0 %v4481
    %5761 = vmatprep.subr.bf16.mxu0 %v4506
    %5762 = vmatpush1.bf16.msra.mxu0 %v4505
    %5763 = vmatprep.subr.bf16.mxu0 %v4530
    %5764 = vmatpush1.bf16.msra.mxu0 %v4529
    %5765 = vmatprep.subr.bf16.mxu0 %v4554
    %5766 = vmatpush1.bf16.msra.mxu0 %v4553
    %5767 = vmatprep.subr.bf16.mxu0 %v4578
    %5768 = vmatpush1.bf16.msra.mxu0 %v4577
    %5769 = vmatprep.subr.bf16.mxu0 %v4602
    %5770 = vmatpush1.bf16.msra.mxu0 %v4601
    %5771 = vmatprep.subr.bf16.mxu0 %v4626
    %5772 = vmatpush1.bf16.msra.mxu0 %v4625
    %5773 = vmatprep.subr.bf16.mxu0 %v4650
    %5774 = vmatpush1.bf16.msra.mxu0 %v4649
    %5775 = vmatprep.subr.bf16.mxu0 %v4674
    %5776 = vmatpush1.bf16.msra.mxu0 %v4673
    %5777 = vmatprep.subr.bf16.mxu0 %v4698
    %5778 = vmatpush1.bf16.msra.mxu0 %v4697
    %5779 = vmatprep.subr.bf16.mxu0 %v4722
    %5780 = vmatpush1.bf16.msra.mxu0 %v4721
    %5781 = vmatprep.subr.bf16.mxu0 %v4746
    %5782 = vmatpush1.bf16.msra.mxu0 %v4745
    %5783 = vmatprep.subr.bf16.mxu0 %v4770
    %5784 = vmatpush1.bf16.msra.mxu0 %v4769
    %5785 = vmatprep.subr.bf16.mxu0 %v4794
    %5786 = vmatpush1.bf16.msra.mxu0 %v4793
    %5787 = vmatprep.subr.bf16.mxu0 %v5574
    %5788 = vmatpush1.bf16.msra.mxu0 %v5571
    %5789 = vmatprep.subr.bf16.mxu0 0
    %5790 = vmatpush1.bf16.msra.mxu0 0
    %5791 = vmatprep.mubr.bf16.mxu0 %v5561
    %5792 = vmatmul.mubr.bf16.gmra.mrb[0].mxu0 %v1894
    %v5793 = vpop.f32.mrb[0].mxu0
    %v5794 = vadd.f32 %v5753, %v5793
    %v5795 = vpop.f32.mrb[0].mxu0
    %v5796 = vadd.f32 %v5755, %v5795
    %v5797 = vpop.f32.mrb[0].mxu0
    %v5798 = vpop.f32.mrb[0].mxu0
    %5799 = vdwg.mxu0
    %5800 = vmatprep.subr.bf16.mxu0 %v4100
    %5801 = vmatpush1.bf16.msra.mxu0 %v4099
    %5802 = vmatprep.subr.bf16.mxu0 %v4124
    %5803 = vmatpush1.bf16.msra.mxu0 %v4123
    %5804 = vmatprep.subr.bf16.mxu0 %v4148
    %5805 = vmatpush1.bf16.msra.mxu0 %v4147
    %5806 = vmatprep.subr.bf16.mxu0 %v4172
    %5807 = vmatpush1.bf16.msra.mxu0 %v4171
    %5808 = vmatprep.subr.bf16.mxu0 %v4196
    %5809 = vmatpush1.bf16.msra.mxu0 %v4195
    %5810 = vmatprep.subr.bf16.mxu0 %v4220
    %5811 = vmatpush1.bf16.msra.mxu0 %v4219
    %5812 = vmatprep.subr.bf16.mxu0 %v4244
    %5813 = vmatpush1.bf16.msra.mxu0 %v4243
    %5814 = vmatprep.subr.bf16.mxu0 %v4268
    %5815 = vmatpush1.bf16.msra.mxu0 %v4267
    %5816 = vmatprep.subr.bf16.mxu0 %v4292
    %5817 = vmatpush1.bf16.msra.mxu0 %v4291
    %5818 = vmatprep.subr.bf16.mxu0 %v4316
    %5819 = vmatpush1.bf16.msra.mxu0 %v4315
    %5820 = vmatprep.subr.bf16.mxu0 %v4340
    %5821 = vmatpush1.bf16.msra.mxu0 %v4339
    %5822 = vmatprep.subr.bf16.mxu0 %v4364
    %5823 = vmatpush1.bf16.msra.mxu0 %v4363
    %5824 = vmatprep.subr.bf16.mxu0 %v4388
    %5825 = vmatpush1.bf16.msra.mxu0 %v4387
    %5826 = vmatprep.subr.bf16.mxu0 %v4412
    %5827 = vmatpush1.bf16.msra.mxu0 %v4411
    %5828 = vmatprep.subr.bf16.mxu0 %v4436
    %5829 = vmatpush1.bf16.msra.mxu0 %v4435
    %5830 = vmatprep.subr.bf16.mxu0 %v4460
    %5831 = vmatpush1.bf16.msra.mxu0 %v4459
    %5832 = vmatprep.mubr.bf16.mxu0 %v1893
    %5833 = vmatmul.mubr.bf16.gmra.mrb[0].mxu0 %v1886
    %v5834 = vpop.f32.mrb[0].mxu0
    %v5835 = vadd.f32 0.0, %v5834
    %v5836 = vpop.f32.mrb[0].mxu0
    %v5837 = vadd.f32 0.0, %v5836
    %v5838 = vpop.f32.mrb[0].mxu0
    %v5839 = vpop.f32.mrb[0].mxu0
    %5840 = vdwg.mxu0
    %5841 = vmatprep.subr.bf16.mxu0 %v4484
    %5842 = vmatpush1.bf16.msra.mxu0 %v4483
    %5843 = vmatprep.subr.bf16.mxu0 %v4508
    %5844 = vmatpush1.bf16.msra.mxu0 %v4507
    %5845 = vmatprep.subr.bf16.mxu0 %v4532
    %5846 = vmatpush1.bf16.msra.mxu0 %v4531
    %5847 = vmatprep.subr.bf16.mxu0 %v4556
    %5848 = vmatpush1.bf16.msra.mxu0 %v4555
    %5849 = vmatprep.subr.bf16.mxu0 %v4580
    %5850 = vmatpush1.bf16.msra.mxu0 %v4579
    %5851 = vmatprep.subr.bf16.mxu0 %v4604
    %5852 = vmatpush1.bf16.msra.mxu0 %v4603
    %5853 = vmatprep.subr.bf16.mxu0 %v4628
    %5854 = vmatpush1.bf16.msra.mxu0 %v4627
    %5855 = vmatprep.subr.bf16.mxu0 %v4652
    %5856 = vmatpush1.bf16.msra.mxu0 %v4651
    %5857 = vmatprep.subr.bf16.mxu0 %v4676
    %5858 = vmatpush1.bf16.msra.mxu0 %v4675
    %5859 = vmatprep.subr.bf16.mxu0 %v4700
    %5860 = vmatpush1.bf16.msra.mxu0 %v4699
    %5861 = vmatprep.subr.bf16.mxu0 %v4724
    %5862 = vmatpush1.bf16.msra.mxu0 %v4723
    %5863 = vmatprep.subr.bf16.mxu0 %v4748
    %5864 = vmatpush1.bf16.msra.mxu0 %v4747
    %5865 = vmatprep.subr.bf16.mxu0 %v4772
    %5866 = vmatpush1.bf16.msra.mxu0 %v4771
    %5867 = vmatprep.subr.bf16.mxu0 %v4796
    %5868 = vmatpush1.bf16.msra.mxu0 %v4795
    %5869 = vmatprep.subr.bf16.mxu0 %v5580
    %5870 = vmatpush1.bf16.msra.mxu0 %v5577
    %5871 = vmatprep.subr.bf16.mxu0 0
    %5872 = vmatpush1.bf16.msra.mxu0 0
    %5873 = vmatprep.mubr.bf16.mxu0 %v5561
    %5874 = vmatmul.mubr.bf16.gmra.mrb[0].mxu0 %v1894
    %v5875 = vpop.f32.mrb[0].mxu0
    %v5876 = vadd.f32 %v5835, %v5875
    %v5877 = vpop.f32.mrb[0].mxu0
    %v5878 = vadd.f32 %v5837, %v5877
    %v5879 = vpop.f32.mrb[0].mxu0
    %v5880 = vpop.f32.mrb[0].mxu0
    %5881 = vdwg.mxu0
    %5882 = vmatprep.subr.bf16.mxu0 %v4102
    %5883 = vmatpush1.bf16.msra.mxu0 %v4101
    %5884 = vmatprep.subr.bf16.mxu0 %v4126
    %5885 = vmatpush1.bf16.msra.mxu0 %v4125
    %5886 = vmatprep.subr.bf16.mxu0 %v4150
    %5887 = vmatpush1.bf16.msra.mxu0 %v4149
    %5888 = vmatprep.subr.bf16.mxu0 %v4174
    %5889 = vmatpush1.bf16.msra.mxu0 %v4173
    %5890 = vmatprep.subr.bf16.mxu0 %v4198
    %5891 = vmatpush1.bf16.msra.mxu0 %v4197
    %5892 = vmatprep.subr.bf16.mxu0 %v4222
    %5893 = vmatpush1.bf16.msra.mxu0 %v4221
    %5894 = vmatprep.subr.bf16.mxu0 %v4246
    %5895 = vmatpush1.bf16.msra.mxu0 %v4245
    %5896 = vmatprep.subr.bf16.mxu0 %v4270
    %5897 = vmatpush1.bf16.msra.mxu0 %v4269
    %5898 = vmatprep.subr.bf16.mxu0 %v4294
    %5899 = vmatpush1.bf16.msra.mxu0 %v4293
    %5900 = vmatprep.subr.bf16.mxu0 %v4318
    %5901 = vmatpush1.bf16.msra.mxu0 %v4317
    %5902 = vmatprep.subr.bf16.mxu0 %v4342
    %5903 = vmatpush1.bf16.msra.mxu0 %v4341
    %5904 = vmatprep.subr.bf16.mxu0 %v4366
    %5905 = vmatpush1.bf16.msra.mxu0 %v4365
    %5906 = vmatprep.subr.bf16.mxu0 %v4390
    %5907 = vmatpush1.bf16.msra.mxu0 %v4389
    %5908 = vmatprep.subr.bf16.mxu0 %v4414
    %5909 = vmatpush1.bf16.msra.mxu0 %v4413
    %5910 = vmatprep.subr.bf16.mxu0 %v4438
    %5911 = vmatpush1.bf16.msra.mxu0 %v4437
    %5912 = vmatprep.subr.bf16.mxu0 %v4462
    %5913 = vmatpush1.bf16.msra.mxu0 %v4461
    %5914 = vmatprep.mubr.bf16.mxu0 %v1893
    %5915 = vmatmul.mubr.bf16.gmra.mrb[0].mxu0 %v1886
    %v5916 = vpop.f32.mrb[0].mxu0
    %v5917 = vadd.f32 0.0, %v5916
    %v5918 = vpop.f32.mrb[0].mxu0
    %v5919 = vadd.f32 0.0, %v5918
    %v5920 = vpop.f32.mrb[0].mxu0
    %v5921 = vpop.f32.mrb[0].mxu0
    %5922 = vdwg.mxu0
    %5923 = vmatprep.subr.bf16.mxu0 %v4486
    %5924 = vmatpush1.bf16.msra.mxu0 %v4485
    %5925 = vmatprep.subr.bf16.mxu0 %v4510
    %5926 = vmatpush1.bf16.msra.mxu0 %v4509
    %5927 = vmatprep.subr.bf16.mxu0 %v4534
    %5928 = vmatpush1.bf16.msra.mxu0 %v4533
    %5929 = vmatprep.subr.bf16.mxu0 %v4558
    %5930 = vmatpush1.bf16.msra.mxu0 %v4557
    %5931 = vmatprep.subr.bf16.mxu0 %v4582
    %5932 = vmatpush1.bf16.msra.mxu0 %v4581
    %5933 = vmatprep.subr.bf16.mxu0 %v4606
    %5934 = vmatpush1.bf16.msra.mxu0 %v4605
    %5935 = vmatprep.subr.bf16.mxu0 %v4630
    %5936 = vmatpush1.bf16.msra.mxu0 %v4629
    %5937 = vmatprep.subr.bf16.mxu0 %v4654
    %5938 = vmatpush1.bf16.msra.mxu0 %v4653
    %5939 = vmatprep.subr.bf16.mxu0 %v4678
    %5940 = vmatpush1.bf16.msra.mxu0 %v4677
    %5941 = vmatprep.subr.bf16.mxu0 %v4702
    %5942 = vmatpush1.bf16.msra.mxu0 %v4701
    %5943 = vmatprep.subr.bf16.mxu0 %v4726
    %5944 = vmatpush1.bf16.msra.mxu0 %v4725
    %5945 = vmatprep.subr.bf16.mxu0 %v4750
    %5946 = vmatpush1.bf16.msra.mxu0 %v4749
    %5947 = vmatprep.subr.bf16.mxu0 %v4774
    %5948 = vmatpush1.bf16.msra.mxu0 %v4773
    %5949 = vmatprep.subr.bf16.mxu0 %v4798
    %5950 = vmatpush1.bf16.msra.mxu0 %v4797
    %5951 = vmatprep.subr.bf16.mxu0 %v5586
    %5952 = vmatpush1.bf16.msra.mxu0 %v5583
    %5953 = vmatprep.subr.bf16.mxu0 0
    %5954 = vmatpush1.bf16.msra.mxu0 0
    %5955 = vmatprep.mubr.bf16.mxu0 %v5561
    %5956 = vmatmul.mubr.bf16.gmra.mrb[0].mxu0 %v1894
    %v5957 = vpop.f32.mrb[0].mxu0
    %v5958 = vadd.f32 %v5917, %v5957
    %v5959 = vpop.f32.mrb[0].mxu0
    %v5960 = vadd.f32 %v5919, %v5959
    %v5961 = vpop.f32.mrb[0].mxu0
    %v5962 = vpop.f32.mrb[0].mxu0
    %5963 = vdwg.mxu0
    %5964 = vmatprep.subr.bf16.mxu0 %v4104
    %5965 = vmatpush1.bf16.msra.mxu0 %v4103
    %5966 = vmatprep.subr.bf16.mxu0 %v4128
    %5967 = vmatpush1.bf16.msra.mxu0 %v4127
    %5968 = vmatprep.subr.bf16.mxu0 %v4152
    %5969 = vmatpush1.bf16.msra.mxu0 %v4151
    %5970 = vmatprep.subr.bf16.mxu0 %v4176
    %5971 = vmatpush1.bf16.msra.mxu0 %v4175
    %5972 = vmatprep.subr.bf16.mxu0 %v4200
    %5973 = vmatpush1.bf16.msra.mxu0 %v4199
    %5974 = vmatprep.subr.bf16.mxu0 %v4224
    %5975 = vmatpush1.bf16.msra.mxu0 %v4223
    %5976 = vmatprep.subr.bf16.mxu0 %v4248
    %5977 = vmatpush1.bf16.msra.mxu0 %v4247
    %5978 = vmatprep.subr.bf16.mxu0 %v4272
    %5979 = vmatpush1.bf16.msra.mxu0 %v4271
    %5980 = vmatprep.subr.bf16.mxu0 %v4296
    %5981 = vmatpush1.bf16.msra.mxu0 %v4295
    %5982 = vmatprep.subr.bf16.mxu0 %v4320
    %5983 = vmatpush1.bf16.msra.mxu0 %v4319
    %5984 = vmatprep.subr.bf16.mxu0 %v4344
    %5985 = vmatpush1.bf16.msra.mxu0 %v4343
    %5986 = vmatprep.subr.bf16.mxu0 %v4368
    %5987 = vmatpush1.bf16.msra.mxu0 %v4367
    %5988 = vmatprep.subr.bf16.mxu0 %v4392
    %5989 = vmatpush1.bf16.msra.mxu0 %v4391
    %5990 = vmatprep.subr.bf16.mxu0 %v4416
    %5991 = vmatpush1.bf16.msra.mxu0 %v4415
    %5992 = vmatprep.subr.bf16.mxu0 %v4440
    %5993 = vmatpush1.bf16.msra.mxu0 %v4439
    %5994 = vmatprep.subr.bf16.mxu0 %v4464
    %5995 = vmatpush1.bf16.msra.mxu0 %v4463
    %5996 = vmatprep.mubr.bf16.mxu0 %v1893
    %5997 = vmatmul.mubr.bf16.gmra.mrb[0].mxu0 %v1886
    %v5998 = vpop.f32.mrb[0].mxu0
    %v5999 = vadd.f32 0.0, %v5998
    %v6000 = vpop.f32.mrb[0].mxu0
    %v6001 = vadd.f32 0.0, %v6000
    %v6002 = vpop.f32.mrb[0].mxu0
    %v6003 = vpop.f32.mrb[0].mxu0
    %6004 = vdwg.mxu0
    %6005 = vmatprep.subr.bf16.mxu0 %v4488
    %6006 = vmatpush1.bf16.msra.mxu0 %v4487
    %6007 = vmatprep.subr.bf16.mxu0 %v4512
    %6008 = vmatpush1.bf16.msra.mxu0 %v4511
    %6009 = vmatprep.subr.bf16.mxu0 %v4536
    %6010 = vmatpush1.bf16.msra.mxu0 %v4535
    %6011 = vmatprep.subr.bf16.mxu0 %v4560
    %6012 = vmatpush1.bf16.msra.mxu0 %v4559
    %6013 = vmatprep.subr.bf16.mxu0 %v4584
    %6014 = vmatpush1.bf16.msra.mxu0 %v4583
    %6015 = vmatprep.subr.bf16.mxu0 %v4608
    %6016 = vmatpush1.bf16.msra.mxu0 %v4607
    %6017 = vmatprep.subr.bf16.mxu0 %v4632
    %6018 = vmatpush1.bf16.msra.mxu0 %v4631
    %6019 = vmatprep.subr.bf16.mxu0 %v4656
    %6020 = vmatpush1.bf16.msra.mxu0 %v4655
    %6021 = vmatprep.subr.bf16.mxu0 %v4680
    %6022 = vmatpush1.bf16.msra.mxu0 %v4679
    %6023 = vmatprep.subr.bf16.mxu0 %v4704
    %6024 = vmatpush1.bf16.msra.mxu0 %v4703
    %6025 = vmatprep.subr.bf16.mxu0 %v4728
    %6026 = vmatpush1.bf16.msra.mxu0 %v4727
    %6027 = vmatprep.subr.bf16.mxu0 %v4752
    %6028 = vmatpush1.bf16.msra.mxu0 %v4751
    %6029 = vmatprep.subr.bf16.mxu0 %v4776
    %6030 = vmatpush1.bf16.msra.mxu0 %v4775
    %6031 = vmatprep.subr.bf16.mxu0 %v4800
    %6032 = vmatpush1.bf16.msra.mxu0 %v4799
    %6033 = vmatprep.subr.bf16.mxu0 %v5592
    %6034 = vmatpush1.bf16.msra.mxu0 %v5589
    %6035 = vmatprep.subr.bf16.mxu0 0
    %6036 = vmatpush1.bf16.msra.mxu0 0
    %6037 = vmatprep.mubr.bf16.mxu0 %v5561
    %6038 = vmatmul.mubr.bf16.gmra.mrb[0].mxu0 %v1894
    %v6039 = vpop.f32.mrb[0].mxu0
    %v6040 = vadd.f32 %v5999, %v6039
    %v6041 = vpop.f32.mrb[0].mxu0
    %v6042 = vadd.f32 %v6001, %v6041
    %v6043 = vpop.f32.mrb[0].mxu0
    %v6044 = vpop.f32.mrb[0].mxu0
    %6045 = vdwg.mxu0
    %6046 = vmatprep.subr.bf16.mxu0 %v4106
    %6047 = vmatpush1.bf16.msra.mxu0 %v4105
    %6048 = vmatprep.subr.bf16.mxu0 %v4130
    %6049 = vmatpush1.bf16.msra.mxu0 %v4129
    %6050 = vmatprep.subr.bf16.mxu0 %v4154
    %6051 = vmatpush1.bf16.msra.mxu0 %v4153
    %6052 = vmatprep.subr.bf16.mxu0 %v4178
    %6053 = vmatpush1.bf16.msra.mxu0 %v4177
    %6054 = vmatprep.subr.bf16.mxu0 %v4202
    %6055 = vmatpush1.bf16.msra.mxu0 %v4201
    %6056 = vmatprep.subr.bf16.mxu0 %v4226
    %6057 = vmatpush1.bf16.msra.mxu0 %v4225
    %6058 = vmatprep.subr.bf16.mxu0 %v4250
    %6059 = vmatpush1.bf16.msra.mxu0 %v4249
    %6060 = vmatprep.subr.bf16.mxu0 %v4274
    %6061 = vmatpush1.bf16.msra.mxu0 %v4273
    %6062 = vmatprep.subr.bf16.mxu0 %v4298
    %6063 = vmatpush1.bf16.msra.mxu0 %v4297
    %6064 = vmatprep.subr.bf16.mxu0 %v4322
    %6065 = vmatpush1.bf16.msra.mxu0 %v4321
    %6066 = vmatprep.subr.bf16.mxu0 %v4346
    %6067 = vmatpush1.bf16.msra.mxu0 %v4345
    %6068 = vmatprep.subr.bf16.mxu0 %v4370
    %6069 = vmatpush1.bf16.msra.mxu0 %v4369
    %6070 = vmatprep.subr.bf16.mxu0 %v4394
    %6071 = vmatpush1.bf16.msra.mxu0 %v4393
    %6072 = vmatprep.subr.bf16.mxu0 %v4418
    %6073 = vmatpush1.bf16.msra.mxu0 %v4417
    %6074 = vmatprep.subr.bf16.mxu0 %v4442
    %6075 = vmatpush1.bf16.msra.mxu0 %v4441
    %6076 = vmatprep.subr.bf16.mxu0 %v4466
    %6077 = vmatpush1.bf16.msra.mxu0 %v4465
    %6078 = vmatprep.mubr.bf16.mxu0 %v1893
    %6079 = vmatmul.mubr.bf16.gmra.mrb[0].mxu0 %v1886
    %v6080 = vpop.f32.mrb[0].mxu0
    %v6081 = vadd.f32 0.0, %v6080
    %v6082 = vpop.f32.mrb[0].mxu0
    %v6083 = vadd.f32 0.0, %v6082
    %v6084 = vpop.f32.mrb[0].mxu0
    %v6085 = vpop.f32.mrb[0].mxu0
    %6086 = vdwg.mxu0
    %6087 = vmatprep.subr.bf16.mxu0 %v4490
    %6088 = vmatpush1.bf16.msra.mxu0 %v4489
    %6089 = vmatprep.subr.bf16.mxu0 %v4514
    %6090 = vmatpush1.bf16.msra.mxu0 %v4513
    %6091 = vmatprep.subr.bf16.mxu0 %v4538
    %6092 = vmatpush1.bf16.msra.mxu0 %v4537
    %6093 = vmatprep.subr.bf16.mxu0 %v4562
    %6094 = vmatpush1.bf16.msra.mxu0 %v4561
    %6095 = vmatprep.subr.bf16.mxu0 %v4586
    %6096 = vmatpush1.bf16.msra.mxu0 %v4585
    %6097 = vmatprep.subr.bf16.mxu0 %v4610
    %6098 = vmatpush1.bf16.msra.mxu0 %v4609
    %6099 = vmatprep.subr.bf16.mxu0 %v4634
    %6100 = vmatpush1.bf16.msra.mxu0 %v4633
    %6101 = vmatprep.subr.bf16.mxu0 %v4658
    %6102 = vmatpush1.bf16.msra.mxu0 %v4657
    %6103 = vmatprep.subr.bf16.mxu0 %v4682
    %6104 = vmatpush1.bf16.msra.mxu0 %v4681
    %6105 = vmatprep.subr.bf16.mxu0 %v4706
    %6106 = vmatpush1.bf16.msra.mxu0 %v4705
    %6107 = vmatprep.subr.bf16.mxu0 %v4730
    %6108 = vmatpush1.bf16.msra.mxu0 %v4729
    %6109 = vmatprep.subr.bf16.mxu0 %v4754
    %6110 = vmatpush1.bf16.msra.mxu0 %v4753
    %6111 = vmatprep.subr.bf16.mxu0 %v4778
    %6112 = vmatpush1.bf16.msra.mxu0 %v4777
    %6113 = vmatprep.subr.bf16.mxu0 %v4802
    %6114 = vmatpush1.bf16.msra.mxu0 %v4801
    %6115 = vmatprep.subr.bf16.mxu0 %v5598
    %6116 = vmatpush1.bf16.msra.mxu0 %v5595
    %6117 = vmatprep.subr.bf16.mxu0 0
    %6118 = vmatpush1.bf16.msra.mxu0 0
    %6119 = vmatprep.mubr.bf16.mxu0 %v5561
    %6120 = vmatmul.mubr.bf16.gmra.mrb[0].mxu0 %v1894
    %v6121 = vpop.f32.mrb[0].mxu0
    %v6122 = vadd.f32 %v6081, %v6121
    %v6123 = vpop.f32.mrb[0].mxu0
    %v6124 = vadd.f32 %v6083, %v6123
    %v6125 = vpop.f32.mrb[0].mxu0
    %v6126 = vpop.f32.mrb[0].mxu0
    %6127 = vdwg.mxu0
    %6128 = vmatprep.subr.bf16.mxu0 %v4108
    %6129 = vmatpush1.bf16.msra.mxu0 %v4107
    %6130 = vmatprep.subr.bf16.mxu0 %v4132
    %6131 = vmatpush1.bf16.msra.mxu0 %v4131
    %6132 = vmatprep.subr.bf16.mxu0 %v4156
    %6133 = vmatpush1.bf16.msra.mxu0 %v4155
    %6134 = vmatprep.subr.bf16.mxu0 %v4180
    %6135 = vmatpush1.bf16.msra.mxu0 %v4179
    %6136 = vmatprep.subr.bf16.mxu0 %v4204
    %6137 = vmatpush1.bf16.msra.mxu0 %v4203
    %6138 = vmatprep.subr.bf16.mxu0 %v4228
    %6139 = vmatpush1.bf16.msra.mxu0 %v4227
    %6140 = vmatprep.subr.bf16.mxu0 %v4252
    %6141 = vmatpush1.bf16.msra.mxu0 %v4251
    %6142 = vmatprep.subr.bf16.mxu0 %v4276
    %6143 = vmatpush1.bf16.msra.mxu0 %v4275
    %6144 = vmatprep.subr.bf16.mxu0 %v4300
    %6145 = vmatpush1.bf16.msra.mxu0 %v4299
    %6146 = vmatprep.subr.bf16.mxu0 %v4324
    %6147 = vmatpush1.bf16.msra.mxu0 %v4323
    %6148 = vmatprep.subr.bf16.mxu0 %v4348
    %6149 = vmatpush1.bf16.msra.mxu0 %v4347
    %6150 = vmatprep.subr.bf16.mxu0 %v4372
    %6151 = vmatpush1.bf16.msra.mxu0 %v4371
    %6152 = vmatprep.subr.bf16.mxu0 %v4396
    %6153 = vmatpush1.bf16.msra.mxu0 %v4395
    %6154 = vmatprep.subr.bf16.mxu0 %v4420
    %6155 = vmatpush1.bf16.msra.mxu0 %v4419
    %6156 = vmatprep.subr.bf16.mxu0 %v4444
    %6157 = vmatpush1.bf16.msra.mxu0 %v4443
    %6158 = vmatprep.subr.bf16.mxu0 %v4468
    %6159 = vmatpush1.bf16.msra.mxu0 %v4467
    %6160 = vmatprep.mubr.bf16.mxu0 %v1893
    %6161 = vmatmul.mubr.bf16.gmra.mrb[0].mxu0 %v1886
    %v6162 = vpop.f32.mrb[0].mxu0
    %v6163 = vadd.f32 0.0, %v6162
    %v6164 = vpop.f32.mrb[0].mxu0
    %v6165 = vadd.f32 0.0, %v6164
    %v6166 = vpop.f32.mrb[0].mxu0
    %v6167 = vpop.f32.mrb[0].mxu0
    %6168 = vdwg.mxu0
    %6169 = vmatprep.subr.bf16.mxu0 %v4492
    %6170 = vmatpush1.bf16.msra.mxu0 %v4491
    %6171 = vmatprep.subr.bf16.mxu0 %v4516
    %6172 = vmatpush1.bf16.msra.mxu0 %v4515
    %6173 = vmatprep.subr.bf16.mxu0 %v4540
    %6174 = vmatpush1.bf16.msra.mxu0 %v4539
    %6175 = vmatprep.subr.bf16.mxu0 %v4564
    %6176 = vmatpush1.bf16.msra.mxu0 %v4563
    %6177 = vmatprep.subr.bf16.mxu0 %v4588
    %6178 = vmatpush1.bf16.msra.mxu0 %v4587
    %6179 = vmatprep.subr.bf16.mxu0 %v4612
    %6180 = vmatpush1.bf16.msra.mxu0 %v4611
    %6181 = vmatprep.subr.bf16.mxu0 %v4636
    %6182 = vmatpush1.bf16.msra.mxu0 %v4635
    %6183 = vmatprep.subr.bf16.mxu0 %v4660
    %6184 = vmatpush1.bf16.msra.mxu0 %v4659
    %6185 = vmatprep.subr.bf16.mxu0 %v4684
    %6186 = vmatpush1.bf16.msra.mxu0 %v4683
    %6187 = vmatprep.subr.bf16.mxu0 %v4708
    %6188 = vmatpush1.bf16.msra.mxu0 %v4707
    %6189 = vmatprep.subr.bf16.mxu0 %v4732
    %6190 = vmatpush1.bf16.msra.mxu0 %v4731
    %6191 = vmatprep.subr.bf16.mxu0 %v4756
    %6192 = vmatpush1.bf16.msra.mxu0 %v4755
    %6193 = vmatprep.subr.bf16.mxu0 %v4780
    %6194 = vmatpush1.bf16.msra.mxu0 %v4779
    %6195 = vmatprep.subr.bf16.mxu0 %v4804
    %6196 = vmatpush1.bf16.msra.mxu0 %v4803
    %6197 = vmatprep.subr.bf16.mxu0 %v5604
    %6198 = vmatpush1.bf16.msra.mxu0 %v5601
    %6199 = vmatprep.subr.bf16.mxu0 0
    %6200 = vmatpush1.bf16.msra.mxu0 0
    %6201 = vmatprep.mubr.bf16.mxu0 %v5561
    %6202 = vmatmul.mubr.bf16.gmra.mrb[0].mxu0 %v1894
    %v6203 = vpop.f32.mrb[0].mxu0
    %v6204 = vadd.f32 %v6163, %v6203
    %v6205 = vpop.f32.mrb[0].mxu0
    %v6206 = vadd.f32 %v6165, %v6205
    %v6207 = vpop.f32.mrb[0].mxu0
    %v6208 = vpop.f32.mrb[0].mxu0
    %6209 = vdwg.mxu0
    %6210 = vmatprep.subr.bf16.mxu0 %v4110
    %6211 = vmatpush1.bf16.msra.mxu0 %v4109
    %6212 = vmatprep.subr.bf16.mxu0 %v4134
    %6213 = vmatpush1.bf16.msra.mxu0 %v4133
    %6214 = vmatprep.subr.bf16.mxu0 %v4158
    %6215 = vmatpush1.bf16.msra.mxu0 %v4157
    %6216 = vmatprep.subr.bf16.mxu0 %v4182
    %6217 = vmatpush1.bf16.msra.mxu0 %v4181
    %6218 = vmatprep.subr.bf16.mxu0 %v4206
    %6219 = vmatpush1.bf16.msra.mxu0 %v4205
    %6220 = vmatprep.subr.bf16.mxu0 %v4230
    %6221 = vmatpush1.bf16.msra.mxu0 %v4229
    %6222 = vmatprep.subr.bf16.mxu0 %v4254
    %6223 = vmatpush1.bf16.msra.mxu0 %v4253
    %6224 = vmatprep.subr.bf16.mxu0 %v4278
    %6225 = vmatpush1.bf16.msra.mxu0 %v4277
    %6226 = vmatprep.subr.bf16.mxu0 %v4302
    %6227 = vmatpush1.bf16.msra.mxu0 %v4301
    %6228 = vmatprep.subr.bf16.mxu0 %v4326
    %6229 = vmatpush1.bf16.msra.mxu0 %v4325
    %6230 = vmatprep.subr.bf16.mxu0 %v4350
    %6231 = vmatpush1.bf16.msra.mxu0 %v4349
    %6232 = vmatprep.subr.bf16.mxu0 %v4374
    %6233 = vmatpush1.bf16.msra.mxu0 %v4373
    %6234 = vmatprep.subr.bf16.mxu0 %v4398
    %6235 = vmatpush1.bf16.msra.mxu0 %v4397
    %6236 = vmatprep.subr.bf16.mxu0 %v4422
    %6237 = vmatpush1.bf16.msra.mxu0 %v4421
    %6238 = vmatprep.subr.bf16.mxu0 %v4446
    %6239 = vmatpush1.bf16.msra.mxu0 %v4445
    %6240 = vmatprep.subr.bf16.mxu0 %v4470
    %6241 = vmatpush1.bf16.msra.mxu0 %v4469
    %6242 = vmatprep.mubr.bf16.mxu0 %v1893
    %6243 = vmatmul.mubr.bf16.gmra.mrb[0].mxu0 %v1886
    %v6244 = vpop.f32.mrb[0].mxu0
    %v6245 = vadd.f32 0.0, %v6244
    %v6246 = vpop.f32.mrb[0].mxu0
    %v6247 = vadd.f32 0.0, %v6246
    %v6248 = vpop.f32.mrb[0].mxu0
    %v6249 = vpop.f32.mrb[0].mxu0
    %6250 = vdwg.mxu0
    %6251 = vmatprep.subr.bf16.mxu0 %v4494
    %6252 = vmatpush1.bf16.msra.mxu0 %v4493
    %6253 = vmatprep.subr.bf16.mxu0 %v4518
    %6254 = vmatpush1.bf16.msra.mxu0 %v4517
    %6255 = vmatprep.subr.bf16.mxu0 %v4542
    %6256 = vmatpush1.bf16.msra.mxu0 %v4541
    %6257 = vmatprep.subr.bf16.mxu0 %v4566
    %6258 = vmatpush1.bf16.msra.mxu0 %v4565
    %6259 = vmatprep.subr.bf16.mxu0 %v4590
    %6260 = vmatpush1.bf16.msra.mxu0 %v4589
    %6261 = vmatprep.subr.bf16.mxu0 %v4614
    %6262 = vmatpush1.bf16.msra.mxu0 %v4613
    %6263 = vmatprep.subr.bf16.mxu0 %v4638
    %6264 = vmatpush1.bf16.msra.mxu0 %v4637
    %6265 = vmatprep.subr.bf16.mxu0 %v4662
    %6266 = vmatpush1.bf16.msra.mxu0 %v4661
    %6267 = vmatprep.subr.bf16.mxu0 %v4686
    %6268 = vmatpush1.bf16.msra.mxu0 %v4685
    %6269 = vmatprep.subr.bf16.mxu0 %v4710
    %6270 = vmatpush1.bf16.msra.mxu0 %v4709
    %6271 = vmatprep.subr.bf16.mxu0 %v4734
    %6272 = vmatpush1.bf16.msra.mxu0 %v4733
    %6273 = vmatprep.subr.bf16.mxu0 %v4758
    %6274 = vmatpush1.bf16.msra.mxu0 %v4757
    %6275 = vmatprep.subr.bf16.mxu0 %v4782
    %6276 = vmatpush1.bf16.msra.mxu0 %v4781
    %6277 = vmatprep.subr.bf16.mxu0 %v4806
    %6278 = vmatpush1.bf16.msra.mxu0 %v4805
    %6279 = vmatprep.subr.bf16.mxu0 %v5610
    %6280 = vmatpush1.bf16.msra.mxu0 %v5607
    %6281 = vmatprep.subr.bf16.mxu0 0
    %6282 = vmatpush1.bf16.msra.mxu0 0
    %6283 = vmatprep.mubr.bf16.mxu0 %v5561
    %6284 = vmatmul.mubr.bf16.gmra.mrb[0].mxu0 %v1894
    %v6285 = vpop.f32.mrb[0].mxu0
    %v6286 = vadd.f32 %v6245, %v6285
    %v6287 = vpop.f32.mrb[0].mxu0
    %v6288 = vadd.f32 %v6247, %v6287
    %v6289 = vpop.f32.mrb[0].mxu0
    %v6290 = vpop.f32.mrb[0].mxu0
    %6291 = vdwg.mxu0
    %6292 = vmatprep.subr.bf16.mxu0 %v4112
    %6293 = vmatpush1.bf16.msra.mxu0 %v4111
    %6294 = vmatprep.subr.bf16.mxu0 %v4136
    %6295 = vmatpush1.bf16.msra.mxu0 %v4135
    %6296 = vmatprep.subr.bf16.mxu0 %v4160
    %6297 = vmatpush1.bf16.msra.mxu0 %v4159
    %6298 = vmatprep.subr.bf16.mxu0 %v4184
    %6299 = vmatpush1.bf16.msra.mxu0 %v4183
    %6300 = vmatprep.subr.bf16.mxu0 %v4208
    %6301 = vmatpush1.bf16.msra.mxu0 %v4207
    %6302 = vmatprep.subr.bf16.mxu0 %v4232
    %6303 = vmatpush1.bf16.msra.mxu0 %v4231
    %6304 = vmatprep.subr.bf16.mxu0 %v4256
    %6305 = vmatpush1.bf16.msra.mxu0 %v4255
    %6306 = vmatprep.subr.bf16.mxu0 %v4280
    %6307 = vmatpush1.bf16.msra.mxu0 %v4279
    %6308 = vmatprep.subr.bf16.mxu0 %v4304
    %6309 = vmatpush1.bf16.msra.mxu0 %v4303
    %6310 = vmatprep.subr.bf16.mxu0 %v4328
    %6311 = vmatpush1.bf16.msra.mxu0 %v4327
    %6312 = vmatprep.subr.bf16.mxu0 %v4352
    %6313 = vmatpush1.bf16.msra.mxu0 %v4351
    %6314 = vmatprep.subr.bf16.mxu0 %v4376
    %6315 = vmatpush1.bf16.msra.mxu0 %v4375
    %6316 = vmatprep.subr.bf16.mxu0 %v4400
    %6317 = vmatpush1.bf16.msra.mxu0 %v4399
    %6318 = vmatprep.subr.bf16.mxu0 %v4424
    %6319 = vmatpush1.bf16.msra.mxu0 %v4423
    %6320 = vmatprep.subr.bf16.mxu0 %v4448
    %6321 = vmatpush1.bf16.msra.mxu0 %v4447
    %6322 = vmatprep.subr.bf16.mxu0 %v4472
    %6323 = vmatpush1.bf16.msra.mxu0 %v4471
    %6324 = vmatprep.mubr.bf16.mxu0 %v1893
    %6325 = vmatmul.mubr.bf16.gmra.mrb[0].mxu0 %v1886
    %v6326 = vpop.f32.mrb[0].mxu0
    %v6327 = vadd.f32 0.0, %v6326
    %v6328 = vpop.f32.mrb[0].mxu0
    %v6329 = vadd.f32 0.0, %v6328
    %v6330 = vpop.f32.mrb[0].mxu0
    %v6331 = vpop.f32.mrb[0].mxu0
    %6332 = vdwg.mxu0
    %6333 = vmatprep.subr.bf16.mxu0 %v4496
    %6334 = vmatpush1.bf16.msra.mxu0 %v4495
    %6335 = vmatprep.subr.bf16.mxu0 %v4520
    %6336 = vmatpush1.bf16.msra.mxu0 %v4519
    %6337 = vmatprep.subr.bf16.mxu0 %v4544
    %6338 = vmatpush1.bf16.msra.mxu0 %v4543
    %6339 = vmatprep.subr.bf16.mxu0 %v4568
    %6340 = vmatpush1.bf16.msra.mxu0 %v4567
    %6341 = vmatprep.subr.bf16.mxu0 %v4592
    %6342 = vmatpush1.bf16.msra.mxu0 %v4591
    %6343 = vmatprep.subr.bf16.mxu0 %v4616
    %6344 = vmatpush1.bf16.msra.mxu0 %v4615
    %6345 = vmatprep.subr.bf16.mxu0 %v4640
    %6346 = vmatpush1.bf16.msra.mxu0 %v4639
    %6347 = vmatprep.subr.bf16.mxu0 %v4664
    %6348 = vmatpush1.bf16.msra.mxu0 %v4663
    %6349 = vmatprep.subr.bf16.mxu0 %v4688
    %6350 = vmatpush1.bf16.msra.mxu0 %v4687
    %6351 = vmatprep.subr.bf16.mxu0 %v4712
    %6352 = vmatpush1.bf16.msra.mxu0 %v4711
    %6353 = vmatprep.subr.bf16.mxu0 %v4736
    %6354 = vmatpush1.bf16.msra.mxu0 %v4735
    %6355 = vmatprep.subr.bf16.mxu0 %v4760
    %6356 = vmatpush1.bf16.msra.mxu0 %v4759
    %6357 = vmatprep.subr.bf16.mxu0 %v4784
    %6358 = vmatpush1.bf16.msra.mxu0 %v4783
    %6359 = vmatprep.subr.bf16.mxu0 %v4808
    %6360 = vmatpush1.bf16.msra.mxu0 %v4807
    %6361 = vmatprep.subr.bf16.mxu0 %v5616
    %6362 = vmatpush1.bf16.msra.mxu0 %v5613
    %6363 = vmatprep.subr.bf16.mxu0 0
    %6364 = vmatpush1.bf16.msra.mxu0 0
    %6365 = vmatprep.mubr.bf16.mxu0 %v5561
    %6366 = vmatmul.mubr.bf16.gmra.mrb[0].mxu0 %v1894
    %v6367 = vpop.f32.mrb[0].mxu0
    %v6368 = vadd.f32 %v6327, %v6367
    %v6369 = vpop.f32.mrb[0].mxu0
    %v6370 = vadd.f32 %v6329, %v6369
    %v6371 = vpop.f32.mrb[0].mxu0
    %v6372 = vpop.f32.mrb[0].mxu0
    %6373 = vdwg.mxu0
    %6374 = vmatprep.subr.bf16.mxu0 %v4114
    %6375 = vmatpush1.bf16.msra.mxu0 %v4113
    %6376 = vmatprep.subr.bf16.mxu0 %v4138
    %6377 = vmatpush1.bf16.msra.mxu0 %v4137
    %6378 = vmatprep.subr.bf16.mxu0 %v4162
    %6379 = vmatpush1.bf16.msra.mxu0 %v4161
    %6380 = vmatprep.subr.bf16.mxu0 %v4186
    %6381 = vmatpush1.bf16.msra.mxu0 %v4185
    %6382 = vmatprep.subr.bf16.mxu0 %v4210
    %6383 = vmatpush1.bf16.msra.mxu0 %v4209
    %6384 = vmatprep.subr.bf16.mxu0 %v4234
    %6385 = vmatpush1.bf16.msra.mxu0 %v4233
    %6386 = vmatprep.subr.bf16.mxu0 %v4258
    %6387 = vmatpush1.bf16.msra.mxu0 %v4257
    %6388 = vmatprep.subr.bf16.mxu0 %v4282
    %6389 = vmatpush1.bf16.msra.mxu0 %v4281
    %6390 = vmatprep.subr.bf16.mxu0 %v4306
    %6391 = vmatpush1.bf16.msra.mxu0 %v4305
    %6392 = vmatprep.subr.bf16.mxu0 %v4330
    %6393 = vmatpush1.bf16.msra.mxu0 %v4329
    %6394 = vmatprep.subr.bf16.mxu0 %v4354
    %6395 = vmatpush1.bf16.msra.mxu0 %v4353
    %6396 = vmatprep.subr.bf16.mxu0 %v4378
    %6397 = vmatpush1.bf16.msra.mxu0 %v4377
    %6398 = vmatprep.subr.bf16.mxu0 %v4402
    %6399 = vmatpush1.bf16.msra.mxu0 %v4401
    %6400 = vmatprep.subr.bf16.mxu0 %v4426
    %6401 = vmatpush1.bf16.msra.mxu0 %v4425
    %6402 = vmatprep.subr.bf16.mxu0 %v4450
    %6403 = vmatpush1.bf16.msra.mxu0 %v4449
    %6404 = vmatprep.subr.bf16.mxu0 %v4474
    %6405 = vmatpush1.bf16.msra.mxu0 %v4473
    %6406 = vmatprep.mubr.bf16.mxu0 %v1893
    %6407 = vmatmul.mubr.bf16.gmra.mrb[0].mxu0 %v1886
    %v6408 = vpop.f32.mrb[0].mxu0
    %v6409 = vadd.f32 0.0, %v6408
    %v6410 = vpop.f32.mrb[0].mxu0
    %v6411 = vadd.f32 0.0, %v6410
    %v6412 = vpop.f32.mrb[0].mxu0
    %v6413 = vpop.f32.mrb[0].mxu0
    %6414 = vdwg.mxu0
    %6415 = vmatprep.subr.bf16.mxu0 %v4498
    %6416 = vmatpush1.bf16.msra.mxu0 %v4497
    %6417 = vmatprep.subr.bf16.mxu0 %v4522
    %6418 = vmatpush1.bf16.msra.mxu0 %v4521
    %6419 = vmatprep.subr.bf16.mxu0 %v4546
    %6420 = vmatpush1.bf16.msra.mxu0 %v4545
    %6421 = vmatprep.subr.bf16.mxu0 %v4570
    %6422 = vmatpush1.bf16.msra.mxu0 %v4569
    %6423 = vmatprep.subr.bf16.mxu0 %v4594
    %6424 = vmatpush1.bf16.msra.mxu0 %v4593
    %6425 = vmatprep.subr.bf16.mxu0 %v4618
    %6426 = vmatpush1.bf16.msra.mxu0 %v4617
    %6427 = vmatprep.subr.bf16.mxu0 %v4642
    %6428 = vmatpush1.bf16.msra.mxu0 %v4641
    %6429 = vmatprep.subr.bf16.mxu0 %v4666
    %6430 = vmatpush1.bf16.msra.mxu0 %v4665
    %6431 = vmatprep.subr.bf16.mxu0 %v4690
    %6432 = vmatpush1.bf16.msra.mxu0 %v4689
    %6433 = vmatprep.subr.bf16.mxu0 %v4714
    %6434 = vmatpush1.bf16.msra.mxu0 %v4713
    %6435 = vmatprep.subr.bf16.mxu0 %v4738
    %6436 = vmatpush1.bf16.msra.mxu0 %v4737
    %6437 = vmatprep.subr.bf16.mxu0 %v4762
    %6438 = vmatpush1.bf16.msra.mxu0 %v4761
    %6439 = vmatprep.subr.bf16.mxu0 %v4786
    %6440 = vmatpush1.bf16.msra.mxu0 %v4785
    %6441 = vmatprep.subr.bf16.mxu0 %v4810
    %6442 = vmatpush1.bf16.msra.mxu0 %v4809
    %6443 = vmatprep.subr.bf16.mxu0 %v5622
    %6444 = vmatpush1.bf16.msra.mxu0 %v5619
    %6445 = vmatprep.subr.bf16.mxu0 0
    %6446 = vmatpush1.bf16.msra.mxu0 0
    %6447 = vmatprep.mubr.bf16.mxu0 %v5561
    %6448 = vmatmul.mubr.bf16.gmra.mrb[0].mxu0 %v1894
    %v6449 = vpop.f32.mrb[0].mxu0
    %v6450 = vadd.f32 %v6409, %v6449
    %v6451 = vpop.f32.mrb[0].mxu0
    %v6452 = vadd.f32 %v6411, %v6451
    %v6453 = vpop.f32.mrb[0].mxu0
    %v6454 = vpop.f32.mrb[0].mxu0
    %6455 = vdwg.mxu0
    %6456 = vmatprep.subr.bf16.mxu0 %v4116
    %6457 = vmatpush1.bf16.msra.mxu0 %v4115
    %6458 = vmatprep.subr.bf16.mxu0 %v4140
    %6459 = vmatpush1.bf16.msra.mxu0 %v4139
    %6460 = vmatprep.subr.bf16.mxu0 %v4164
    %6461 = vmatpush1.bf16.msra.mxu0 %v4163
    %6462 = vmatprep.subr.bf16.mxu0 %v4188
    %6463 = vmatpush1.bf16.msra.mxu0 %v4187
    %6464 = vmatprep.subr.bf16.mxu0 %v4212
    %6465 = vmatpush1.bf16.msra.mxu0 %v4211
    %6466 = vmatprep.subr.bf16.mxu0 %v4236
    %6467 = vmatpush1.bf16.msra.mxu0 %v4235
    %6468 = vmatprep.subr.bf16.mxu0 %v4260
    %6469 = vmatpush1.bf16.msra.mxu0 %v4259
    %6470 = vmatprep.subr.bf16.mxu0 %v4284
    %6471 = vmatpush1.bf16.msra.mxu0 %v4283
    %6472 = vmatprep.subr.bf16.mxu0 %v4308
    %6473 = vmatpush1.bf16.msra.mxu0 %v4307
    %6474 = vmatprep.subr.bf16.mxu0 %v4332
    %6475 = vmatpush1.bf16.msra.mxu0 %v4331
    %6476 = vmatprep.subr.bf16.mxu0 %v4356
    %6477 = vmatpush1.bf16.msra.mxu0 %v4355
    %6478 = vmatprep.subr.bf16.mxu0 %v4380
    %6479 = vmatpush1.bf16.msra.mxu0 %v4379
    %6480 = vmatprep.subr.bf16.mxu0 %v4404
    %6481 = vmatpush1.bf16.msra.mxu0 %v4403
    %6482 = vmatprep.subr.bf16.mxu0 %v4428
    %6483 = vmatpush1.bf16.msra.mxu0 %v4427
    %6484 = vmatprep.subr.bf16.mxu0 %v4452
    %6485 = vmatpush1.bf16.msra.mxu0 %v4451
    %6486 = vmatprep.subr.bf16.mxu0 %v4476
    %6487 = vmatpush1.bf16.msra.mxu0 %v4475
    %6488 = vmatprep.mubr.bf16.mxu0 %v1893
    %6489 = vmatmul.mubr.bf16.gmra.mrb[0].mxu0 %v1886
    %v6490 = vpop.f32.mrb[0].mxu0
    %v6491 = vadd.f32 0.0, %v6490
    %v6492 = vpop.f32.mrb[0].mxu0
    %v6493 = vadd.f32 0.0, %v6492
    %v6494 = vpop.f32.mrb[0].mxu0
    %v6495 = vpop.f32.mrb[0].mxu0
    %6496 = vdwg.mxu0
    %6497 = vmatprep.subr.bf16.mxu0 %v4500
    %6498 = vmatpush1.bf16.msra.mxu0 %v4499
    %6499 = vmatprep.subr.bf16.mxu0 %v4524
    %6500 = vmatpush1.bf16.msra.mxu0 %v4523
    %6501 = vmatprep.subr.bf16.mxu0 %v4548
    %6502 = vmatpush1.bf16.msra.mxu0 %v4547
    %6503 = vmatprep.subr.bf16.mxu0 %v4572
    %6504 = vmatpush1.bf16.msra.mxu0 %v4571
    %6505 = vmatprep.subr.bf16.mxu0 %v4596
    %6506 = vmatpush1.bf16.msra.mxu0 %v4595
    %6507 = vmatprep.subr.bf16.mxu0 %v4620
    %6508 = vmatpush1.bf16.msra.mxu0 %v4619
    %6509 = vmatprep.subr.bf16.mxu0 %v4644
    %6510 = vmatpush1.bf16.msra.mxu0 %v4643
    %6511 = vmatprep.subr.bf16.mxu0 %v4668
    %6512 = vmatpush1.bf16.msra.mxu0 %v4667
    %6513 = vmatprep.subr.bf16.mxu0 %v4692
    %6514 = vmatpush1.bf16.msra.mxu0 %v4691
    %6515 = vmatprep.subr.bf16.mxu0 %v4716
    %6516 = vmatpush1.bf16.msra.mxu0 %v4715
    %6517 = vmatprep.subr.bf16.mxu0 %v4740
    %6518 = vmatpush1.bf16.msra.mxu0 %v4739
    %6519 = vmatprep.subr.bf16.mxu0 %v4764
    %6520 = vmatpush1.bf16.msra.mxu0 %v4763
    %6521 = vmatprep.subr.bf16.mxu0 %v4788
    %6522 = vmatpush1.bf16.msra.mxu0 %v4787
    %6523 = vmatprep.subr.bf16.mxu0 %v4812
    %6524 = vmatpush1.bf16.msra.mxu0 %v4811
    %6525 = vmatprep.subr.bf16.mxu0 %v5628
    %6526 = vmatpush1.bf16.msra.mxu0 %v5625
    %6527 = vmatprep.subr.bf16.mxu0 0
    %6528 = vmatpush1.bf16.msra.mxu0 0
    %6529 = vmatprep.mubr.bf16.mxu0 %v5561
    %6530 = vmatmul.mubr.bf16.gmra.mrb[0].mxu0 %v1894
    %v6531 = vpop.f32.mrb[0].mxu0
    %v6532 = vadd.f32 %v6491, %v6531
    %v6533 = vpop.f32.mrb[0].mxu0
    %v6534 = vadd.f32 %v6493, %v6533
    %v6535 = vpop.f32.mrb[0].mxu0
    %v6536 = vpop.f32.mrb[0].mxu0
    %6537 = vdwg.mxu0
    %6538 = vmatprep.subr.bf16.mxu0 %v4118
    %6539 = vmatpush1.bf16.msra.mxu0 %v4117
    %6540 = vmatprep.subr.bf16.mxu0 %v4142
    %6541 = vmatpush1.bf16.msra.mxu0 %v4141
    %6542 = vmatprep.subr.bf16.mxu0 %v4166
    %6543 = vmatpush1.bf16.msra.mxu0 %v4165
    %6544 = vmatprep.subr.bf16.mxu0 %v4190
    %6545 = vmatpush1.bf16.msra.mxu0 %v4189
    %6546 = vmatprep.subr.bf16.mxu0 %v4214
    %6547 = vmatpush1.bf16.msra.mxu0 %v4213
    %6548 = vmatprep.subr.bf16.mxu0 %v4238
    %6549 = vmatpush1.bf16.msra.mxu0 %v4237
    %6550 = vmatprep.subr.bf16.mxu0 %v4262
    %6551 = vmatpush1.bf16.msra.mxu0 %v4261
    %6552 = vmatprep.subr.bf16.mxu0 %v4286
    %6553 = vmatpush1.bf16.msra.mxu0 %v4285
    %6554 = vmatprep.subr.bf16.mxu0 %v4310
    %6555 = vmatpush1.bf16.msra.mxu0 %v4309
    %6556 = vmatprep.subr.bf16.mxu0 %v4334
    %6557 = vmatpush1.bf16.msra.mxu0 %v4333
    %6558 = vmatprep.subr.bf16.mxu0 %v4358
    %6559 = vmatpush1.bf16.msra.mxu0 %v4357
    %6560 = vmatprep.subr.bf16.mxu0 %v4382
    %6561 = vmatpush1.bf16.msra.mxu0 %v4381
    %6562 = vmatprep.subr.bf16.mxu0 %v4406
    %6563 = vmatpush1.bf16.msra.mxu0 %v4405
    %6564 = vmatprep.subr.bf16.mxu0 %v4430
    %6565 = vmatpush1.bf16.msra.mxu0 %v4429
    %6566 = vmatprep.subr.bf16.mxu0 %v4454
    %6567 = vmatpush1.bf16.msra.mxu0 %v4453
    %6568 = vmatprep.subr.bf16.mxu0 %v4478
    %6569 = vmatpush1.bf16.msra.mxu0 %v4477
    %6570 = vmatprep.mubr.bf16.mxu0 %v1893
    %6571 = vmatmul.mubr.bf16.gmra.mrb[0].mxu0 %v1886
    %v6572 = vpop.f32.mrb[0].mxu0
    %v6573 = vadd.f32 0.0, %v6572
    %v6574 = vpop.f32.mrb[0].mxu0
    %v6575 = vadd.f32 0.0, %v6574
    %v6576 = vpop.f32.mrb[0].mxu0
    %v6577 = vpop.f32.mrb[0].mxu0
    %6578 = vdwg.mxu0
    %6579 = vmatprep.subr.bf16.mxu0 %v4502
    %6580 = vmatpush1.bf16.msra.mxu0 %v4501
    %6581 = vmatprep.subr.bf16.mxu0 %v4526
    %6582 = vmatpush1.bf16.msra.mxu0 %v4525
    %6583 = vmatprep.subr.bf16.mxu0 %v4550
    %6584 = vmatpush1.bf16.msra.mxu0 %v4549
    %6585 = vmatprep.subr.bf16.mxu0 %v4574
    %6586 = vmatpush1.bf16.msra.mxu0 %v4573
    %6587 = vmatprep.subr.bf16.mxu0 %v4598
    %6588 = vmatpush1.bf16.msra.mxu0 %v4597
    %6589 = vmatprep.subr.bf16.mxu0 %v4622
    %6590 = vmatpush1.bf16.msra.mxu0 %v4621
    %6591 = vmatprep.subr.bf16.mxu0 %v4646
    %6592 = vmatpush1.bf16.msra.mxu0 %v4645
    %6593 = vmatprep.subr.bf16.mxu0 %v4670
    %6594 = vmatpush1.bf16.msra.mxu0 %v4669
    %6595 = vmatprep.subr.bf16.mxu0 %v4694
    %6596 = vmatpush1.bf16.msra.mxu0 %v4693
    %6597 = vmatprep.subr.bf16.mxu0 %v4718
    %6598 = vmatpush1.bf16.msra.mxu0 %v4717
    %6599 = vmatprep.subr.bf16.mxu0 %v4742
    %6600 = vmatpush1.bf16.msra.mxu0 %v4741
    %6601 = vmatprep.subr.bf16.mxu0 %v4766
    %6602 = vmatpush1.bf16.msra.mxu0 %v4765
    %6603 = vmatprep.subr.bf16.mxu0 %v4790
    %6604 = vmatpush1.bf16.msra.mxu0 %v4789
    %6605 = vmatprep.subr.bf16.mxu0 %v4814
    %6606 = vmatpush1.bf16.msra.mxu0 %v4813
    %6607 = vmatprep.subr.bf16.mxu0 %v5634
    %6608 = vmatpush1.bf16.msra.mxu0 %v5631
    %6609 = vmatprep.subr.bf16.mxu0 0
    %6610 = vmatpush1.bf16.msra.mxu0 0
    %6611 = vmatprep.mubr.bf16.mxu0 %v5561
    %6612 = vmatmul.mubr.bf16.gmra.mrb[0].mxu0 %v1894
    %v6613 = vpop.f32.mrb[0].mxu0
    %v6614 = vadd.f32 %v6573, %v6613
    %v6615 = vpop.f32.mrb[0].mxu0
    %v6616 = vadd.f32 %v6575, %v6615
    %v6617 = vpop.f32.mrb[0].mxu0
    %v6618 = vpop.f32.mrb[0].mxu0
    %6619 = vdwg.mxu0
    %v6620 = vadd.f32 %v976, %v5712
    %v6621 = vadd.f32 %v977, %v5714
    %v6622 = vadd.f32 %v978, %v5794
    %v6623 = vadd.f32 %v979, %v5796
    %v6624 = vadd.f32 %v980, %v5876
    %v6625 = vadd.f32 %v981, %v5878
    %v6626 = vadd.f32 %v982, %v5958
    %v6627 = vadd.f32 %v983, %v5960
    %v6628 = vadd.f32 %v984, %v6040
    %v6629 = vadd.f32 %v985, %v6042
    %v6630 = vadd.f32 %v986, %v6122
    %v6631 = vadd.f32 %v987, %v6124
    %v6632 = vadd.f32 %v988, %v6204
    %v6633 = vadd.f32 %v989, %v6206
    %v6634 = vadd.f32 %v990, %v6286
    %v6635 = vadd.f32 %v991, %v6288
    %v6636 = vadd.f32 %v992, %v6368
    %v6637 = vadd.f32 %v993, %v6370
    %v6638 = vadd.f32 %v994, %v6450
    %v6639 = vadd.f32 %v995, %v6452
    %v6640 = vadd.f32 %v996, %v6532
    %v6641 = vadd.f32 %v997, %v6534
    %v6642 = vadd.f32 %v998, %v6614
    %v6643 = vadd.f32 %v999, %v6616
    %v6668 = vcombine.low %v6620, %v6621
    %v6669 = vcombine.low %v6622, %v6623
    %v6671 = vunpack.c.l.s4 1983009808
    %v6672 = vunpack.c.0.s8 %v6671
    %v6673 = vlaneseq
    %v6674 = vshrl.u32 %v6673, 7
    %v6675 = vsub.s32 %v6672, %v6674
    %v6676 = vrot.slane %v6668, %v6675
    %v6678 = vunpack.c.l.s4 1983009808
    %v6679 = vunpack.c.0.s8 %v6678
    %v6680 = vlaneseq
    %v6681 = vshrl.u32 %v6680, 7
    %v6682 = vsub.s32 %v6679, %v6681
    %v6683 = vrot.slane %v6669, %v6682
    %v6684 = vcombine.low %v6676, %v6683
    %v6685 = vcombine.low %v6624, %v6625
    %v6686 = vcombine.low %v6626, %v6627
    %v6688 = vunpack.c.l.s4 1983009808
    %v6689 = vunpack.c.0.s8 %v6688
    %v6690 = vlaneseq
    %v6691 = vshrl.u32 %v6690, 7
    %v6692 = vsub.s32 %v6689, %v6691
    %v6693 = vrot.slane %v6685, %v6692
    %v6695 = vunpack.c.l.s4 1983009808
    %v6696 = vunpack.c.0.s8 %v6695
    %v6697 = vlaneseq
    %v6698 = vshrl.u32 %v6697, 7
    %v6699 = vsub.s32 %v6696, %v6698
    %v6700 = vrot.slane %v6686, %v6699
    %v6701 = vcombine.low %v6693, %v6700
    %v6702 = vcombine.low %v6628, %v6629
    %v6703 = vcombine.low %v6630, %v6631
    %v6705 = vunpack.c.l.s4 1983009808
    %v6706 = vunpack.c.0.s8 %v6705
    %v6707 = vlaneseq
    %v6708 = vshrl.u32 %v6707, 7
    %v6709 = vsub.s32 %v6706, %v6708
    %v6710 = vrot.slane %v6702, %v6709
    %v6712 = vunpack.c.l.s4 1983009808
    %v6713 = vunpack.c.0.s8 %v6712
    %v6714 = vlaneseq
    %v6715 = vshrl.u32 %v6714, 7
    %v6716 = vsub.s32 %v6713, %v6715
    %v6717 = vrot.slane %v6703, %v6716
    %v6718 = vcombine.low %v6710, %v6717
    %v6719 = vcombine.low %v6632, %v6633
    %v6720 = vcombine.low %v6634, %v6635
    %v6722 = vunpack.c.l.s4 1983009808
    %v6723 = vunpack.c.0.s8 %v6722
    %v6724 = vlaneseq
    %v6725 = vshrl.u32 %v6724, 7
    %v6726 = vsub.s32 %v6723, %v6725
    %v6727 = vrot.slane %v6719, %v6726
    %v6729 = vunpack.c.l.s4 1983009808
    %v6730 = vunpack.c.0.s8 %v6729
    %v6731 = vlaneseq
    %v6732 = vshrl.u32 %v6731, 7
    %v6733 = vsub.s32 %v6730, %v6732
    %v6734 = vrot.slane %v6720, %v6733
    %v6735 = vcombine.low %v6727, %v6734
    %v6736 = vcombine.low %v6636, %v6637
    %v6737 = vcombine.low %v6638, %v6639
    %v6739 = vunpack.c.l.s4 1983009808
    %v6740 = vunpack.c.0.s8 %v6739
    %v6741 = vlaneseq
    %v6742 = vshrl.u32 %v6741, 7
    %v6743 = vsub.s32 %v6740, %v6742
    %v6744 = vrot.slane %v6736, %v6743
    %v6746 = vunpack.c.l.s4 1983009808
    %v6747 = vunpack.c.0.s8 %v6746
    %v6748 = vlaneseq
    %v6749 = vshrl.u32 %v6748, 7
    %v6750 = vsub.s32 %v6747, %v6749
    %v6751 = vrot.slane %v6737, %v6750
    %v6752 = vcombine.low %v6744, %v6751
    %v6753 = vcombine.low %v6640, %v6641
    %v6754 = vcombine.low %v6642, %v6643
    %v6756 = vunpack.c.l.s4 1983009808
    %v6757 = vunpack.c.0.s8 %v6756
    %v6758 = vlaneseq
    %v6759 = vshrl.u32 %v6758, 7
    %v6760 = vsub.s32 %v6757, %v6759
    %v6761 = vrot.slane %v6753, %v6760
    %v6763 = vunpack.c.l.s4 1983009808
    %v6764 = vunpack.c.0.s8 %v6763
    %v6765 = vlaneseq
    %v6766 = vshrl.u32 %v6765, 7
    %v6767 = vsub.s32 %v6764, %v6766
    %v6768 = vrot.slane %v6754, %v6767
    %v6769 = vcombine.low %v6761, %v6768
    %6776 = vst [vmem:[#allocation12] sm:$0xff] %v6684
    %6777 = vst [vmem:[#allocation12 + $0x8] sm:$0xff] %v6701
    %6778 = vst [vmem:[#allocation12 + $0x10] sm:$0xff] %v6718
    %6779 = vst [vmem:[#allocation12 + $0x18] sm:$0xff] %v6735
    %6780 = vst [vmem:[#allocation12 + $0x20] sm:$0xff] %v6752
    %6781 = vst [vmem:[#allocation12 + $0x28] sm:$0xff] %v6769
    %vm6782 = vcmask 80896
    %v6783 = vsel %vm6782, %v91, 0
    %vm6785 = vcmask 1044480
    %v6787 = vsel %vm6785, %v236, 0
    %v6790 = vsel %vm6785, %v237, 0
    %v6793 = vsel %vm6785, %v238, 0
    %v6796 = vsel %vm6785, %v239, 0
    %v6799 = vsel %vm6785, %v240, 0
    %v6802 = vsel %vm6785, %v241, 0
    %v6805 = vsel %vm6785, %v242, 0
    %v6808 = vsel %vm6785, %v243, 0
    %v6811 = vsel %vm6785, %v244, 0
    %v6814 = vsel %vm6785, %v245, 0
    %v6817 = vsel %vm6785, %v246, 0
    %v6820 = vsel %vm6785, %v247, 0
    %v6823 = vsel %vm6785, %v248, 0
    %v6826 = vsel %vm6785, %v249, 0
    %v6829 = vsel %vm6785, %v250, 0
    %v6832 = vsel %vm6785, %v251, 0
    %v6835 = vsel %vm6785, %v252, 0
    %v6838 = vsel %vm6785, %v253, 0
    %v6841 = vsel %vm6785, %v254, 0
    %v6844 = vsel %vm6785, %v255, 0
    %v6847 = vsel %vm6785, %v256, 0
    %v6850 = vsel %vm6785, %v257, 0
    %v6853 = vsel %vm6785, %v258, 0
    %v6856 = vsel %vm6785, %v259, 0
    %6858 = vmatprep.subr.bf16.mxu0 %v6790
    %6859 = vmatpush1.bf16.msra.mxu0 %v6787
    %6860 = vmatprep.subr.bf16.mxu0 0
    %6861 = vmatpush1.bf16.msra.mxu0 0
    %6862 = vmatprep.subr.bf16.mxu0 0
    %6863 = vmatpush1.bf16.msra.mxu0 0
    %6864 = vmatprep.subr.bf16.mxu0 0
    %6865 = vmatpush1.bf16.msra.mxu0 0
    %6866 = vmatprep.subr.bf16.mxu0 0
    %6867 = vmatpush1.bf16.msra.mxu0 0
    %6868 = vmatprep.subr.bf16.mxu0 0
    %6869 = vmatpush1.bf16.msra.mxu0 0
    %6870 = vmatprep.subr.bf16.mxu0 0
    %6871 = vmatpush1.bf16.msra.mxu0 0
    %6872 = vmatprep.subr.bf16.mxu0 0
    %6873 = vmatpush1.bf16.msra.mxu0 0
    %6874 = vmatprep.subr.bf16.mxu0 0
    %6875 = vmatpush1.bf16.msra.mxu0 0
    %6876 = vmatprep.subr.bf16.mxu0 0
    %6877 = vmatpush1.bf16.msra.mxu0 0
    %6878 = vmatprep.subr.bf16.mxu0 0
    %6879 = vmatpush1.bf16.msra.mxu0 0
    %6880 = vmatprep.subr.bf16.mxu0 0
    %6881 = vmatpush1.bf16.msra.mxu0 0
    %6882 = vmatprep.subr.bf16.mxu0 0
    %6883 = vmatpush1.bf16.msra.mxu0 0
    %6884 = vmatprep.subr.bf16.mxu0 0
    %6885 = vmatpush1.bf16.msra.mxu0 0
    %6886 = vmatprep.subr.bf16.mxu0 0
    %6887 = vmatpush1.bf16.msra.mxu0 0
    %6888 = vmatprep.subr.bf16.mxu0 0
    %6889 = vmatpush1.bf16.msra.mxu0 0
    %6890 = vmatprep.mubr.f32.mxu0 0.0
    %6891 = vmatmul.mubr.f32.gmra.mrb[0].mxu0 %v6783
    %v6892 = vpop.f32.mrb[0].mxu0
    %v6893 = vadd.f32 0.0, %v6892
    %v6894 = vpop.f32.mrb[0].mxu0
    %v6895 = vadd.f32 0.0, %v6894
    %6896 = vdwg.mxu0
    %6897 = vmatprep.subr.bf16.mxu0 %v6796
    %6898 = vmatpush1.bf16.msra.mxu0 %v6793
    %6899 = vmatprep.subr.bf16.mxu0 0
    %6900 = vmatpush1.bf16.msra.mxu0 0
    %6901 = vmatprep.subr.bf16.mxu0 0
    %6902 = vmatpush1.bf16.msra.mxu0 0
    %6903 = vmatprep.subr.bf16.mxu0 0
    %6904 = vmatpush1.bf16.msra.mxu0 0
    %6905 = vmatprep.subr.bf16.mxu0 0
    %6906 = vmatpush1.bf16.msra.mxu0 0
    %6907 = vmatprep.subr.bf16.mxu0 0
    %6908 = vmatpush1.bf16.msra.mxu0 0
    %6909 = vmatprep.subr.bf16.mxu0 0
    %6910 = vmatpush1.bf16.msra.mxu0 0
    %6911 = vmatprep.subr.bf16.mxu0 0
    %6912 = vmatpush1.bf16.msra.mxu0 0
    %6913 = vmatprep.subr.bf16.mxu0 0
    %6914 = vmatpush1.bf16.msra.mxu0 0
    %6915 = vmatprep.subr.bf16.mxu0 0
    %6916 = vmatpush1.bf16.msra.mxu0 0
    %6917 = vmatprep.subr.bf16.mxu0 0
    %6918 = vmatpush1.bf16.msra.mxu0 0
    %6919 = vmatprep.subr.bf16.mxu0 0
    %6920 = vmatpush1.bf16.msra.mxu0 0
    %6921 = vmatprep.subr.bf16.mxu0 0
    %6922 = vmatpush1.bf16.msra.mxu0 0
    %6923 = vmatprep.subr.bf16.mxu0 0
    %6924 = vmatpush1.bf16.msra.mxu0 0
    %6925 = vmatprep.subr.bf16.mxu0 0
    %6926 = vmatpush1.bf16.msra.mxu0 0
    %6927 = vmatprep.subr.bf16.mxu0 0
    %6928 = vmatpush1.bf16.msra.mxu0 0
    %6929 = vmatprep.mubr.f32.mxu0 0.0
    %6930 = vmatmul.mubr.f32.gmra.mrb[0].mxu0 %v6783
    %v6931 = vpop.f32.mrb[0].mxu0
    %v6932 = vadd.f32 0.0, %v6931
    %v6933 = vpop.f32.mrb[0].mxu0
    %v6934 = vadd.f32 0.0, %v6933
    %6935 = vdwg.mxu0
    %6936 = vmatprep.subr.bf16.mxu0 %v6802
    %6937 = vmatpush1.bf16.msra.mxu0 %v6799
    %6938 = vmatprep.subr.bf16.mxu0 0
    %6939 = vmatpush1.bf16.msra.mxu0 0
    %6940 = vmatprep.subr.bf16.mxu0 0
    %6941 = vmatpush1.bf16.msra.mxu0 0
    %6942 = vmatprep.subr.bf16.mxu0 0
    %6943 = vmatpush1.bf16.msra.mxu0 0
    %6944 = vmatprep.subr.bf16.mxu0 0
    %6945 = vmatpush1.bf16.msra.mxu0 0
    %6946 = vmatprep.subr.bf16.mxu0 0
    %6947 = vmatpush1.bf16.msra.mxu0 0
    %6948 = vmatprep.subr.bf16.mxu0 0
    %6949 = vmatpush1.bf16.msra.mxu0 0
    %6950 = vmatprep.subr.bf16.mxu0 0
    %6951 = vmatpush1.bf16.msra.mxu0 0
    %6952 = vmatprep.subr.bf16.mxu0 0
    %6953 = vmatpush1.bf16.msra.mxu0 0
    %6954 = vmatprep.subr.bf16.mxu0 0
    %6955 = vmatpush1.bf16.msra.mxu0 0
    %6956 = vmatprep.subr.bf16.mxu0 0
    %6957 = vmatpush1.bf16.msra.mxu0 0
    %6958 = vmatprep.subr.bf16.mxu0 0
    %6959 = vmatpush1.bf16.msra.mxu0 0
    %6960 = vmatprep.subr.bf16.mxu0 0
    %6961 = vmatpush1.bf16.msra.mxu0 0
    %6962 = vmatprep.subr.bf16.mxu0 0
    %6963 = vmatpush1.bf16.msra.mxu0 0
    %6964 = vmatprep.subr.bf16.mxu0 0
    %6965 = vmatpush1.bf16.msra.mxu0 0
    %6966 = vmatprep.subr.bf16.mxu0 0
    %6967 = vmatpush1.bf16.msra.mxu0 0
    %6968 = vmatprep.mubr.f32.mxu0 0.0
    %6969 = vmatmul.mubr.f32.gmra.mrb[0].mxu0 %v6783
    %v6970 = vpop.f32.mrb[0].mxu0
    %v6971 = vadd.f32 0.0, %v6970
    %v6972 = vpop.f32.mrb[0].mxu0
    %v6973 = vadd.f32 0.0, %v6972
    %6974 = vdwg.mxu0
    %6975 = vmatprep.subr.bf16.mxu0 %v6808
    %6976 = vmatpush1.bf16.msra.mxu0 %v6805
    %6977 = vmatprep.subr.bf16.mxu0 0
    %6978 = vmatpush1.bf16.msra.mxu0 0
    %6979 = vmatprep.subr.bf16.mxu0 0
    %6980 = vmatpush1.bf16.msra.mxu0 0
    %6981 = vmatprep.subr.bf16.mxu0 0
    %6982 = vmatpush1.bf16.msra.mxu0 0
    %6983 = vmatprep.subr.bf16.mxu0 0
    %6984 = vmatpush1.bf16.msra.mxu0 0
    %6985 = vmatprep.subr.bf16.mxu0 0
    %6986 = vmatpush1.bf16.msra.mxu0 0
    %6987 = vmatprep.subr.bf16.mxu0 0
    %6988 = vmatpush1.bf16.msra.mxu0 0
    %6989 = vmatprep.subr.bf16.mxu0 0
    %6990 = vmatpush1.bf16.msra.mxu0 0
    %6991 = vmatprep.subr.bf16.mxu0 0
    %6992 = vmatpush1.bf16.msra.mxu0 0
    %6993 = vmatprep.subr.bf16.mxu0 0
    %6994 = vmatpush1.bf16.msra.mxu0 0
    %6995 = vmatprep.subr.bf16.mxu0 0
    %6996 = vmatpush1.bf16.msra.mxu0 0
    %6997 = vmatprep.subr.bf16.mxu0 0
    %6998 = vmatpush1.bf16.msra.mxu0 0
    %6999 = vmatprep.subr.bf16.mxu0 0
    %7000 = vmatpush1.bf16.msra.mxu0 0
    %7001 = vmatprep.subr.bf16.mxu0 0
    %7002 = vmatpush1.bf16.msra.mxu0 0
    %7003 = vmatprep.subr.bf16.mxu0 0
    %7004 = vmatpush1.bf16.msra.mxu0 0
    %7005 = vmatprep.subr.bf16.mxu0 0
    %7006 = vmatpush1.bf16.msra.mxu0 0
    %7007 = vmatprep.mubr.f32.mxu0 0.0
    %7008 = vmatmul.mubr.f32.gmra.mrb[0].mxu0 %v6783
    %v7009 = vpop.f32.mrb[0].mxu0
    %v7010 = vadd.f32 0.0, %v7009
    %v7011 = vpop.f32.mrb[0].mxu0
    %v7012 = vadd.f32 0.0, %v7011
    %7013 = vdwg.mxu0
    %7014 = vmatprep.subr.bf16.mxu0 %v6814
    %7015 = vmatpush1.bf16.msra.mxu0 %v6811
    %7016 = vmatprep.subr.bf16.mxu0 0
    %7017 = vmatpush1.bf16.msra.mxu0 0
    %7018 = vmatprep.subr.bf16.mxu0 0
    %7019 = vmatpush1.bf16.msra.mxu0 0
    %7020 = vmatprep.subr.bf16.mxu0 0
    %7021 = vmatpush1.bf16.msra.mxu0 0
    %7022 = vmatprep.subr.bf16.mxu0 0
    %7023 = vmatpush1.bf16.msra.mxu0 0
    %7024 = vmatprep.subr.bf16.mxu0 0
    %7025 = vmatpush1.bf16.msra.mxu0 0
    %7026 = vmatprep.subr.bf16.mxu0 0
    %7027 = vmatpush1.bf16.msra.mxu0 0
    %7028 = vmatprep.subr.bf16.mxu0 0
    %7029 = vmatpush1.bf16.msra.mxu0 0
    %7030 = vmatprep.subr.bf16.mxu0 0
    %7031 = vmatpush1.bf16.msra.mxu0 0
    %7032 = vmatprep.subr.bf16.mxu0 0
    %7033 = vmatpush1.bf16.msra.mxu0 0
    %7034 = vmatprep.subr.bf16.mxu0 0
    %7035 = vmatpush1.bf16.msra.mxu0 0
    %7036 = vmatprep.subr.bf16.mxu0 0
    %7037 = vmatpush1.bf16.msra.mxu0 0
    %7038 = vmatprep.subr.bf16.mxu0 0
    %7039 = vmatpush1.bf16.msra.mxu0 0
    %7040 = vmatprep.subr.bf16.mxu0 0
    %7041 = vmatpush1.bf16.msra.mxu0 0
    %7042 = vmatprep.subr.bf16.mxu0 0
    %7043 = vmatpush1.bf16.msra.mxu0 0
    %7044 = vmatprep.subr.bf16.mxu0 0
    %7045 = vmatpush1.bf16.msra.mxu0 0
    %7046 = vmatprep.mubr.f32.mxu0 0.0
    %7047 = vmatmul.mubr.f32.gmra.mrb[0].mxu0 %v6783
    %v7048 = vpop.f32.mrb[0].mxu0
    %v7049 = vadd.f32 0.0, %v7048
    %v7050 = vpop.f32.mrb[0].mxu0
    %v7051 = vadd.f32 0.0, %v7050
    %7052 = vdwg.mxu0
    %7053 = vmatprep.subr.bf16.mxu0 %v6820
    %7054 = vmatpush1.bf16.msra.mxu0 %v6817
    %7055 = vmatprep.subr.bf16.mxu0 0
    %7056 = vmatpush1.bf16.msra.mxu0 0
    %7057 = vmatprep.subr.bf16.mxu0 0
    %7058 = vmatpush1.bf16.msra.mxu0 0
    %7059 = vmatprep.subr.bf16.mxu0 0
    %7060 = vmatpush1.bf16.msra.mxu0 0
    %7061 = vmatprep.subr.bf16.mxu0 0
    %7062 = vmatpush1.bf16.msra.mxu0 0
    %7063 = vmatprep.subr.bf16.mxu0 0
    %7064 = vmatpush1.bf16.msra.mxu0 0
    %7065 = vmatprep.subr.bf16.mxu0 0
    %7066 = vmatpush1.bf16.msra.mxu0 0
    %7067 = vmatprep.subr.bf16.mxu0 0
    %7068 = vmatpush1.bf16.msra.mxu0 0
    %7069 = vmatprep.subr.bf16.mxu0 0
    %7070 = vmatpush1.bf16.msra.mxu0 0
    %7071 = vmatprep.subr.bf16.mxu0 0
    %7072 = vmatpush1.bf16.msra.mxu0 0
    %7073 = vmatprep.subr.bf16.mxu0 0
    %7074 = vmatpush1.bf16.msra.mxu0 0
    %7075 = vmatprep.subr.bf16.mxu0 0
    %7076 = vmatpush1.bf16.msra.mxu0 0
    %7077 = vmatprep.subr.bf16.mxu0 0
    %7078 = vmatpush1.bf16.msra.mxu0 0
    %7079 = vmatprep.subr.bf16.mxu0 0
    %7080 = vmatpush1.bf16.msra.mxu0 0
    %7081 = vmatprep.subr.bf16.mxu0 0
    %7082 = vmatpush1.bf16.msra.mxu0 0
    %7083 = vmatprep.subr.bf16.mxu0 0
    %7084 = vmatpush1.bf16.msra.mxu0 0
    %7085 = vmatprep.mubr.f32.mxu0 0.0
    %7086 = vmatmul.mubr.f32.gmra.mrb[0].mxu0 %v6783
    %v7087 = vpop.f32.mrb[0].mxu0
    %v7088 = vadd.f32 0.0, %v7087
    %v7089 = vpop.f32.mrb[0].mxu0
    %v7090 = vadd.f32 0.0, %v7089
    %7091 = vdwg.mxu0
    %7092 = vmatprep.subr.bf16.mxu0 %v6826
    %7093 = vmatpush1.bf16.msra.mxu0 %v6823
    %7094 = vmatprep.subr.bf16.mxu0 0
    %7095 = vmatpush1.bf16.msra.mxu0 0
    %7096 = vmatprep.subr.bf16.mxu0 0
    %7097 = vmatpush1.bf16.msra.mxu0 0
    %7098 = vmatprep.subr.bf16.mxu0 0
    %7099 = vmatpush1.bf16.msra.mxu0 0
    %7100 = vmatprep.subr.bf16.mxu0 0
    %7101 = vmatpush1.bf16.msra.mxu0 0
    %7102 = vmatprep.subr.bf16.mxu0 0
    %7103 = vmatpush1.bf16.msra.mxu0 0
    %7104 = vmatprep.subr.bf16.mxu0 0
    %7105 = vmatpush1.bf16.msra.mxu0 0
    %7106 = vmatprep.subr.bf16.mxu0 0
    %7107 = vmatpush1.bf16.msra.mxu0 0
    %7108 = vmatprep.subr.bf16.mxu0 0
    %7109 = vmatpush1.bf16.msra.mxu0 0
    %7110 = vmatprep.subr.bf16.mxu0 0
    %7111 = vmatpush1.bf16.msra.mxu0 0
    %7112 = vmatprep.subr.bf16.mxu0 0
    %7113 = vmatpush1.bf16.msra.mxu0 0
    %7114 = vmatprep.subr.bf16.mxu0 0
    %7115 = vmatpush1.bf16.msra.mxu0 0
    %7116 = vmatprep.subr.bf16.mxu0 0
    %7117 = vmatpush1.bf16.msra.mxu0 0
    %7118 = vmatprep.subr.bf16.mxu0 0
    %7119 = vmatpush1.bf16.msra.mxu0 0
    %7120 = vmatprep.subr.bf16.mxu0 0
    %7121 = vmatpush1.bf16.msra.mxu0 0
    %7122 = vmatprep.subr.bf16.mxu0 0
    %7123 = vmatpush1.bf16.msra.mxu0 0
    %7124 = vmatprep.mubr.f32.mxu0 0.0
    %7125 = vmatmul.mubr.f32.gmra.mrb[0].mxu0 %v6783
    %v7126 = vpop.f32.mrb[0].mxu0
    %v7127 = vadd.f32 0.0, %v7126
    %v7128 = vpop.f32.mrb[0].mxu0
    %v7129 = vadd.f32 0.0, %v7128
    %7130 = vdwg.mxu0
    %7131 = vmatprep.subr.bf16.mxu0 %v6832
    %7132 = vmatpush1.bf16.msra.mxu0 %v6829
    %7133 = vmatprep.subr.bf16.mxu0 0
    %7134 = vmatpush1.bf16.msra.mxu0 0
    %7135 = vmatprep.subr.bf16.mxu0 0
    %7136 = vmatpush1.bf16.msra.mxu0 0
    %7137 = vmatprep.subr.bf16.mxu0 0
    %7138 = vmatpush1.bf16.msra.mxu0 0
    %7139 = vmatprep.subr.bf16.mxu0 0
    %7140 = vmatpush1.bf16.msra.mxu0 0
    %7141 = vmatprep.subr.bf16.mxu0 0
    %7142 = vmatpush1.bf16.msra.mxu0 0
    %7143 = vmatprep.subr.bf16.mxu0 0
    %7144 = vmatpush1.bf16.msra.mxu0 0
    %7145 = vmatprep.subr.bf16.mxu0 0
    %7146 = vmatpush1.bf16.msra.mxu0 0
    %7147 = vmatprep.subr.bf16.mxu0 0
    %7148 = vmatpush1.bf16.msra.mxu0 0
    %7149 = vmatprep.subr.bf16.mxu0 0
    %7150 = vmatpush1.bf16.msra.mxu0 0
    %7151 = vmatprep.subr.bf16.mxu0 0
    %7152 = vmatpush1.bf16.msra.mxu0 0
    %7153 = vmatprep.subr.bf16.mxu0 0
    %7154 = vmatpush1.bf16.msra.mxu0 0
    %7155 = vmatprep.subr.bf16.mxu0 0
    %7156 = vmatpush1.bf16.msra.mxu0 0
    %7157 = vmatprep.subr.bf16.mxu0 0
    %7158 = vmatpush1.bf16.msra.mxu0 0
    %7159 = vmatprep.subr.bf16.mxu0 0
    %7160 = vmatpush1.bf16.msra.mxu0 0
    %7161 = vmatprep.subr.bf16.mxu0 0
    %7162 = vmatpush1.bf16.msra.mxu0 0
    %7163 = vmatprep.mubr.f32.mxu0 0.0
    %7164 = vmatmul.mubr.f32.gmra.mrb[0].mxu0 %v6783
    %v7165 = vpop.f32.mrb[0].mxu0
    %v7166 = vadd.f32 0.0, %v7165
    %v7167 = vpop.f32.mrb[0].mxu0
    %v7168 = vadd.f32 0.0, %v7167
    %7169 = vdwg.mxu0
    %7170 = vmatprep.subr.bf16.mxu0 %v6838
    %7171 = vmatpush1.bf16.msra.mxu0 %v6835
    %7172 = vmatprep.subr.bf16.mxu0 0
    %7173 = vmatpush1.bf16.msra.mxu0 0
    %7174 = vmatprep.subr.bf16.mxu0 0
    %7175 = vmatpush1.bf16.msra.mxu0 0
    %7176 = vmatprep.subr.bf16.mxu0 0
    %7177 = vmatpush1.bf16.msra.mxu0 0
    %7178 = vmatprep.subr.bf16.mxu0 0
    %7179 = vmatpush1.bf16.msra.mxu0 0
    %7180 = vmatprep.subr.bf16.mxu0 0
    %7181 = vmatpush1.bf16.msra.mxu0 0
    %7182 = vmatprep.subr.bf16.mxu0 0
    %7183 = vmatpush1.bf16.msra.mxu0 0
    %7184 = vmatprep.subr.bf16.mxu0 0
    %7185 = vmatpush1.bf16.msra.mxu0 0
    %7186 = vmatprep.subr.bf16.mxu0 0
    %7187 = vmatpush1.bf16.msra.mxu0 0
    %7188 = vmatprep.subr.bf16.mxu0 0
    %7189 = vmatpush1.bf16.msra.mxu0 0
    %7190 = vmatprep.subr.bf16.mxu0 0
    %7191 = vmatpush1.bf16.msra.mxu0 0
    %7192 = vmatprep.subr.bf16.mxu0 0
    %7193 = vmatpush1.bf16.msra.mxu0 0
    %7194 = vmatprep.subr.bf16.mxu0 0
    %7195 = vmatpush1.bf16.msra.mxu0 0
    %7196 = vmatprep.subr.bf16.mxu0 0
    %7197 = vmatpush1.bf16.msra.mxu0 0
    %7198 = vmatprep.subr.bf16.mxu0 0
    %7199 = vmatpush1.bf16.msra.mxu0 0
    %7200 = vmatprep.subr.bf16.mxu0 0
    %7201 = vmatpush1.bf16.msra.mxu0 0
    %7202 = vmatprep.mubr.f32.mxu0 0.0
    %7203 = vmatmul.mubr.f32.gmra.mrb[0].mxu0 %v6783
    %v7204 = vpop.f32.mrb[0].mxu0
    %v7205 = vadd.f32 0.0, %v7204
    %v7206 = vpop.f32.mrb[0].mxu0
    %v7207 = vadd.f32 0.0, %v7206
    %7208 = vdwg.mxu0
    %7209 = vmatprep.subr.bf16.mxu0 %v6844
    %7210 = vmatpush1.bf16.msra.mxu0 %v6841
    %7211 = vmatprep.subr.bf16.mxu0 0
    %7212 = vmatpush1.bf16.msra.mxu0 0
    %7213 = vmatprep.subr.bf16.mxu0 0
    %7214 = vmatpush1.bf16.msra.mxu0 0
    %7215 = vmatprep.subr.bf16.mxu0 0
    %7216 = vmatpush1.bf16.msra.mxu0 0
    %7217 = vmatprep.subr.bf16.mxu0 0
    %7218 = vmatpush1.bf16.msra.mxu0 0
    %7219 = vmatprep.subr.bf16.mxu0 0
    %7220 = vmatpush1.bf16.msra.mxu0 0
    %7221 = vmatprep.subr.bf16.mxu0 0
    %7222 = vmatpush1.bf16.msra.mxu0 0
    %7223 = vmatprep.subr.bf16.mxu0 0
    %7224 = vmatpush1.bf16.msra.mxu0 0
    %7225 = vmatprep.subr.bf16.mxu0 0
    %7226 = vmatpush1.bf16.msra.mxu0 0
    %7227 = vmatprep.subr.bf16.mxu0 0
    %7228 = vmatpush1.bf16.msra.mxu0 0
    %7229 = vmatprep.subr.bf16.mxu0 0
    %7230 = vmatpush1.bf16.msra.mxu0 0
    %7231 = vmatprep.subr.bf16.mxu0 0
    %7232 = vmatpush1.bf16.msra.mxu0 0
    %7233 = vmatprep.subr.bf16.mxu0 0
    %7234 = vmatpush1.bf16.msra.mxu0 0
    %7235 = vmatprep.subr.bf16.mxu0 0
    %7236 = vmatpush1.bf16.msra.mxu0 0
    %7237 = vmatprep.subr.bf16.mxu0 0
    %7238 = vmatpush1.bf16.msra.mxu0 0
    %7239 = vmatprep.subr.bf16.mxu0 0
    %7240 = vmatpush1.bf16.msra.mxu0 0
    %7241 = vmatprep.mubr.f32.mxu0 0.0
    %7242 = vmatmul.mubr.f32.gmra.mrb[0].mxu0 %v6783
    %v7243 = vpop.f32.mrb[0].mxu0
    %v7244 = vadd.f32 0.0, %v7243
    %v7245 = vpop.f32.mrb[0].mxu0
    %v7246 = vadd.f32 0.0, %v7245
    %7247 = vdwg.mxu0
    %7248 = vmatprep.subr.bf16.mxu0 %v6850
    %7249 = vmatpush1.bf16.msra.mxu0 %v6847
    %7250 = vmatprep.subr.bf16.mxu0 0
    %7251 = vmatpush1.bf16.msra.mxu0 0
    %7252 = vmatprep.subr.bf16.mxu0 0
    %7253 = vmatpush1.bf16.msra.mxu0 0
    %7254 = vmatprep.subr.bf16.mxu0 0
    %7255 = vmatpush1.bf16.msra.mxu0 0
    %7256 = vmatprep.subr.bf16.mxu0 0
    %7257 = vmatpush1.bf16.msra.mxu0 0
    %7258 = vmatprep.subr.bf16.mxu0 0
    %7259 = vmatpush1.bf16.msra.mxu0 0
    %7260 = vmatprep.subr.bf16.mxu0 0
    %7261 = vmatpush1.bf16.msra.mxu0 0
    %7262 = vmatprep.subr.bf16.mxu0 0
    %7263 = vmatpush1.bf16.msra.mxu0 0
    %7264 = vmatprep.subr.bf16.mxu0 0
    %7265 = vmatpush1.bf16.msra.mxu0 0
    %7266 = vmatprep.subr.bf16.mxu0 0
    %7267 = vmatpush1.bf16.msra.mxu0 0
    %7268 = vmatprep.subr.bf16.mxu0 0
    %7269 = vmatpush1.bf16.msra.mxu0 0
    %7270 = vmatprep.subr.bf16.mxu0 0
    %7271 = vmatpush1.bf16.msra.mxu0 0
    %7272 = vmatprep.subr.bf16.mxu0 0
    %7273 = vmatpush1.bf16.msra.mxu0 0
    %7274 = vmatprep.subr.bf16.mxu0 0
    %7275 = vmatpush1.bf16.msra.mxu0 0
    %7276 = vmatprep.subr.bf16.mxu0 0
    %7277 = vmatpush1.bf16.msra.mxu0 0
    %7278 = vmatprep.subr.bf16.mxu0 0
    %7279 = vmatpush1.bf16.msra.mxu0 0
    %7280 = vmatprep.mubr.f32.mxu0 0.0
    %7281 = vmatmul.mubr.f32.gmra.mrb[0].mxu0 %v6783
    %v7282 = vpop.f32.mrb[0].mxu0
    %v7283 = vadd.f32 0.0, %v7282
    %v7284 = vpop.f32.mrb[0].mxu0
    %v7285 = vadd.f32 0.0, %v7284
    %7286 = vdwg.mxu0
    %7287 = vmatprep.subr.bf16.mxu0 %v6856
    %7288 = vmatpush1.bf16.msra.mxu0 %v6853
    %7289 = vmatprep.subr.bf16.mxu0 0
    %7290 = vmatpush1.bf16.msra.mxu0 0
    %7291 = vmatprep.subr.bf16.mxu0 0
    %7292 = vmatpush1.bf16.msra.mxu0 0
    %7293 = vmatprep.subr.bf16.mxu0 0
    %7294 = vmatpush1.bf16.msra.mxu0 0
    %7295 = vmatprep.subr.bf16.mxu0 0
    %7296 = vmatpush1.bf16.msra.mxu0 0
    %7297 = vmatprep.subr.bf16.mxu0 0
    %7298 = vmatpush1.bf16.msra.mxu0 0
    %7299 = vmatprep.subr.bf16.mxu0 0
    %7300 = vmatpush1.bf16.msra.mxu0 0
    %7301 = vmatprep.subr.bf16.mxu0 0
    %7302 = vmatpush1.bf16.msra.mxu0 0
    %7303 = vmatprep.subr.bf16.mxu0 0
    %7304 = vmatpush1.bf16.msra.mxu0 0
    %7305 = vmatprep.subr.bf16.mxu0 0
    %7306 = vmatpush1.bf16.msra.mxu0 0
    %7307 = vmatprep.subr.bf16.mxu0 0
    %7308 = vmatpush1.bf16.msra.mxu0 0
    %7309 = vmatprep.subr.bf16.mxu0 0
    %7310 = vmatpush1.bf16.msra.mxu0 0
    %7311 = vmatprep.subr.bf16.mxu0 0
    %7312 = vmatpush1.bf16.msra.mxu0 0
    %7313 = vmatprep.subr.bf16.mxu0 0
    %7314 = vmatpush1.bf16.msra.mxu0 0
    %7315 = vmatprep.subr.bf16.mxu0 0
    %7316 = vmatpush1.bf16.msra.mxu0 0
    %7317 = vmatprep.subr.bf16.mxu0 0
    %7318 = vmatpush1.bf16.msra.mxu0 0
    %7319 = vmatprep.mubr.f32.mxu0 0.0
    %7320 = vmatmul.mubr.f32.gmra.mrb[0].mxu0 %v6783
    %v7321 = vpop.f32.mrb[0].mxu0
    %v7322 = vadd.f32 0.0, %v7321
    %v7323 = vpop.f32.mrb[0].mxu0
    %v7324 = vadd.f32 0.0, %v7323
    %7325 = vdwg.mxu0
    %v7326 = vadd.f32 %v859, %v6893
    %v7327 = vadd.f32 %v863, %v6895
    %v7328 = vadd.f32 %v867, %v6932
    %v7329 = vadd.f32 %v871, %v6934
    %v7330 = vadd.f32 %v875, %v6971
    %v7331 = vadd.f32 %v879, %v6973
    %v7332 = vadd.f32 %v883, %v7010
    %v7333 = vadd.f32 %v887, %v7012
    %v7334 = vadd.f32 %v891, %v7049
    %v7335 = vadd.f32 %v895, %v7051
    %v7336 = vadd.f32 %v899, %v7088
    %v7337 = vadd.f32 %v903, %v7090
    %v7338 = vadd.f32 %v907, %v7127
    %v7339 = vadd.f32 %v911, %v7129
    %v7340 = vadd.f32 %v915, %v7166
    %v7341 = vadd.f32 %v919, %v7168
    %v7342 = vadd.f32 %v923, %v7205
    %v7343 = vadd.f32 %v927, %v7207
    %v7344 = vadd.f32 %v931, %v7244
    %v7345 = vadd.f32 %v935, %v7246
    %v7346 = vadd.f32 %v939, %v7283
    %v7347 = vadd.f32 %v943, %v7285
    %v7348 = vadd.f32 %v947, %v7322
    %v7349 = vadd.f32 %v951, %v7324
    %v7374 = vcombine.low %v7326, %v7327
    %v7375 = vcombine.low %v7328, %v7329
    %v7377 = vunpack.c.l.s4 1983009808
    %v7378 = vunpack.c.0.s8 %v7377
    %v7379 = vlaneseq
    %v7380 = vshrl.u32 %v7379, 7
    %v7381 = vsub.s32 %v7378, %v7380
    %v7382 = vrot.slane %v7374, %v7381
    %v7384 = vunpack.c.l.s4 1983009808
    %v7385 = vunpack.c.0.s8 %v7384
    %v7386 = vlaneseq
    %v7387 = vshrl.u32 %v7386, 7
    %v7388 = vsub.s32 %v7385, %v7387
    %v7389 = vrot.slane %v7375, %v7388
    %v7390 = vcombine.low %v7382, %v7389
    %v7391 = vcombine.low %v7330, %v7331
    %v7392 = vcombine.low %v7332, %v7333
    %v7394 = vunpack.c.l.s4 1983009808
    %v7395 = vunpack.c.0.s8 %v7394
    %v7396 = vlaneseq
    %v7397 = vshrl.u32 %v7396, 7
    %v7398 = vsub.s32 %v7395, %v7397
    %v7399 = vrot.slane %v7391, %v7398
    %v7401 = vunpack.c.l.s4 1983009808
    %v7402 = vunpack.c.0.s8 %v7401
    %v7403 = vlaneseq
    %v7404 = vshrl.u32 %v7403, 7
    %v7405 = vsub.s32 %v7402, %v7404
    %v7406 = vrot.slane %v7392, %v7405
    %v7407 = vcombine.low %v7399, %v7406
    %v7408 = vcombine.low %v7334, %v7335
    %v7409 = vcombine.low %v7336, %v7337
    %v7411 = vunpack.c.l.s4 1983009808
    %v7412 = vunpack.c.0.s8 %v7411
    %v7413 = vlaneseq
    %v7414 = vshrl.u32 %v7413, 7
    %v7415 = vsub.s32 %v7412, %v7414
    %v7416 = vrot.slane %v7408, %v7415
    %v7418 = vunpack.c.l.s4 1983009808
    %v7419 = vunpack.c.0.s8 %v7418
    %v7420 = vlaneseq
    %v7421 = vshrl.u32 %v7420, 7
    %v7422 = vsub.s32 %v7419, %v7421
    %v7423 = vrot.slane %v7409, %v7422
    %v7424 = vcombine.low %v7416, %v7423
    %v7425 = vcombine.low %v7338, %v7339
    %v7426 = vcombine.low %v7340, %v7341
    %v7428 = vunpack.c.l.s4 1983009808
    %v7429 = vunpack.c.0.s8 %v7428
    %v7430 = vlaneseq
    %v7431 = vshrl.u32 %v7430, 7
    %v7432 = vsub.s32 %v7429, %v7431
    %v7433 = vrot.slane %v7425, %v7432
    %v7435 = vunpack.c.l.s4 1983009808
    %v7436 = vunpack.c.0.s8 %v7435
    %v7437 = vlaneseq
    %v7438 = vshrl.u32 %v7437, 7
    %v7439 = vsub.s32 %v7436, %v7438
    %v7440 = vrot.slane %v7426, %v7439
    %v7441 = vcombine.low %v7433, %v7440
    %v7442 = vcombine.low %v7342, %v7343
    %v7443 = vcombine.low %v7344, %v7345
    %v7445 = vunpack.c.l.s4 1983009808
    %v7446 = vunpack.c.0.s8 %v7445
    %v7447 = vlaneseq
    %v7448 = vshrl.u32 %v7447, 7
    %v7449 = vsub.s32 %v7446, %v7448
    %v7450 = vrot.slane %v7442, %v7449
    %v7452 = vunpack.c.l.s4 1983009808
    %v7453 = vunpack.c.0.s8 %v7452
    %v7454 = vlaneseq
    %v7455 = vshrl.u32 %v7454, 7
    %v7456 = vsub.s32 %v7453, %v7455
    %v7457 = vrot.slane %v7443, %v7456
    %v7458 = vcombine.low %v7450, %v7457
    %v7459 = vcombine.low %v7346, %v7347
    %v7460 = vcombine.low %v7348, %v7349
    %v7462 = vunpack.c.l.s4 1983009808
    %v7463 = vunpack.c.0.s8 %v7462
    %v7464 = vlaneseq
    %v7465 = vshrl.u32 %v7464, 7
    %v7466 = vsub.s32 %v7463, %v7465
    %v7467 = vrot.slane %v7459, %v7466
    %v7469 = vunpack.c.l.s4 1983009808
    %v7470 = vunpack.c.0.s8 %v7469
    %v7471 = vlaneseq
    %v7472 = vshrl.u32 %v7471, 7
    %v7473 = vsub.s32 %v7470, %v7472
    %v7474 = vrot.slane %v7460, %v7473
    %v7475 = vcombine.low %v7467, %v7474
    %7482 = vst [vmem:[#allocation14] sm:$0xff] %v7390
    %7483 = vst [vmem:[#allocation14 + $0x8] sm:$0xff] %v7407
    %7484 = vst [vmem:[#allocation14 + $0x10] sm:$0xff] %v7424
    %7485 = vst [vmem:[#allocation14 + $0x18] sm:$0xff] %v7441
    %7486 = vst [vmem:[#allocation14 + $0x20] sm:$0xff] %v7458
    %7487 = vst [vmem:[#allocation14 + $0x28] sm:$0xff] %v7475
    // Predicated region
    $region42: #{tpu_custom_call.1} parent=1 // pred_check
      _
    $region43: #{tpu_custom_call.1} parent=1 // pred_check_branch
      %7489 = sbr.rel (0) target = $region45
    $region44: #{tpu_custom_call.1} parent=1 // pred_region
      %s7491 = ssub.s32 768, 768
      %7492 = vsyncadd [#allocation4], %s7491
      %s7494 = sshll.u32 [#allocation11], 4
      %s7495 = int_to_ptr.vmem [resolvable:$true] %s7494
      %7497 = dma.vmem_to_hbm [thread:$0]  %s7495, 768, %s5, [#allocation4]
    $region45: #{tpu_custom_call.1} parent=1 // pred_fallthru
      _
    // Predicated region
    $region46: #{tpu_custom_call.1} parent=1 // pred_check
      _
    $region47: #{tpu_custom_call.1} parent=1 // pred_check_branch
      %7499 = sbr.rel (0) target = $region49
    $region48: #{tpu_custom_call.1} parent=1 // pred_region
      %s7501 = ssub.s32 768, 768
      %7502 = vsyncadd [#allocation13], %s7501
      %s7504 = sshll.u32 [#allocation12], 4
      %s7505 = int_to_ptr.vmem [resolvable:$true] %s7504
      %7507 = dma.vmem_to_hbm [thread:$0]  %s7505, 768, %s6, [#allocation13]
    $region49: #{tpu_custom_call.1} parent=1 // pred_fallthru
      _
    // Predicated region
    $region50: #{tpu_custom_call.1} parent=1 // pred_check
      _
    $region51: #{tpu_custom_call.1} parent=1 // pred_check_branch
      %7509 = sbr.rel (0) target = $region53
    $region52: #{tpu_custom_call.1} parent=1 // pred_region
      %s7511 = ssub.s32 768, 768
      %7512 = vsyncadd [#allocation13], %s7511
      %s7514 = sshll.u32 [#allocation14], 4
      %s7515 = int_to_ptr.vmem [resolvable:$true] %s7514
      %7517 = dma.vmem_to_hbm [thread:$0]  %s7515, 768, %s7, [#allocation13]
    $region53: #{tpu_custom_call.1} parent=1 // pred_fallthru
      _
    // Predicated region
    $region54: #{tpu_custom_call.1} parent=1 // pred_check
      _
    $region55: #{tpu_custom_call.1} parent=1 // pred_check_branch
      %7519 = sbr.rel (0) target = $region57
    $region56: #{tpu_custom_call.1} parent=1 // pred_region
      %7520 = dma.done [#allocation4], 768
    $region57: #{tpu_custom_call.1} parent=1 // pred_fallthru
      _
    // Predicated region
    $region58: #{tpu_custom_call.1} parent=1 // pred_check
      _
    $region59: #{tpu_custom_call.1} parent=1 // pred_check_branch
      %7522 = sbr.rel (0) target = $region61
    $region60: #{tpu_custom_call.1} parent=1 // pred_region
      %7523 = dma.done [#allocation13], 768
    $region61: #{tpu_custom_call.1} parent=1 // pred_fallthru
      _
    // Predicated region
    $region62: #{tpu_custom_call.1} parent=1 // pred_check
      _
    $region63: #{tpu_custom_call.1} parent=1 // pred_check_branch
      %7525 = sbr.rel (0) target = $region65
    $region64: #{tpu_custom_call.1} parent=1 // pred_region
      %7526 = dma.done [#allocation13], 768
    $region65: #{tpu_custom_call.1} parent=1 // pred_fallthru
      _
    %7527 = vsyncpa [#allocation3], 1
    %7528 = vsyncpa [#allocation6], 1
    %7529 = vsyncpa [#allocation9], 1
    %7530 = vsyncpa [#allocation4], 1
    %7531 = vsyncpa [#allocation13], 1

</llo_original>
